<compile_context>
chip_gen: v6e
topology: v6e:2x2x1
jax: 0.10.0
libtpu: 0.0.40
codegen_flags: <defaults>
</compile_context>

<pallas_src>
import functools
import math

import numpy as np
import jax
import jax.numpy as jnp
from jax import lax
from jax.experimental import pallas as pl
from jax.experimental.pallas import tpu as pltpu

# ---------------------------------------------------------------------------
# Static model configuration (BucketModel -> SDFNetwork defaults).
D_IN = 3
NUM_FREQ = 6                               # SDFNetwork(multires=6)
PE_DIM = D_IN + 2 * NUM_FREQ * D_IN        # 39
D_HIDDEN = 64
D_OUT = 1
H1_DIM = D_HIDDEN - PE_DIM                 # 25 (lin1 output, shrunk by skip)
SCALE = 1.0                                # SDFNetwork(scale=1)
NEG_SLOPE = 0.01                           # torch.nn.LeakyReLU default
FREQ_BANDS = [float(2.0 ** v) for v in np.linspace(0.0, NUM_FREQ - 1, NUM_FREQ)]

# Fused (two-network) dimensions: rows 0:64 = "bucket" net, 64:128 = "weights".
FUSED_H = 2 * D_HIDDEN                     # 128
FUSED_H1 = 2 * H1_DIM                      # 50
Z2_DIM = FUSED_H1 + PE_DIM                 # 89

# (din, dout) of lin0..lin4 in (in, out) layout: y = x @ W + b.
_LAYER_DIMS = [(PE_DIM, D_HIDDEN), (D_HIDDEN, H1_DIM), (D_HIDDEN, D_HIDDEN),
               (D_HIDDEN, D_HIDDEN), (D_HIDDEN, D_OUT)]

# Canonical PE ordering is [x, sin(f0 x), cos(f0 x), sin(f1 x), ...]; the
# kernel uses [x, sin(f0 x)..sin(f5 x), cos(f0 x)..cos(f5 x)] so the sin/cos
# blocks are dense.  These index arrays re-gather canonical weight rows into
# the kernel order (host side, once).
_SIN_ROWS = np.array([3 + 6 * i + j for i in range(NUM_FREQ) for j in range(D_IN)])
_COS_ROWS = _SIN_ROWS + D_IN


# ---------------------------------------------------------------------------
# Kernel
def _leaky_relu(h):
    return jnp.where(h >= 0, h, NEG_SLOPE * h)


def _mm(w_ref, act):
    # bf16 MXU matmul with f32 accumulation; weights are pre-cast to bf16.
    return jnp.dot(w_ref[...], act.astype(jnp.bfloat16),
                   preferred_element_type=jnp.float32)


def _bucket_model_kernel(x_ref,
                         w0_ref, b0_ref, w1_ref, b1_ref, w2_ref, b2_ref,
                         w3_ref, b3_ref, w4_ref, b4_ref,
                         out_ref):
    # Transposed layout: x_ref is a (3, T) tile; every activation keeps the
    # point index on the lane axis and features on sublanes (lane-dense).
    x = x_ref[...] * SCALE                                        # (3, T) f32
    # PE argument expansion on the VPU: xf[3*i + j, :] = freq_i * x_j.
    xf = jnp.concatenate([x * f for f in FREQ_BANDS], axis=0)     # (18, T)
    pe = jnp.concatenate([x, jnp.sin(xf), jnp.cos(xf)], axis=0)   # (39, T)

    # Both SDF networks fused into 128-wide stacked / block-diagonal matmuls.
    h = _leaky_relu(_mm(w0_ref, pe) + b0_ref[...])                # (128, T)
    h1 = _leaky_relu(_mm(w1_ref, h) + b1_ref[...])                # (50, T)
    # Skip layer lin2(cat([h1, pe]) / sqrt(2)); the 1/sqrt(2) is folded into
    # w2 on the host, and the concat makes this a single K=89 matmul.
    z2 = jnp.concatenate([h1, pe], axis=0)                        # (89, T)
    h = _leaky_relu(_mm(w2_ref, z2) + b2_ref[...])                # (128, T)
    h = _leaky_relu(_mm(w3_ref, h) + b3_ref[...])                 # (128, T)
    y = _mm(w4_ref, h) + b4_ref[...]                              # (2, T)

    # Row 0 -> sigmoid (exact tanh identity, EUP-friendly, overflow-free);
    # row 1 -> softplus(y - 10) in its stable form.
    sig = 0.5 * (jnp.tanh(0.5 * y) + 1.0)
    v = y - 10.0
    sp = jnp.maximum(v, 0.0) + jnp.log(1.0 + jnp.exp(-jnp.abs(v)))
    row = lax.broadcasted_iota(jnp.int32, y.shape, 0)
    out_ref[...] = jnp.where(row == 0, sig, sp)


# ---------------------------------------------------------------------------
# Host-side parameter fusion + wrapper
def _fuse_params(bucket_params, weights_params):
    """Fold both SDF nets into transposed, block-diagonal kernel weights."""
    (w0b, b0b), (w1b, b1b), (w2b, b2b), (w3b, b3b), (w4b, b4b) = bucket_params
    (w0w, b0w), (w1w, b1w), (w2w, b2w), (w3w, b3w), (w4w, b4w) = weights_params
    inv_s2 = 1.0 / math.sqrt(2.0)

    def pe_rows(w):  # canonical PE-facing rows -> kernel [x, sin, cos] order
        return jnp.concatenate([w[:D_IN], w[_SIN_ROWS], w[_COS_ROWS]], axis=0)

    # layer 0: both nets stacked along the output dim -> (128, 39)
    w0 = jnp.concatenate([pe_rows(w0b).T, pe_rows(w0w).T], axis=0)
    b0 = jnp.concatenate([b0b, b0w]).reshape(FUSED_H, 1)

    # layer 1: block diagonal (50, 128)
    w1 = jnp.zeros((FUSED_H1, FUSED_H), jnp.float32)
    w1 = w1.at[:H1_DIM, :D_HIDDEN].set(w1b.T)
    w1 = w1.at[H1_DIM:, D_HIDDEN:].set(w1w.T)
    b1 = jnp.concatenate([b1b, b1w]).reshape(FUSED_H1, 1)

    # layer 2: (128, 50 + 39), skip-scale 1/sqrt(2) folded in (not into b2)
    w2 = jnp.zeros((FUSED_H, Z2_DIM), jnp.float32)
    w2 = w2.at[:D_HIDDEN, :H1_DIM].set(w2b[:H1_DIM].T * inv_s2)
    w2 = w2.at[D_HIDDEN:, H1_DIM:FUSED_H1].set(w2w[:H1_DIM].T * inv_s2)
    w2 = w2.at[:D_HIDDEN, FUSED_H1:].set(pe_rows(w2b[H1_DIM:]).T * inv_s2)
    w2 = w2.at[D_HIDDEN:, FUSED_H1:].set(pe_rows(w2w[H1_DIM:]).T * inv_s2)
    b2 = jnp.concatenate([b2b, b2w]).reshape(FUSED_H, 1)

    # layer 3: block diagonal (128, 128)
    w3 = jnp.zeros((FUSED_H, FUSED_H), jnp.float32)
    w3 = w3.at[:D_HIDDEN, :D_HIDDEN].set(w3b.T)
    w3 = w3.at[D_HIDDEN:, D_HIDDEN:].set(w3w.T)
    b3 = jnp.concatenate([b3b, b3w]).reshape(FUSED_H, 1)

    # layer 4: the two heads merged into one (2, 128) matmul
    w4 = jnp.zeros((2, FUSED_H), jnp.float32)
    w4 = w4.at[0, :D_HIDDEN].set(w4b[:, 0])
    w4 = w4.at[1, D_HIDDEN:].set(w4w[:, 0])
    b4 = jnp.stack([b4b[0], b4w[0]]).reshape(2, 1)

    bf = lambda a: a.astype(jnp.bfloat16)
    # Weights in bf16 (MXU-native everywhere); biases stay f32.
    return (bf(w0), b0, bf(w1), b1, bf(w2), b2, bf(w3), b3, bf(w4), b4)


@functools.partial(jax.jit, static_argnames=("tile_rows",))
def bucket_model_forward(x, bucket_params, weights_params, tile_rows=2048):
    """Fused BucketModel: (sigmoid(sdf_b(x)), softplus(sdf_w(x) - 10))."""
    assert x.ndim == 2 and x.shape[1] == D_IN
    assert tile_rows % 128 == 0, "rows map to the 128-lane axis"
    n = x.shape[0]
    n_pad = pl.cdiv(n, tile_rows) * tile_rows
    # Transposed (3, N) input: contiguous row-tile DMAs, no lane padding.
    xt = jnp.pad(x.astype(jnp.float32).T, ((0, 0), (0, n_pad - n)))

    fused = _fuse_params(bucket_params, weights_params)

    def resident(a):  # full array resident in VMEM across the row grid
        nd = a.ndim
        return pl.BlockSpec(a.shape, lambda i, _nd=nd: (0,) * _nd)

    out = pl.pallas_call(
        _bucket_model_kernel,
        out_shape=jax.ShapeDtypeStruct((2, n_pad), jnp.float32),
        grid_spec=pltpu.PrefetchScalarGridSpec(
            num_scalar_prefetch=0,
            grid=(n_pad // tile_rows,),
            in_specs=[pl.BlockSpec((D_IN, tile_rows), lambda i: (0, i))]
                     + [resident(a) for a in fused],
            out_specs=pl.BlockSpec((2, tile_rows), lambda i: (0, i)),
        ),
        compiler_params=pltpu.CompilerParams(
            dimension_semantics=("parallel",)),   # megacore sharding on v7x
    )(xt, *fused)

    # Row 0 = bucket head, row 1 = weights head; back to (N, 1) each.
    return out[0, :n, None], out[1, :n, None]


# ---------------------------------------------------------------------------
# Pure-JAX reference mirroring the PyTorch module exactly (canonical layout).
def _pe_reference(x):
    parts = [x]
    for f in FREQ_BANDS:
        parts.append(jnp.sin(x * f))
        parts.append(jnp.cos(x * f))
    return jnp.concatenate(parts, axis=-1)


def _sdf_reference(x, params):
    pe = _pe_reference(x * SCALE)
    (w0, b0), (w1, b1), (w2, b2), (w3, b3), (w4, b4) = params
    dot = lambda a, b: jnp.dot(a, b, precision=jax.lax.Precision.HIGHEST)
    act = lambda h: jnp.where(h >= 0, h, NEG_SLOPE * h)
    h = act(dot(pe, w0) + b0)
    h = act(dot(h, w1) + b1)
    h = jnp.concatenate([h, pe], axis=-1) / math.sqrt(2.0)
    h = act(dot(h, w2) + b2)
    h = act(dot(h, w3) + b3)
    return dot(h, w4) + b4


@jax.jit
def bucket_model_reference(x, bucket_params, weights_params):
    return (jax.nn.sigmoid(_sdf_reference(x, bucket_params)),
            jax.nn.softplus(_sdf_reference(x, weights_params) - 10.0))


def _make_sdf_params(key):
    # TODO(synk): PyTorch uses orthogonal_ weights / normal_ biases; any
    # deterministic params exercise the same forward math, so plain scaled
    # gaussians are used here.
    params = []
    for din, dout in _LAYER_DIMS:
        key, kw, kb = jax.random.split(key, 3)
        w = jax.random.normal(kw, (din, dout), jnp.float32) / np.sqrt(din)
        b = 0.1 * jax.random.normal(kb, (dout,), jnp.float32)
        params.append((w, b))
    return key, params


if __name__ == "__main__":
    key = jax.random.PRNGKey(0)
    key, kx = jax.random.split(key)
    n_points = 2000                               # pads to 2048 -> grid of 4
    x = jax.random.normal(kx, (n_points, D_IN), dtype=jnp.float32)

    key, bucket_params = _make_sdf_params(key)
    key, weights_params = _make_sdf_params(key)

    out_bucket, out_weights = bucket_model_forward(
        x, bucket_params, weights_params, tile_rows=512)
    out_bucket = jax.block_until_ready(out_bucket)
    out_weights = jax.block_until_ready(out_weights)

    ref_bucket, ref_weights = bucket_model_reference(x, bucket_params, weights_params)

    assert out_bucket.shape == (n_points, 1)
    assert out_weights.shape == (n_points, 1)
    # bf16 matmul operands (f32 accumulation) -> loose-but-meaningful bounds;
    # any wiring bug would produce O(1) differences, far outside these.
    assert bool(jnp.allclose(out_bucket, ref_bucket, atol=5e-2, rtol=0.0)), \
        float(jnp.max(jnp.abs(out_bucket - ref_bucket)))
    assert bool(jnp.allclose(out_weights, ref_weights, atol=1e-5, rtol=3e-1)), \
        float(jnp.max(jnp.abs(out_weights - ref_weights)))
    print("KERNEL_OK")
</pallas_src>

<mosaic_0001>
module attributes {stable_mosaic.version = 11 : i64} {
  func.func @_bucket_model_kernel(%arg0: i32, %arg1: memref<3x512xf32, #tpu.memory_space<vmem>>, %arg2: memref<128x39xbf16, #tpu.memory_space<vmem>>, %arg3: memref<128x1xf32, #tpu.memory_space<vmem>>, %arg4: memref<50x128xbf16, #tpu.memory_space<vmem>>, %arg5: memref<50x1xf32, #tpu.memory_space<vmem>>, %arg6: memref<128x89xbf16, #tpu.memory_space<vmem>>, %arg7: memref<128x1xf32, #tpu.memory_space<vmem>>, %arg8: memref<128x128xbf16, #tpu.memory_space<vmem>>, %arg9: memref<128x1xf32, #tpu.memory_space<vmem>>, %arg10: memref<2x128xbf16, #tpu.memory_space<vmem>>, %arg11: memref<2x1xf32, #tpu.memory_space<vmem>>, %arg12: memref<2x512xf32, #tpu.memory_space<vmem>>) attributes {dimension_semantics = [#tpu.dimension_semantics<parallel>], iteration_bounds = array<i64: 4>, scalar_prefetch = 0 : i64, scratch_operands = 0 : i64, tpu.core_type = #tpu.core_type<tc>, window_params = [{transform_indices = @transform_0, window_bounds = array<i64: 3, 512>}, {pipeline_mode = #tpu.pipeline_mode<synchronous>, transform_indices = @transform_1, window_bounds = array<i64: 128, 39>}, {pipeline_mode = #tpu.pipeline_mode<synchronous>, transform_indices = @transform_2, window_bounds = array<i64: 128, 1>}, {pipeline_mode = #tpu.pipeline_mode<synchronous>, transform_indices = @transform_3, window_bounds = array<i64: 50, 128>}, {pipeline_mode = #tpu.pipeline_mode<synchronous>, transform_indices = @transform_4, window_bounds = array<i64: 50, 1>}, {pipeline_mode = #tpu.pipeline_mode<synchronous>, transform_indices = @transform_5, window_bounds = array<i64: 128, 89>}, {pipeline_mode = #tpu.pipeline_mode<synchronous>, transform_indices = @transform_6, window_bounds = array<i64: 128, 1>}, {pipeline_mode = #tpu.pipeline_mode<synchronous>, transform_indices = @transform_7, window_bounds = array<i64: 128, 128>}, {pipeline_mode = #tpu.pipeline_mode<synchronous>, transform_indices = @transform_8, window_bounds = array<i64: 128, 1>}, {pipeline_mode = #tpu.pipeline_mode<synchronous>, transform_indices = @transform_9, window_bounds = array<i64: 2, 128>}, {pipeline_mode = #tpu.pipeline_mode<synchronous>, transform_indices = @transform_10, window_bounds = array<i64: 2, 1>}, {transform_indices = @transform_11, window_bounds = array<i64: 2, 512>}]} {
    %c0 = arith.constant 0 : index
    %c0_0 = arith.constant 0 : index
    %0 = vector.load %arg1[%c0, %c0_0] : memref<3x512xf32, #tpu.memory_space<vmem>>, vector<3x512xf32>
    %cst = arith.constant 1.000000e+00 : f32
    %1 = vector.broadcast %cst : f32 to vector<3x512xf32>
    %2 = arith.mulf %0, %1 : vector<3x512xf32>
    %cst_1 = arith.constant 1.000000e+00 : f32
    %3 = vector.broadcast %cst_1 : f32 to vector<3x512xf32>
    %4 = arith.mulf %2, %3 : vector<3x512xf32>
    %cst_2 = arith.constant 2.000000e+00 : f32
    %5 = vector.broadcast %cst_2 : f32 to vector<3x512xf32>
    %6 = arith.mulf %2, %5 : vector<3x512xf32>
    %cst_3 = arith.constant 4.000000e+00 : f32
    %7 = vector.broadcast %cst_3 : f32 to vector<3x512xf32>
    %8 = arith.mulf %2, %7 : vector<3x512xf32>
    %cst_4 = arith.constant 8.000000e+00 : f32
    %9 = vector.broadcast %cst_4 : f32 to vector<3x512xf32>
    %10 = arith.mulf %2, %9 : vector<3x512xf32>
    %cst_5 = arith.constant 1.600000e+01 : f32
    %11 = vector.broadcast %cst_5 : f32 to vector<3x512xf32>
    %12 = arith.mulf %2, %11 : vector<3x512xf32>
    %cst_6 = arith.constant 3.200000e+01 : f32
    %13 = vector.broadcast %cst_6 : f32 to vector<3x512xf32>
    %14 = arith.mulf %2, %13 : vector<3x512xf32>
    %15 = tpu.concatenate %4, %6, %8, %10, %12, %14 in 0 : vector<3x512xf32>, vector<3x512xf32>, vector<3x512xf32>, vector<3x512xf32>, vector<3x512xf32>, vector<3x512xf32> -> vector<18x512xf32>
    %16 = math.sin %15 : vector<18x512xf32>
    %17 = math.cos %15 : vector<18x512xf32>
    %18 = tpu.concatenate %2, %16, %17 in 0 : vector<3x512xf32>, vector<18x512xf32>, vector<18x512xf32> -> vector<39x512xf32>
    %c0_7 = arith.constant 0 : index
    %c0_8 = arith.constant 0 : index
    %19 = vector.load %arg2[%c0_7, %c0_8] : memref<128x39xbf16, #tpu.memory_space<vmem>>, vector<128x39xbf16>
    %20 = arith.truncf %18 : vector<39x512xf32> to vector<39x512xbf16>
    %cst_9 = arith.constant dense<0.000000e+00> : vector<128x512xf32>
    %21 = tpu.matmul %19, %20, %cst_9 {dimension_numbers = #tpu.dot_dimension_numbers<[1], [0], [0], [1], [0, 0, 1, 1], [], []>} : vector<128x39xbf16>, vector<39x512xbf16>, vector<128x512xf32> -> vector<128x512xf32>
    %c0_10 = arith.constant 0 : index
    %c0_11 = arith.constant 0 : index
    %22 = vector.load %arg3[%c0_10, %c0_11] : memref<128x1xf32, #tpu.memory_space<vmem>>, vector<128x1xf32>
    %23 = vector.broadcast %22 : vector<128x1xf32> to vector<128x512xf32>
    %24 = arith.addf %21, %23 : vector<128x512xf32>
    %cst_12 = arith.constant 0.000000e+00 : f32
    %25 = vector.broadcast %cst_12 : f32 to vector<128x512xf32>
    %26 = arith.cmpf oge, %24, %25 : vector<128x512xf32>
    %cst_13 = arith.constant 0.00999999977 : f32
    %27 = vector.broadcast %cst_13 : f32 to vector<128x512xf32>
    %28 = arith.mulf %27, %24 : vector<128x512xf32>
    %29 = arith.select %26, %24, %28 : vector<128x512xi1>, vector<128x512xf32>
    %c0_14 = arith.constant 0 : index
    %c0_15 = arith.constant 0 : index
    %30 = vector.load %arg4[%c0_14, %c0_15] : memref<50x128xbf16, #tpu.memory_space<vmem>>, vector<50x128xbf16>
    %31 = arith.truncf %29 : vector<128x512xf32> to vector<128x512xbf16>
    %cst_16 = arith.constant dense<0.000000e+00> : vector<50x512xf32>
    %32 = tpu.matmul %30, %31, %cst_16 {dimension_numbers = #tpu.dot_dimension_numbers<[1], [0], [0], [1], [0, 0, 1, 1], [], []>} : vector<50x128xbf16>, vector<128x512xbf16>, vector<50x512xf32> -> vector<50x512xf32>
    %c0_17 = arith.constant 0 : index
    %c0_18 = arith.constant 0 : index
    %33 = vector.load %arg5[%c0_17, %c0_18] : memref<50x1xf32, #tpu.memory_space<vmem>>, vector<50x1xf32>
    %34 = vector.broadcast %33 : vector<50x1xf32> to vector<50x512xf32>
    %35 = arith.addf %32, %34 : vector<50x512xf32>
    %cst_19 = arith.constant 0.000000e+00 : f32
    %36 = vector.broadcast %cst_19 : f32 to vector<50x512xf32>
    %37 = arith.cmpf oge, %35, %36 : vector<50x512xf32>
    %cst_20 = arith.constant 0.00999999977 : f32
    %38 = vector.broadcast %cst_20 : f32 to vector<50x512xf32>
    %39 = arith.mulf %38, %35 : vector<50x512xf32>
    %40 = arith.select %37, %35, %39 : vector<50x512xi1>, vector<50x512xf32>
    %41 = tpu.concatenate %40, %18 in 0 : vector<50x512xf32>, vector<39x512xf32> -> vector<89x512xf32>
    %c0_21 = arith.constant 0 : index
    %c0_22 = arith.constant 0 : index
    %42 = vector.load %arg6[%c0_21, %c0_22] : memref<128x89xbf16, #tpu.memory_space<vmem>>, vector<128x89xbf16>
    %43 = arith.truncf %41 : vector<89x512xf32> to vector<89x512xbf16>
    %cst_23 = arith.constant dense<0.000000e+00> : vector<128x512xf32>
    %44 = tpu.matmul %42, %43, %cst_23 {dimension_numbers = #tpu.dot_dimension_numbers<[1], [0], [0], [1], [0, 0, 1, 1], [], []>} : vector<128x89xbf16>, vector<89x512xbf16>, vector<128x512xf32> -> vector<128x512xf32>
    %c0_24 = arith.constant 0 : index
    %c0_25 = arith.constant 0 : index
    %45 = vector.load %arg7[%c0_24, %c0_25] : memref<128x1xf32, #tpu.memory_space<vmem>>, vector<128x1xf32>
    %46 = vector.broadcast %45 : vector<128x1xf32> to vector<128x512xf32>
    %47 = arith.addf %44, %46 : vector<128x512xf32>
    %cst_26 = arith.constant 0.000000e+00 : f32
    %48 = vector.broadcast %cst_26 : f32 to vector<128x512xf32>
    %49 = arith.cmpf oge, %47, %48 : vector<128x512xf32>
    %cst_27 = arith.constant 0.00999999977 : f32
    %50 = vector.broadcast %cst_27 : f32 to vector<128x512xf32>
    %51 = arith.mulf %50, %47 : vector<128x512xf32>
    %52 = arith.select %49, %47, %51 : vector<128x512xi1>, vector<128x512xf32>
    %c0_28 = arith.constant 0 : index
    %c0_29 = arith.constant 0 : index
    %53 = vector.load %arg8[%c0_28, %c0_29] : memref<128x128xbf16, #tpu.memory_space<vmem>>, vector<128x128xbf16>
    %54 = arith.truncf %52 : vector<128x512xf32> to vector<128x512xbf16>
    %cst_30 = arith.constant dense<0.000000e+00> : vector<128x512xf32>
    %55 = tpu.matmul %53, %54, %cst_30 {dimension_numbers = #tpu.dot_dimension_numbers<[1], [0], [0], [1], [0, 0, 1, 1], [], []>} : vector<128x128xbf16>, vector<128x512xbf16>, vector<128x512xf32> -> vector<128x512xf32>
    %c0_31 = arith.constant 0 : index
    %c0_32 = arith.constant 0 : index
    %56 = vector.load %arg9[%c0_31, %c0_32] : memref<128x1xf32, #tpu.memory_space<vmem>>, vector<128x1xf32>
    %57 = vector.broadcast %56 : vector<128x1xf32> to vector<128x512xf32>
    %58 = arith.addf %55, %57 : vector<128x512xf32>
    %cst_33 = arith.constant 0.000000e+00 : f32
    %59 = vector.broadcast %cst_33 : f32 to vector<128x512xf32>
    %60 = arith.cmpf oge, %58, %59 : vector<128x512xf32>
    %cst_34 = arith.constant 0.00999999977 : f32
    %61 = vector.broadcast %cst_34 : f32 to vector<128x512xf32>
    %62 = arith.mulf %61, %58 : vector<128x512xf32>
    %63 = arith.select %60, %58, %62 : vector<128x512xi1>, vector<128x512xf32>
    %c0_35 = arith.constant 0 : index
    %c0_36 = arith.constant 0 : index
    %64 = vector.load %arg10[%c0_35, %c0_36] : memref<2x128xbf16, #tpu.memory_space<vmem>>, vector<2x128xbf16>
    %65 = arith.truncf %63 : vector<128x512xf32> to vector<128x512xbf16>
    %cst_37 = arith.constant dense<0.000000e+00> : vector<2x512xf32>
    %66 = tpu.matmul %64, %65, %cst_37 {dimension_numbers = #tpu.dot_dimension_numbers<[1], [0], [0], [1], [0, 0, 1, 1], [], []>} : vector<2x128xbf16>, vector<128x512xbf16>, vector<2x512xf32> -> vector<2x512xf32>
    %c0_38 = arith.constant 0 : index
    %c0_39 = arith.constant 0 : index
    %67 = vector.load %arg11[%c0_38, %c0_39] : memref<2x1xf32, #tpu.memory_space<vmem>>, vector<2x1xf32>
    %68 = vector.broadcast %67 : vector<2x1xf32> to vector<2x512xf32>
    %69 = arith.addf %66, %68 : vector<2x512xf32>
    %cst_40 = arith.constant 5.000000e-01 : f32
    %70 = vector.broadcast %cst_40 : f32 to vector<2x512xf32>
    %71 = arith.mulf %70, %69 : vector<2x512xf32>
    %72 = math.tanh %71 : vector<2x512xf32>
    %cst_41 = arith.constant 1.000000e+00 : f32
    %73 = vector.broadcast %cst_41 : f32 to vector<2x512xf32>
    %74 = arith.addf %72, %73 : vector<2x512xf32>
    %cst_42 = arith.constant 5.000000e-01 : f32
    %75 = vector.broadcast %cst_42 : f32 to vector<2x512xf32>
    %76 = arith.mulf %75, %74 : vector<2x512xf32>
    %cst_43 = arith.constant 1.000000e+01 : f32
    %77 = vector.broadcast %cst_43 : f32 to vector<2x512xf32>
    %78 = arith.subf %69, %77 : vector<2x512xf32>
    %cst_44 = arith.constant 0.000000e+00 : f32
    %79 = vector.broadcast %cst_44 : f32 to vector<2x512xf32>
    %80 = arith.maximumf %78, %79 : vector<2x512xf32>
    %81 = math.absf %78 : vector<2x512xf32>
    %cst_45 = arith.constant 0.000000e+00 : f32
    %82 = vector.broadcast %cst_45 : f32 to vector<2x512xf32>
    %83 = arith.subf %82, %81 : vector<2x512xf32>
    %84 = math.exp %83 : vector<2x512xf32>
    %cst_46 = arith.constant 1.000000e+00 : f32
    %85 = vector.broadcast %cst_46 : f32 to vector<2x512xf32>
    %86 = arith.addf %85, %84 : vector<2x512xf32>
    %87 = math.log %86 : vector<2x512xf32>
    %88 = arith.addf %80, %87 : vector<2x512xf32>
    %89 = tpu.iota {dimensions = array<i32: 0>} : vector<2x512xi32>
    %c0_i32 = arith.constant 0 : i32
    %90 = vector.broadcast %c0_i32 : i32 to vector<2x512xi32>
    %91 = arith.cmpi eq, %89, %90 : vector<2x512xi32>
    %92 = arith.select %91, %76, %88 : vector<2x512xi1>, vector<2x512xf32>
    %c0_47 = arith.constant 0 : index
    %c0_48 = arith.constant 0 : index
    %93 = vector.load %arg12[%c0_47, %c0_48] : memref<2x512xf32, #tpu.memory_space<vmem>>, vector<2x512xf32>
    tpu.vector_store %arg12[%c0_47, %c0_48], %92 {strides = array<i32>} : memref<2x512xf32, #tpu.memory_space<vmem>>, vector<2x512xf32>,
    return
  }
  func.func @transform_0(%arg0: i32) -> (i32, i32) {
    %c0_i32 = arith.constant 0 : i32
    %c0_i32_0 = arith.constant 0 : i32
    return %c0_i32, %arg0 : i32, i32
  }
  func.func @transform_1(%arg0: i32) -> (i32, i32) {
    %c0_i32 = arith.constant 0 : i32
    %c0_i32_0 = arith.constant 0 : i32
    %c0_i32_1 = arith.constant 0 : i32
    return %c0_i32, %c0_i32_0 : i32, i32
  }
  func.func @transform_2(%arg0: i32) -> (i32, i32) {
    %c0_i32 = arith.constant 0 : i32
    %c0_i32_0 = arith.constant 0 : i32
    %c0_i32_1 = arith.constant 0 : i32
    return %c0_i32, %c0_i32_0 : i32, i32
  }
  func.func @transform_3(%arg0: i32) -> (i32, i32) {
    %c0_i32 = arith.constant 0 : i32
    %c0_i32_0 = arith.constant 0 : i32
    %c0_i32_1 = arith.constant 0 : i32
    return %c0_i32, %c0_i32_0 : i32, i32
  }
  func.func @transform_4(%arg0: i32) -> (i32, i32) {
    %c0_i32 = arith.constant 0 : i32
    %c0_i32_0 = arith.constant 0 : i32
    %c0_i32_1 = arith.constant 0 : i32
    return %c0_i32, %c0_i32_0 : i32, i32
  }
  func.func @transform_5(%arg0: i32) -> (i32, i32) {
    %c0_i32 = arith.constant 0 : i32
    %c0_i32_0 = arith.constant 0 : i32
    %c0_i32_1 = arith.constant 0 : i32
    return %c0_i32, %c0_i32_0 : i32, i32
  }
  func.func @transform_6(%arg0: i32) -> (i32, i32) {
    %c0_i32 = arith.constant 0 : i32
    %c0_i32_0 = arith.constant 0 : i32
    %c0_i32_1 = arith.constant 0 : i32
    return %c0_i32, %c0_i32_0 : i32, i32
  }
  func.func @transform_7(%arg0: i32) -> (i32, i32) {
    %c0_i32 = arith.constant 0 : i32
    %c0_i32_0 = arith.constant 0 : i32
    %c0_i32_1 = arith.constant 0 : i32
    return %c0_i32, %c0_i32_0 : i32, i32
  }
  func.func @transform_8(%arg0: i32) -> (i32, i32) {
    %c0_i32 = arith.constant 0 : i32
    %c0_i32_0 = arith.constant 0 : i32
    %c0_i32_1 = arith.constant 0 : i32
    return %c0_i32, %c0_i32_0 : i32, i32
  }
  func.func @transform_9(%arg0: i32) -> (i32, i32) {
    %c0_i32 = arith.constant 0 : i32
    %c0_i32_0 = arith.constant 0 : i32
    %c0_i32_1 = arith.constant 0 : i32
    return %c0_i32, %c0_i32_0 : i32, i32
  }
  func.func @transform_10(%arg0: i32) -> (i32, i32) {
    %c0_i32 = arith.constant 0 : i32
    %c0_i32_0 = arith.constant 0 : i32
    %c0_i32_1 = arith.constant 0 : i32
    return %c0_i32, %c0_i32_0 : i32, i32
  }
  func.func @transform_11(%arg0: i32) -> (i32, i32) {
    %c0_i32 = arith.constant 0 : i32
    %c0_i32_0 = arith.constant 0 : i32
    return %c0_i32, %arg0 : i32, i32
  }
}

</mosaic_0001>

<llo_original>
// kernel: bucket_model_forward.1
$region0: #{bucket_model_forward.1}
  #allocation0 [shape = 'u32[]', space=smem, size = 0x4, offset = 0x4, fixed_abs, tag = 'smem constant byte address 0x4 - core index']
  #allocation1 [shape = 'u32[144,128]{1,0:T(1,128)}', space=vmem, size = 0x12000, scoped, tag = 'internal scratch']
  %s0 = inlined_call_operand.vmem [shape: f32[3,2048], index: 0, kind: input, shape index: {}]
  %s1 = inlined_call_operand.vmem [shape: bf16[128,39], index: 1, kind: input, shape index: {}]
  %s2 = inlined_call_operand.vmem [shape: f32[128,1], index: 2, kind: input, shape index: {}]
  %s3 = inlined_call_operand.vmem [shape: bf16[50,128], index: 3, kind: input, shape index: {}]
  %s4 = inlined_call_operand.vmem [shape: f32[50,1], index: 4, kind: input, shape index: {}]
  %s5 = inlined_call_operand.vmem [shape: bf16[128,89], index: 5, kind: input, shape index: {}]
  %s6 = inlined_call_operand.vmem [shape: f32[128,1], index: 6, kind: input, shape index: {}]
  %s7 = inlined_call_operand.vmem [shape: bf16[128,128], index: 7, kind: input, shape index: {}]
  %s8 = inlined_call_operand.vmem [shape: f32[128,1], index: 8, kind: input, shape index: {}]
  %s9 = inlined_call_operand.vmem [shape: bf16[2,128], index: 9, kind: input, shape index: {}]
  %s10 = inlined_call_operand.vmem [shape: f32[2,1], index: 10, kind: input, shape index: {}]
  %s11 = inlined_call_operand.vmem [shape: f32[2,2048], index: 11, kind: output, shape index: {}]
  %s12 = sld [smem:[#allocation0]]
  $region77: #{bucket_model_forward.1} parent=0
    _
  %s14 = ssub.s32 1, %s12
  %s15 = scalar_select 0, %s14, %s12
  loop: start=0, step=1, limit=6
  $region2: #{bucket_model_forward.1} parent=0 // loop_pre_header
    _
  $region3: #{bucket_model_forward.1} parent=0 // loop_header
    %s17 = sphi 0, %s21
    %p18 = scmp.ge.s32.totalorder %s17, 6
    %s27 = sphi 0, %s29
    %s30 = sphi 0, %s27
    %s31 = sphi 0, %s30
    %s47 = sphi 0, %s31
    %s51 = sphi 0, %s51
    %s53 = sphi 0, %s51
    %s54 = sphi 0, %s53
    %s68 = sphi 0, %s54
    %s72 = sphi 0, %s72
    %s74 = sphi 0, %s72
    %s75 = sphi 0, %s74
    %s89 = sphi 0, %s75
    %s93 = sphi 0, %s93
    %s95 = sphi 0, %s93
    %s96 = sphi 0, %s95
    %s110 = sphi 0, %s96
    %s114 = sphi 0, %s114
    %s116 = sphi 0, %s114
    %s117 = sphi 0, %s116
    %s131 = sphi 0, %s117
    %s135 = sphi 0, %s135
    %s137 = sphi 0, %s135
    %s138 = sphi 0, %s137
    %s152 = sphi 0, %s138
    %s156 = sphi 0, %s156
    %s158 = sphi 0, %s156
    %s159 = sphi 0, %s158
    %s173 = sphi 0, %s159
    %s177 = sphi 0, %s177
    %s179 = sphi 0, %s177
    %s180 = sphi 0, %s179
    %s194 = sphi 0, %s180
    %s198 = sphi 0, %s198
    %s200 = sphi 0, %s198
    %s201 = sphi 0, %s200
    %s215 = sphi 0, %s201
    %s219 = sphi 0, %s219
    %s221 = sphi 0, %s219
    %s222 = sphi 0, %s221
    %s236 = sphi 0, %s222
    %s240 = sphi 0, %s240
    %s242 = sphi 0, %s240
    %s243 = sphi 0, %s242
    %s257 = sphi 0, %s243
    %s263 = sphi 0, %s265
    %s266 = sphi 0, %s263
    %s267 = sphi 0, %s266
    %s283 = sphi 0, %s267
  $region4: #{bucket_model_forward.1} parent=0 // loop_header_branch
    %20 = sbr.rel (%p18) target = $region8
  $region5: #{bucket_model_forward.1} parent=0 // loop_body
    %s22 = ssub.s32 %s17, 1
    %s23 = ssub.s32 %s17, 2
    %s24 = sadd.s32 %s17, 1
    %s25 = ssub.s32 %s17, %s24
    %p26 = scmp.eq.s32.totalorder %s25, 0
    %s28 = sadd.s32 %s27, 1
    %s29 = scalar_select %p26, %s27, %s28
    %p32 = pneg %p26
    %p33 = scmp.eq.s32.totalorder %s17, 3
    %p34 = por %p32, %p33
    %p35 = scmp.ne.s32.totalorder %s27, %s30
    %p36 = scmp.eq.s32.totalorder %s17, 0
    %p37 = por %p35, %p36
    %p38 = scmp.ne.s32.totalorder %s27, %s30
    %p39 = scmp.eq.s32.totalorder %s22, 3
    %p40 = por %p38, %p39
    %p41 = scmp.ne.s32.totalorder %s30, %s31
    %p42 = scmp.eq.s32.totalorder %s22, 0
    %p43 = por %p41, %p42
    %p44 = scmp.ne.s32.totalorder %s30, %s31
    %p45 = scmp.eq.s32.totalorder %s23, 3
    %p46 = por %p44, %p45
    %p48 = scmp.ne.s32.totalorder %s31, %s47
    %p49 = scmp.eq.s32.totalorder %s23, 0
    %p50 = por %p48, %p49
    %s52 = sadd.s32 %s51, 1
    %p55 = scmp.eq.s32.totalorder %s17, 3
    %p56 = scmp.ne.s32.totalorder %s51, %s53
    %p57 = scmp.eq.s32.totalorder %s17, 0
    %p58 = por %p56, %p57
    %p59 = scmp.ne.s32.totalorder %s51, %s53
    %p60 = scmp.eq.s32.totalorder %s22, 3
    %p61 = por %p59, %p60
    %p62 = scmp.ne.s32.totalorder %s53, %s54
    %p63 = scmp.eq.s32.totalorder %s22, 0
    %p64 = por %p62, %p63
    %p65 = scmp.ne.s32.totalorder %s53, %s54
    %p66 = scmp.eq.s32.totalorder %s23, 3
    %p67 = por %p65, %p66
    %p69 = scmp.ne.s32.totalorder %s54, %s68
    %p70 = scmp.eq.s32.totalorder %s23, 0
    %p71 = por %p69, %p70
    %s73 = sadd.s32 %s72, 1
    %p76 = scmp.eq.s32.totalorder %s17, 3
    %p77 = scmp.ne.s32.totalorder %s72, %s74
    %p78 = scmp.eq.s32.totalorder %s17, 0
    %p79 = por %p77, %p78
    %p80 = scmp.ne.s32.totalorder %s72, %s74
    %p81 = scmp.eq.s32.totalorder %s22, 3
    %p82 = por %p80, %p81
    %p83 = scmp.ne.s32.totalorder %s74, %s75
    %p84 = scmp.eq.s32.totalorder %s22, 0
    %p85 = por %p83, %p84
    %p86 = scmp.ne.s32.totalorder %s74, %s75
    %p87 = scmp.eq.s32.totalorder %s23, 3
    %p88 = por %p86, %p87
    %p90 = scmp.ne.s32.totalorder %s75, %s89
    %p91 = scmp.eq.s32.totalorder %s23, 0
    %p92 = por %p90, %p91
    %s94 = sadd.s32 %s93, 1
    %p97 = scmp.eq.s32.totalorder %s17, 3
    %p98 = scmp.ne.s32.totalorder %s93, %s95
    %p99 = scmp.eq.s32.totalorder %s17, 0
    %p100 = por %p98, %p99
    %p101 = scmp.ne.s32.totalorder %s93, %s95
    %p102 = scmp.eq.s32.totalorder %s22, 3
    %p103 = por %p101, %p102
    %p104 = scmp.ne.s32.totalorder %s95, %s96
    %p105 = scmp.eq.s32.totalorder %s22, 0
    %p106 = por %p104, %p105
    %p107 = scmp.ne.s32.totalorder %s95, %s96
    %p108 = scmp.eq.s32.totalorder %s23, 3
    %p109 = por %p107, %p108
    %p111 = scmp.ne.s32.totalorder %s96, %s110
    %p112 = scmp.eq.s32.totalorder %s23, 0
    %p113 = por %p111, %p112
    %s115 = sadd.s32 %s114, 1
    %p118 = scmp.eq.s32.totalorder %s17, 3
    %p119 = scmp.ne.s32.totalorder %s114, %s116
    %p120 = scmp.eq.s32.totalorder %s17, 0
    %p121 = por %p119, %p120
    %p122 = scmp.ne.s32.totalorder %s114, %s116
    %p123 = scmp.eq.s32.totalorder %s22, 3
    %p124 = por %p122, %p123
    %p125 = scmp.ne.s32.totalorder %s116, %s117
    %p126 = scmp.eq.s32.totalorder %s22, 0
    %p127 = por %p125, %p126
    %p128 = scmp.ne.s32.totalorder %s116, %s117
    %p129 = scmp.eq.s32.totalorder %s23, 3
    %p130 = por %p128, %p129
    %p132 = scmp.ne.s32.totalorder %s117, %s131
    %p133 = scmp.eq.s32.totalorder %s23, 0
    %p134 = por %p132, %p133
    %s136 = sadd.s32 %s135, 1
    %p139 = scmp.eq.s32.totalorder %s17, 3
    %p140 = scmp.ne.s32.totalorder %s135, %s137
    %p141 = scmp.eq.s32.totalorder %s17, 0
    %p142 = por %p140, %p141
    %p143 = scmp.ne.s32.totalorder %s135, %s137
    %p144 = scmp.eq.s32.totalorder %s22, 3
    %p145 = por %p143, %p144
    %p146 = scmp.ne.s32.totalorder %s137, %s138
    %p147 = scmp.eq.s32.totalorder %s22, 0
    %p148 = por %p146, %p147
    %p149 = scmp.ne.s32.totalorder %s137, %s138
    %p150 = scmp.eq.s32.totalorder %s23, 3
    %p151 = por %p149, %p150
    %p153 = scmp.ne.s32.totalorder %s138, %s152
    %p154 = scmp.eq.s32.totalorder %s23, 0
    %p155 = por %p153, %p154
    %s157 = sadd.s32 %s156, 1
    %p160 = scmp.eq.s32.totalorder %s17, 3
    %p161 = scmp.ne.s32.totalorder %s156, %s158
    %p162 = scmp.eq.s32.totalorder %s17, 0
    %p163 = por %p161, %p162
    %p164 = scmp.ne.s32.totalorder %s156, %s158
    %p165 = scmp.eq.s32.totalorder %s22, 3
    %p166 = por %p164, %p165
    %p167 = scmp.ne.s32.totalorder %s158, %s159
    %p168 = scmp.eq.s32.totalorder %s22, 0
    %p169 = por %p167, %p168
    %p170 = scmp.ne.s32.totalorder %s158, %s159
    %p171 = scmp.eq.s32.totalorder %s23, 3
    %p172 = por %p170, %p171
    %p174 = scmp.ne.s32.totalorder %s159, %s173
    %p175 = scmp.eq.s32.totalorder %s23, 0
    %p176 = por %p174, %p175
    %s178 = sadd.s32 %s177, 1
    %p181 = scmp.eq.s32.totalorder %s17, 3
    %p182 = scmp.ne.s32.totalorder %s177, %s179
    %p183 = scmp.eq.s32.totalorder %s17, 0
    %p184 = por %p182, %p183
    %p185 = scmp.ne.s32.totalorder %s177, %s179
    %p186 = scmp.eq.s32.totalorder %s22, 3
    %p187 = por %p185, %p186
    %p188 = scmp.ne.s32.totalorder %s179, %s180
    %p189 = scmp.eq.s32.totalorder %s22, 0
    %p190 = por %p188, %p189
    %p191 = scmp.ne.s32.totalorder %s179, %s180
    %p192 = scmp.eq.s32.totalorder %s23, 3
    %p193 = por %p191, %p192
    %p195 = scmp.ne.s32.totalorder %s180, %s194
    %p196 = scmp.eq.s32.totalorder %s23, 0
    %p197 = por %p195, %p196
    %s199 = sadd.s32 %s198, 1
    %p202 = scmp.eq.s32.totalorder %s17, 3
    %p203 = scmp.ne.s32.totalorder %s198, %s200
    %p204 = scmp.eq.s32.totalorder %s17, 0
    %p205 = por %p203, %p204
    %p206 = scmp.ne.s32.totalorder %s198, %s200
    %p207 = scmp.eq.s32.totalorder %s22, 3
    %p208 = por %p206, %p207
    %p209 = scmp.ne.s32.totalorder %s200, %s201
    %p210 = scmp.eq.s32.totalorder %s22, 0
    %p211 = por %p209, %p210
    %p212 = scmp.ne.s32.totalorder %s200, %s201
    %p213 = scmp.eq.s32.totalorder %s23, 3
    %p214 = por %p212, %p213
    %p216 = scmp.ne.s32.totalorder %s201, %s215
    %p217 = scmp.eq.s32.totalorder %s23, 0
    %p218 = por %p216, %p217
    %s220 = sadd.s32 %s219, 1
    %p223 = scmp.eq.s32.totalorder %s17, 3
    %p224 = scmp.ne.s32.totalorder %s219, %s221
    %p225 = scmp.eq.s32.totalorder %s17, 0
    %p226 = por %p224, %p225
    %p227 = scmp.ne.s32.totalorder %s219, %s221
    %p228 = scmp.eq.s32.totalorder %s22, 3
    %p229 = por %p227, %p228
    %p230 = scmp.ne.s32.totalorder %s221, %s222
    %p231 = scmp.eq.s32.totalorder %s22, 0
    %p232 = por %p230, %p231
    %p233 = scmp.ne.s32.totalorder %s221, %s222
    %p234 = scmp.eq.s32.totalorder %s23, 3
    %p235 = por %p233, %p234
    %p237 = scmp.ne.s32.totalorder %s222, %s236
    %p238 = scmp.eq.s32.totalorder %s23, 0
    %p239 = por %p237, %p238
    %s241 = sadd.s32 %s240, 1
    %p244 = scmp.eq.s32.totalorder %s17, 3
    %p245 = scmp.ne.s32.totalorder %s240, %s242
    %p246 = scmp.eq.s32.totalorder %s17, 0
    %p247 = por %p245, %p246
    %p248 = scmp.ne.s32.totalorder %s240, %s242
    %p249 = scmp.eq.s32.totalorder %s22, 3
    %p250 = por %p248, %p249
    %p251 = scmp.ne.s32.totalorder %s242, %s243
    %p252 = scmp.eq.s32.totalorder %s22, 0
    %p253 = por %p251, %p252
    %p254 = scmp.ne.s32.totalorder %s242, %s243
    %p255 = scmp.eq.s32.totalorder %s23, 3
    %p256 = por %p254, %p255
    %p258 = scmp.ne.s32.totalorder %s243, %s257
    %p259 = scmp.eq.s32.totalorder %s23, 0
    %p260 = por %p258, %p259
    %s261 = ssub.s32 %s17, %s24
    %p262 = scmp.eq.s32.totalorder %s261, 0
    %s264 = sadd.s32 %s263, 1
    %s265 = scalar_select %p262, %s263, %s264
    %p268 = pneg %p262
    %p269 = scmp.eq.s32.totalorder %s17, 3
    %p270 = por %p268, %p269
    %p271 = scmp.ne.s32.totalorder %s263, %s266
    %p272 = scmp.eq.s32.totalorder %s17, 0
    %p273 = por %p271, %p272
    %p274 = scmp.ne.s32.totalorder %s263, %s266
    %p275 = scmp.eq.s32.totalorder %s22, 3
    %p276 = por %p274, %p275
    %p277 = scmp.ne.s32.totalorder %s266, %s267
    %p278 = scmp.eq.s32.totalorder %s22, 0
    %p279 = por %p277, %p278
    %p280 = scmp.ne.s32.totalorder %s266, %s267
    %p281 = scmp.eq.s32.totalorder %s23, 3
    %p282 = por %p280, %p281
    %p284 = scmp.ne.s32.totalorder %s267, %s283
    %p285 = scmp.eq.s32.totalorder %s23, 0
    %p286 = por %p284, %p285
    %p287 = scmp.le.s32.totalorder 1, %s17
    %p288 = scmp.lt.s32.totalorder %s17, 5
    %p289 = pnand %p287, %p288
    %p290 = pneg %p289
    // Predicated region
    $region9: #{bucket_model_forward.1} parent=5 // pred_check
      _
    $region10: #{bucket_model_forward.1} parent=5 // pred_check_branch
      %292 = sbr.rel (%p289) target = $region12
    $region11: #{bucket_model_forward.1} parent=5 // pred_region
      %s293 = ssub.s32 %s17, 1
      // Predicated region
      $region13: #{bucket_model_forward.1} parent=11 // pred_check
        %p294 = pneg %p64
      $region14: #{bucket_model_forward.1} parent=11 // pred_check_branch
        %296 = sbr.rel (%p294) target = $region16
      $region15: #{bucket_model_forward.1} parent=11 // pred_region
        _
      $region16: #{bucket_model_forward.1} parent=11 // pred_fallthru
        _
      // Predicated region
      $region17: #{bucket_model_forward.1} parent=11 // pred_check
        %p297 = pneg %p85
      $region18: #{bucket_model_forward.1} parent=11 // pred_check_branch
        %299 = sbr.rel (%p297) target = $region20
      $region19: #{bucket_model_forward.1} parent=11 // pred_region
        _
      $region20: #{bucket_model_forward.1} parent=11 // pred_fallthru
        _
      // Predicated region
      $region21: #{bucket_model_forward.1} parent=11 // pred_check
        %p300 = pneg %p106
      $region22: #{bucket_model_forward.1} parent=11 // pred_check_branch
        %302 = sbr.rel (%p300) target = $region24
      $region23: #{bucket_model_forward.1} parent=11 // pred_region
        _
      $region24: #{bucket_model_forward.1} parent=11 // pred_fallthru
        _
      // Predicated region
      $region25: #{bucket_model_forward.1} parent=11 // pred_check
        %p303 = pneg %p127
      $region26: #{bucket_model_forward.1} parent=11 // pred_check_branch
        %305 = sbr.rel (%p303) target = $region28
      $region27: #{bucket_model_forward.1} parent=11 // pred_region
        _
      $region28: #{bucket_model_forward.1} parent=11 // pred_fallthru
        _
      // Predicated region
      $region29: #{bucket_model_forward.1} parent=11 // pred_check
        %p306 = pneg %p148
      $region30: #{bucket_model_forward.1} parent=11 // pred_check_branch
        %308 = sbr.rel (%p306) target = $region32
      $region31: #{bucket_model_forward.1} parent=11 // pred_region
        _
      $region32: #{bucket_model_forward.1} parent=11 // pred_fallthru
        _
      // Predicated region
      $region33: #{bucket_model_forward.1} parent=11 // pred_check
        %p309 = pneg %p169
      $region34: #{bucket_model_forward.1} parent=11 // pred_check_branch
        %311 = sbr.rel (%p309) target = $region36
      $region35: #{bucket_model_forward.1} parent=11 // pred_region
        _
      $region36: #{bucket_model_forward.1} parent=11 // pred_fallthru
        _
      // Predicated region
      $region37: #{bucket_model_forward.1} parent=11 // pred_check
        %p312 = pneg %p190
      $region38: #{bucket_model_forward.1} parent=11 // pred_check_branch
        %314 = sbr.rel (%p312) target = $region40
      $region39: #{bucket_model_forward.1} parent=11 // pred_region
        _
      $region40: #{bucket_model_forward.1} parent=11 // pred_fallthru
        _
      // Predicated region
      $region41: #{bucket_model_forward.1} parent=11 // pred_check
        %p315 = pneg %p211
      $region42: #{bucket_model_forward.1} parent=11 // pred_check_branch
        %317 = sbr.rel (%p315) target = $region44
      $region43: #{bucket_model_forward.1} parent=11 // pred_region
        _
      $region44: #{bucket_model_forward.1} parent=11 // pred_fallthru
        _
      // Predicated region
      $region45: #{bucket_model_forward.1} parent=11 // pred_check
        %p318 = pneg %p232
      $region46: #{bucket_model_forward.1} parent=11 // pred_check_branch
        %320 = sbr.rel (%p318) target = $region48
      $region47: #{bucket_model_forward.1} parent=11 // pred_region
        _
      $region48: #{bucket_model_forward.1} parent=11 // pred_fallthru
        _
      // Predicated region
      $region49: #{bucket_model_forward.1} parent=11 // pred_check
        %p321 = pneg %p253
      $region50: #{bucket_model_forward.1} parent=11 // pred_check_branch
        %323 = sbr.rel (%p321) target = $region52
      $region51: #{bucket_model_forward.1} parent=11 // pred_region
        _
      $region52: #{bucket_model_forward.1} parent=11 // pred_fallthru
        _
    $region12: #{bucket_model_forward.1} parent=5 // pred_fallthru
      _
    %p324 = scmp.lt.s32.totalorder %s17, 4
    // Predicated region
    $region53: #{bucket_model_forward.1} parent=5 // pred_check
      %p325 = pneg %p324
    $region54: #{bucket_model_forward.1} parent=5 // pred_check_branch
      %327 = sbr.rel (%p325) target = $region56
    $region55: #{bucket_model_forward.1} parent=5 // pred_region
      // Predicated region
      $region57: #{bucket_model_forward.1} parent=55 // pred_check
        %p328 = pneg %p37
      $region58: #{bucket_model_forward.1} parent=55 // pred_check_branch
        %330 = sbr.rel (%p328) target = $region60
      $region59: #{bucket_model_forward.1} parent=55 // pred_region
        %s331 = smul.u32 4, %s17
        %p332 = scmp.lt.s32.totalorder %s331, 15
        %s333 = scalar_select %p332, %s331, 15
        %s334 = smul.addr %s333, 4
        %s335 = scalar_lea.vmem %s0, %s334
        %s336 = smul.u32 4, %s17
      $region60: #{bucket_model_forward.1} parent=55 // pred_fallthru
        _
    $region56: #{bucket_model_forward.1} parent=5 // pred_fallthru
      _
    %p337 = scmp.le.s32.totalorder 1, %s17
    %p338 = scmp.lt.s32.totalorder %s17, 5
    %p339 = pnand %p337, %p338
    %p340 = pneg %p339
    // Predicated region
    $region61: #{bucket_model_forward.1} parent=5 // pred_check
      _
    $region62: #{bucket_model_forward.1} parent=5 // pred_check_branch
      %342 = sbr.rel (%p339) target = $region64
    $region63: #{bucket_model_forward.1} parent=5 // pred_region
      %s343 = ssub.s32 %s17, 1
      %s344 = smul.u32 4, %s22
      %p345 = scmp.lt.s32.totalorder %s344, 15
      %s346 = scalar_select %p345, %s344, 15
      %s347 = smul.addr %s346, 4
      %s348 = scalar_lea.vmem %s0, %s347
      %p349 = pneg %p43
      %p350 = pneg %p40
      %p351 = pneg %p64
      %p352 = pneg %p61
      %p353 = pneg %p85
      %p354 = pneg %p82
      %p355 = pneg %p106
      %p356 = pneg %p103
      %p357 = pneg %p127
      %p358 = pneg %p124
      %p359 = pneg %p148
      %p360 = pneg %p145
      %p361 = pneg %p169
      %p362 = pneg %p166
      %p363 = pneg %p190
      %p364 = pneg %p187
      %p365 = pneg %p211
      %p366 = pneg %p208
      %p367 = pneg %p232
      %p368 = pneg %p229
      %p369 = pneg %p253
      %p370 = pneg %p250
      %p371 = pneg %p279
      %p372 = pneg %p276
      %s373 = smul.u32 4, %s22
      %p374 = scmp.lt.s32.totalorder %s373, 15
      %s375 = scalar_select %p374, %s373, 15
      %s376 = smul.addr %s375, 2
      %s377 = scalar_lea.vmem %s11, %s376
      %s378 = smul.u32 4, %s22
      %p379 = scmp.lt.s32.totalorder %s378, 15
      %s380 = scalar_select %p379, %s378, 15
      %s381 = smul.addr %s380, 4
      %s382 = scalar_lea.vmem %s0, %s381
      %s383 = smul.u32 4, %s22
      %s384 = smul.u32 4, %s22
      %p385 = scmp.lt.s32.totalorder %s384, 15
      %s386 = scalar_select %p385, %s384, 15
      %s387 = smul.addr %s386, 2
      %s388 = scalar_lea.vmem %s11, %s387
      %s389 = smul.u32 4, %s22
      %v391 = vld [vmem:[%s382] sm:$0x77]
      %v392 = vld [vmem:[%s382 + $0x8] sm:$0x77]
      %v393 = vmul.f32 %v391, 2.0
      %v394 = vmul.f32 %v392, 2.0
      %v395 = vmul.f32 %v391, 4.0
      %v396 = vmul.f32 %v392, 4.0
      %v397 = vmul.f32 %v391, 8.0
      %v398 = vmul.f32 %v392, 8.0
      %v399 = vmul.f32 %v391, 16.0
      %v400 = vmul.f32 %v392, 16.0
      %v401 = vmul.f32 %v391, 32.0
      %v402 = vmul.f32 %v392, 32.0
      %v405 = vcombine.high %v391, %v391
      %v406 = vcombine.high %v392, %v392
      %v411 = vcombine.high %v393, %v393
      %v412 = vcombine.high %v394, %v394
      %v413 = vrot.slane %v393, 5
      %v414 = vrot.slane %v411, 5
      %v415 = vrot.slane %v394, 5
      %v416 = vrot.slane %v412, 5
      %v423 = vcombine.high %v395, %v395
      %v424 = vcombine.high %v396, %v396
      %v425 = vrot.slane %v395, 2
      %v426 = vrot.slane %v423, 2
      %v427 = vrot.slane %v396, 2
      %v428 = vrot.slane %v424, 2
      %v435 = vcombine.high %v397, %v397
      %v436 = vcombine.high %v398, %v398
      %v437 = vrot.slane %v397, 7
      %v438 = vrot.slane %v435, 7
      %v439 = vrot.slane %v398, 7
      %v440 = vrot.slane %v436, 7
      %v447 = vcombine.low %v399, %v399
      %v448 = vcombine.low %v400, %v400
      %v453 = vcombine.high %v401, %v401
      %v454 = vcombine.high %v402, %v402
      %v455 = vrot.slane %v401, 1
      %v456 = vrot.slane %v453, 1
      %v457 = vrot.slane %v402, 1
      %v458 = vrot.slane %v454, 1
      %vm463 = vcmask 1042432
      %v464 = vsel %vm463, %v391, %v413
      %v465 = vsel %vm463, %v405, %v414
      %v466 = vsel %vm463, %v392, %v415
      %v467 = vsel %vm463, %v406, %v416
      %vm468 = vcmask 1045504
      %v469 = vsel %vm468, %v464, %v425
      %v470 = vsel %vm468, %v465, %v426
      %v471 = vsel %vm468, %v466, %v427
      %v472 = vsel %vm468, %v467, %v428
      %vm473 = vcmask 1040384
      %v474 = vsel %vm473, %v425, %v437
      %v475 = vsel %vm473, %v426, %v438
      %v476 = vsel %vm473, %v427, %v439
      %v477 = vsel %vm473, %v428, %v440
      %vm478 = vcmask 1043456
      %v479 = vsel %vm478, %v474, %v447
      %v480 = vsel %vm478, %v475, %v399
      %v481 = vsel %vm478, %v476, %v448
      %v482 = vsel %vm478, %v477, %v400
      %vm483 = vcmask 1046528
      %v484 = vsel %vm483, %v479, %v455
      %v485 = vsel %vm483, %v480, %v456
      %v486 = vsel %vm483, %v481, %v457
      %v487 = vsel %vm483, %v482, %v458
      %v488 = vand.u32 2147483647, %v469
      %vm489 = vcmp.le.f32.partialorder %v488, 0.7853982
      %vm490 = vcmp.lt.s32.totalorder %v469, 0
      %v491 = vand.u32 %v469, 2139095040
      %v492 = vshrl.u32 %v491, 23
      %v493 = vsub.s32 %v492, 127
      %v494 = vand.u32 2147483647, %v469
      %v495 = vand.u32 %v494, 8388607
      %v496 = vor.u32 %v495, 8388608
      %v497 = vsub.s32 0, %v496
      %v498 = vadd.s32 %v493, 1
      %vm499 = vcmp.gt.s32.totalorder %v498, 0
      %v500 = vsel %vm499, %v498, 0
      %v501 = vshrl.u32 %v500, 5
      %v502 = vand.u32 %v500, 31
      %v503 = vsub.s32 32, %v502
      %v504 = vshrl.u32 683565275, %v503
      %v505 = vshll.u32 683565275, %v502
      %v506 = vshrl.u32 2475754826, %v503
      %v507 = vor.u32 %v505, %v506
      %v508 = vshll.u32 2475754826, %v502
      %v509 = vshrl.u32 2131351028, %v503
      %v510 = vor.u32 %v508, %v509
      %v511 = vshll.u32 2131351028, %v502
      %v512 = vshrl.u32 2102212464, %v503
      %v513 = vor.u32 %v511, %v512
      %v514 = vshll.u32 2102212464, %v502
      %v515 = vshrl.u32 920167782, %v503
      %v516 = vor.u32 %v514, %v515
      %v517 = vshll.u32 920167782, %v502
      %v518 = vshrl.u32 1326507024, %v503
      %v519 = vor.u32 %v517, %v518
      %vm520 = vcmp.lt.s32.totalorder %v501, 1
      %vm521 = vcmp.lt.s32.totalorder %v501, 2
      %vm522 = vcmp.lt.s32.totalorder %v501, 3
      %vm523 = vcmp.lt.s32.totalorder %v501, 4
      %v524 = vsel %vm520, %v504, %v507
      %v525 = vsel %vm523, %v513, 2102212464
      %v526 = vsel %vm522, %v510, %v525
      %v527 = vsel %vm521, %v524, %v526
      %v528 = vsel %vm520, %v507, %v510
      %v529 = vsel %vm523, %v516, 920167782
      %v530 = vsel %vm522, %v513, %v529
      %v531 = vsel %vm521, %v528, %v530
      %v532 = vsel %vm520, %v510, %v513
      %v533 = vsel %vm523, %v519, 1326507024
      %v534 = vsel %vm522, %v516, %v533
      %v535 = vsel %vm521, %v532, %v534
      %v536 = vshll.u32 %v496, 8
      %v537 = vmul.u32.u64.compose %v536, %v535
      %v538 = vextract.low.u32 %v537
      %v539 = vextract.high.u32 %v537
      %v540 = vmul.u32.u64.compose %v536, %v531
      %v541 = vextract.low.u32 %v540
      %v542 = vextract.high.u32 %v540
      %v543 = vmul.u32 %v536, %v527
      %v544 = vadd.s32 %v539, %v541
      %vm545 = vc.u32 %v539, %v541
      %v546 = vadd.s32 %v542, 1
      %v547 = vsel %vm545, %v546, %v542
      %v548 = vadd.s32 %v543, %v547
      %v549 = vadd.s32 %v548, 536870912
      %v550 = vshrl.u32 %v549, 30
      %v551 = vshll.u32 %v550, 30
      %v552 = vsub.s32 %v548, %v551
      %vm553 = vcmp.lt.s32.totalorder %v552, 0
      %v554 = vsub.s32 0, %v552
      %v555 = vsel %vm553, %v554, %v552
      %v556 = vclz %v555
      %v557 = vsub.s32 %v556, 2
      %vm558 = vcmp.gt.s32.totalorder 0, %v557
      %v559 = vsel %vm558, 0, %v557
      %v560 = vsub.s32 32, %v559
      %v561 = vshll.u32 %v552, %v559
      %v562 = vshrl.u32 %v544, %v560
      %v563 = vor.u32 %v561, %v562
      %v564 = vsub.s32 4294967266, %v559
      %v565 = vadd.s32 %v564, 127
      %v566 = vshll.u32 %v565, 23
      %v567 = vor.u32 4788187, %v566
      %v568 = vand.u32 2147483647, %v567
      %v570 = vcvt.s32.f32 %v563
      %v571 = vmul.f32 %v570, %v568
      %v572 = vxor.u32 %v571, 2147483648
      %v573 = vsel %vm490, %v572, %v571
      %v574 = vsub.s32 4, %v550
      %v575 = vsel %vm490, %v574, %v550
      %v576 = vsel %vm489, %v469, %v573
      %v577 = vsel %vm489, 0, %v575
      %v578 = vcosq.f32.pop %v576
      %v579 = vsinq.f32.pop %v576
      %vm580 = vweird.f32 %v469
      %v581 = vadd.s32 %v577, 3
      %v582 = vand.u32 %v581, 3
      %vm583 = vcmp.lt.s32.totalorder %v582, 2
      %vm584 = vcmp.eq.s32.totalorder %v582, 0
      %v585 = vxor.u32 %v579, 2147483648
      %v586 = vsel %vm584, %v578, %v585
      %vm587 = vcmp.eq.s32.totalorder %v582, 2
      %v588 = vxor.u32 %v578, 2147483648
      %v589 = vsel %vm587, %v588, %v579
      %v590 = vsel %vm583, %v586, %v589
      %v591 = vsel %vm580, nan, %v590
      %v592 = vand.u32 2147483647, %v470
      %vm593 = vcmp.le.f32.partialorder %v592, 0.7853982
      %vm594 = vcmp.lt.s32.totalorder %v470, 0
      %v595 = vand.u32 %v470, 2139095040
      %v596 = vshrl.u32 %v595, 23
      %v597 = vsub.s32 %v596, 127
      %v598 = vand.u32 2147483647, %v470
      %v599 = vand.u32 %v598, 8388607
      %v600 = vor.u32 %v599, 8388608
      %v601 = vsub.s32 0, %v600
      %v602 = vadd.s32 %v597, 1
      %vm603 = vcmp.gt.s32.totalorder %v602, 0
      %v604 = vsel %vm603, %v602, 0
      %v605 = vshrl.u32 %v604, 5
      %v606 = vand.u32 %v604, 31
      %v607 = vsub.s32 32, %v606
      %v608 = vshrl.u32 683565275, %v607
      %v609 = vshll.u32 683565275, %v606
      %v610 = vshrl.u32 2475754826, %v607
      %v611 = vor.u32 %v609, %v610
      %v612 = vshll.u32 2475754826, %v606
      %v613 = vshrl.u32 2131351028, %v607
      %v614 = vor.u32 %v612, %v613
      %v615 = vshll.u32 2131351028, %v606
      %v616 = vshrl.u32 2102212464, %v607
      %v617 = vor.u32 %v615, %v616
      %v618 = vshll.u32 2102212464, %v606
      %v619 = vshrl.u32 920167782, %v607
      %v620 = vor.u32 %v618, %v619
      %v621 = vshll.u32 920167782, %v606
      %v622 = vshrl.u32 1326507024, %v607
      %v623 = vor.u32 %v621, %v622
      %vm624 = vcmp.lt.s32.totalorder %v605, 1
      %vm625 = vcmp.lt.s32.totalorder %v605, 2
      %vm626 = vcmp.lt.s32.totalorder %v605, 3
      %vm627 = vcmp.lt.s32.totalorder %v605, 4
      %v628 = vsel %vm624, %v608, %v611
      %v629 = vsel %vm627, %v617, 2102212464
      %v630 = vsel %vm626, %v614, %v629
      %v631 = vsel %vm625, %v628, %v630
      %v632 = vsel %vm624, %v611, %v614
      %v633 = vsel %vm627, %v620, 920167782
      %v634 = vsel %vm626, %v617, %v633
      %v635 = vsel %vm625, %v632, %v634
      %v636 = vsel %vm624, %v614, %v617
      %v637 = vsel %vm627, %v623, 1326507024
      %v638 = vsel %vm626, %v620, %v637
      %v639 = vsel %vm625, %v636, %v638
      %v640 = vshll.u32 %v600, 8
      %v641 = vmul.u32.u64.compose %v640, %v639
      %v642 = vextract.low.u32 %v641
      %v643 = vextract.high.u32 %v641
      %v644 = vmul.u32.u64.compose %v640, %v635
      %v645 = vextract.low.u32 %v644
      %v646 = vextract.high.u32 %v644
      %v647 = vmul.u32 %v640, %v631
      %v648 = vadd.s32 %v643, %v645
      %vm649 = vc.u32 %v643, %v645
      %v650 = vadd.s32 %v646, 1
      %v651 = vsel %vm649, %v650, %v646
      %v652 = vadd.s32 %v647, %v651
      %v653 = vadd.s32 %v652, 536870912
      %v654 = vshrl.u32 %v653, 30
      %v655 = vshll.u32 %v654, 30
      %v656 = vsub.s32 %v652, %v655
      %vm657 = vcmp.lt.s32.totalorder %v656, 0
      %v658 = vsub.s32 0, %v656
      %v659 = vsel %vm657, %v658, %v656
      %v660 = vclz %v659
      %v661 = vsub.s32 %v660, 2
      %vm662 = vcmp.gt.s32.totalorder 0, %v661
      %v663 = vsel %vm662, 0, %v661
      %v664 = vsub.s32 32, %v663
      %v665 = vshll.u32 %v656, %v663
      %v666 = vshrl.u32 %v648, %v664
      %v667 = vor.u32 %v665, %v666
      %v668 = vsub.s32 4294967266, %v663
      %v669 = vadd.s32 %v668, 127
      %v670 = vshll.u32 %v669, 23
      %v671 = vor.u32 4788187, %v670
      %v672 = vand.u32 2147483647, %v671
      %v674 = vcvt.s32.f32 %v667
      %v675 = vmul.f32 %v674, %v672
      %v676 = vxor.u32 %v675, 2147483648
      %v677 = vsel %vm594, %v676, %v675
      %v678 = vsub.s32 4, %v654
      %v679 = vsel %vm594, %v678, %v654
      %v680 = vsel %vm593, %v470, %v677
      %v681 = vsel %vm593, 0, %v679
      %v682 = vcosq.f32.pop %v680
      %v683 = vsinq.f32.pop %v680
      %vm684 = vweird.f32 %v470
      %v685 = vadd.s32 %v681, 3
      %v686 = vand.u32 %v685, 3
      %vm687 = vcmp.lt.s32.totalorder %v686, 2
      %vm688 = vcmp.eq.s32.totalorder %v686, 0
      %v689 = vxor.u32 %v683, 2147483648
      %v690 = vsel %vm688, %v682, %v689
      %vm691 = vcmp.eq.s32.totalorder %v686, 2
      %v692 = vxor.u32 %v682, 2147483648
      %v693 = vsel %vm691, %v692, %v683
      %v694 = vsel %vm687, %v690, %v693
      %v695 = vsel %vm684, nan, %v694
      %v696 = vand.u32 2147483647, %v471
      %vm697 = vcmp.le.f32.partialorder %v696, 0.7853982
      %vm698 = vcmp.lt.s32.totalorder %v471, 0
      %v699 = vand.u32 %v471, 2139095040
      %v700 = vshrl.u32 %v699, 23
      %v701 = vsub.s32 %v700, 127
      %v702 = vand.u32 2147483647, %v471
      %v703 = vand.u32 %v702, 8388607
      %v704 = vor.u32 %v703, 8388608
      %v705 = vsub.s32 0, %v704
      %v706 = vadd.s32 %v701, 1
      %vm707 = vcmp.gt.s32.totalorder %v706, 0
      %v708 = vsel %vm707, %v706, 0
      %v709 = vshrl.u32 %v708, 5
      %v710 = vand.u32 %v708, 31
      %v711 = vsub.s32 32, %v710
      %v712 = vshrl.u32 683565275, %v711
      %v713 = vshll.u32 683565275, %v710
      %v714 = vshrl.u32 2475754826, %v711
      %v715 = vor.u32 %v713, %v714
      %v716 = vshll.u32 2475754826, %v710
      %v717 = vshrl.u32 2131351028, %v711
      %v718 = vor.u32 %v716, %v717
      %v719 = vshll.u32 2131351028, %v710
      %v720 = vshrl.u32 2102212464, %v711
      %v721 = vor.u32 %v719, %v720
      %v722 = vshll.u32 2102212464, %v710
      %v723 = vshrl.u32 920167782, %v711
      %v724 = vor.u32 %v722, %v723
      %v725 = vshll.u32 920167782, %v710
      %v726 = vshrl.u32 1326507024, %v711
      %v727 = vor.u32 %v725, %v726
      %vm728 = vcmp.lt.s32.totalorder %v709, 1
      %vm729 = vcmp.lt.s32.totalorder %v709, 2
      %vm730 = vcmp.lt.s32.totalorder %v709, 3
      %vm731 = vcmp.lt.s32.totalorder %v709, 4
      %v732 = vsel %vm728, %v712, %v715
      %v733 = vsel %vm731, %v721, 2102212464
      %v734 = vsel %vm730, %v718, %v733
      %v735 = vsel %vm729, %v732, %v734
      %v736 = vsel %vm728, %v715, %v718
      %v737 = vsel %vm731, %v724, 920167782
      %v738 = vsel %vm730, %v721, %v737
      %v739 = vsel %vm729, %v736, %v738
      %v740 = vsel %vm728, %v718, %v721
      %v741 = vsel %vm731, %v727, 1326507024
      %v742 = vsel %vm730, %v724, %v741
      %v743 = vsel %vm729, %v740, %v742
      %v744 = vshll.u32 %v704, 8
      %v745 = vmul.u32.u64.compose %v744, %v743
      %v746 = vextract.low.u32 %v745
      %v747 = vextract.high.u32 %v745
      %v748 = vmul.u32.u64.compose %v744, %v739
      %v749 = vextract.low.u32 %v748
      %v750 = vextract.high.u32 %v748
      %v751 = vmul.u32 %v744, %v735
      %v752 = vadd.s32 %v747, %v749
      %vm753 = vc.u32 %v747, %v749
      %v754 = vadd.s32 %v750, 1
      %v755 = vsel %vm753, %v754, %v750
      %v756 = vadd.s32 %v751, %v755
      %v757 = vadd.s32 %v756, 536870912
      %v758 = vshrl.u32 %v757, 30
      %v759 = vshll.u32 %v758, 30
      %v760 = vsub.s32 %v756, %v759
      %vm761 = vcmp.lt.s32.totalorder %v760, 0
      %v762 = vsub.s32 0, %v760
      %v763 = vsel %vm761, %v762, %v760
      %v764 = vclz %v763
      %v765 = vsub.s32 %v764, 2
      %vm766 = vcmp.gt.s32.totalorder 0, %v765
      %v767 = vsel %vm766, 0, %v765
      %v768 = vsub.s32 32, %v767
      %v769 = vshll.u32 %v760, %v767
      %v770 = vshrl.u32 %v752, %v768
      %v771 = vor.u32 %v769, %v770
      %v772 = vsub.s32 4294967266, %v767
      %v773 = vadd.s32 %v772, 127
      %v774 = vshll.u32 %v773, 23
      %v775 = vor.u32 4788187, %v774
      %v776 = vand.u32 2147483647, %v775
      %v778 = vcvt.s32.f32 %v771
      %v779 = vmul.f32 %v778, %v776
      %v780 = vxor.u32 %v779, 2147483648
      %v781 = vsel %vm698, %v780, %v779
      %v782 = vsub.s32 4, %v758
      %v783 = vsel %vm698, %v782, %v758
      %v784 = vsel %vm697, %v471, %v781
      %v785 = vsel %vm697, 0, %v783
      %v786 = vcosq.f32.pop %v784
      %v787 = vsinq.f32.pop %v784
      %vm788 = vweird.f32 %v471
      %v789 = vadd.s32 %v785, 3
      %v790 = vand.u32 %v789, 3
      %vm791 = vcmp.lt.s32.totalorder %v790, 2
      %vm792 = vcmp.eq.s32.totalorder %v790, 0
      %v793 = vxor.u32 %v787, 2147483648
      %v794 = vsel %vm792, %v786, %v793
      %vm795 = vcmp.eq.s32.totalorder %v790, 2
      %v796 = vxor.u32 %v786, 2147483648
      %v797 = vsel %vm795, %v796, %v787
      %v798 = vsel %vm791, %v794, %v797
      %v799 = vsel %vm788, nan, %v798
      %v800 = vand.u32 2147483647, %v472
      %vm801 = vcmp.le.f32.partialorder %v800, 0.7853982
      %vm802 = vcmp.lt.s32.totalorder %v472, 0
      %v803 = vand.u32 %v472, 2139095040
      %v804 = vshrl.u32 %v803, 23
      %v805 = vsub.s32 %v804, 127
      %v806 = vand.u32 2147483647, %v472
      %v807 = vand.u32 %v806, 8388607
      %v808 = vor.u32 %v807, 8388608
      %v809 = vsub.s32 0, %v808
      %v810 = vadd.s32 %v805, 1
      %vm811 = vcmp.gt.s32.totalorder %v810, 0
      %v812 = vsel %vm811, %v810, 0
      %v813 = vshrl.u32 %v812, 5
      %v814 = vand.u32 %v812, 31
      %v815 = vsub.s32 32, %v814
      %v816 = vshrl.u32 683565275, %v815
      %v817 = vshll.u32 683565275, %v814
      %v818 = vshrl.u32 2475754826, %v815
      %v819 = vor.u32 %v817, %v818
      %v820 = vshll.u32 2475754826, %v814
      %v821 = vshrl.u32 2131351028, %v815
      %v822 = vor.u32 %v820, %v821
      %v823 = vshll.u32 2131351028, %v814
      %v824 = vshrl.u32 2102212464, %v815
      %v825 = vor.u32 %v823, %v824
      %v826 = vshll.u32 2102212464, %v814
      %v827 = vshrl.u32 920167782, %v815
      %v828 = vor.u32 %v826, %v827
      %v829 = vshll.u32 920167782, %v814
      %v830 = vshrl.u32 1326507024, %v815
      %v831 = vor.u32 %v829, %v830
      %vm832 = vcmp.lt.s32.totalorder %v813, 1
      %vm833 = vcmp.lt.s32.totalorder %v813, 2
      %vm834 = vcmp.lt.s32.totalorder %v813, 3
      %vm835 = vcmp.lt.s32.totalorder %v813, 4
      %v836 = vsel %vm832, %v816, %v819
      %v837 = vsel %vm835, %v825, 2102212464
      %v838 = vsel %vm834, %v822, %v837
      %v839 = vsel %vm833, %v836, %v838
      %v840 = vsel %vm832, %v819, %v822
      %v841 = vsel %vm835, %v828, 920167782
      %v842 = vsel %vm834, %v825, %v841
      %v843 = vsel %vm833, %v840, %v842
      %v844 = vsel %vm832, %v822, %v825
      %v845 = vsel %vm835, %v831, 1326507024
      %v846 = vsel %vm834, %v828, %v845
      %v847 = vsel %vm833, %v844, %v846
      %v848 = vshll.u32 %v808, 8
      %v849 = vmul.u32.u64.compose %v848, %v847
      %v850 = vextract.low.u32 %v849
      %v851 = vextract.high.u32 %v849
      %v852 = vmul.u32.u64.compose %v848, %v843
      %v853 = vextract.low.u32 %v852
      %v854 = vextract.high.u32 %v852
      %v855 = vmul.u32 %v848, %v839
      %v856 = vadd.s32 %v851, %v853
      %vm857 = vc.u32 %v851, %v853
      %v858 = vadd.s32 %v854, 1
      %v859 = vsel %vm857, %v858, %v854
      %v860 = vadd.s32 %v855, %v859
      %v861 = vadd.s32 %v860, 536870912
      %v862 = vshrl.u32 %v861, 30
      %v863 = vshll.u32 %v862, 30
      %v864 = vsub.s32 %v860, %v863
      %vm865 = vcmp.lt.s32.totalorder %v864, 0
      %v866 = vsub.s32 0, %v864
      %v867 = vsel %vm865, %v866, %v864
      %v868 = vclz %v867
      %v869 = vsub.s32 %v868, 2
      %vm870 = vcmp.gt.s32.totalorder 0, %v869
      %v871 = vsel %vm870, 0, %v869
      %v872 = vsub.s32 32, %v871
      %v873 = vshll.u32 %v864, %v871
      %v874 = vshrl.u32 %v856, %v872
      %v875 = vor.u32 %v873, %v874
      %v876 = vsub.s32 4294967266, %v871
      %v877 = vadd.s32 %v876, 127
      %v878 = vshll.u32 %v877, 23
      %v879 = vor.u32 4788187, %v878
      %v880 = vand.u32 2147483647, %v879
      %v882 = vcvt.s32.f32 %v875
      %v883 = vmul.f32 %v882, %v880
      %v884 = vxor.u32 %v883, 2147483648
      %v885 = vsel %vm802, %v884, %v883
      %v886 = vsub.s32 4, %v862
      %v887 = vsel %vm802, %v886, %v862
      %v888 = vsel %vm801, %v472, %v885
      %v889 = vsel %vm801, 0, %v887
      %v890 = vcosq.f32.pop %v888
      %v891 = vsinq.f32.pop %v888
      %vm892 = vweird.f32 %v472
      %v893 = vadd.s32 %v889, 3
      %v894 = vand.u32 %v893, 3
      %vm895 = vcmp.lt.s32.totalorder %v894, 2
      %vm896 = vcmp.eq.s32.totalorder %v894, 0
      %v897 = vxor.u32 %v891, 2147483648
      %v898 = vsel %vm896, %v890, %v897
      %vm899 = vcmp.eq.s32.totalorder %v894, 2
      %v900 = vxor.u32 %v890, 2147483648
      %v901 = vsel %vm899, %v900, %v891
      %v902 = vsel %vm895, %v898, %v901
      %v903 = vsel %vm892, nan, %v902
      %v904 = vand.u32 2147483647, %v484
      %vm905 = vcmp.le.f32.partialorder %v904, 0.7853982
      %vm906 = vcmp.lt.s32.totalorder %v484, 0
      %v907 = vand.u32 %v484, 2139095040
      %v908 = vshrl.u32 %v907, 23
      %v909 = vsub.s32 %v908, 127
      %v910 = vand.u32 2147483647, %v484
      %v911 = vand.u32 %v910, 8388607
      %v912 = vor.u32 %v911, 8388608
      %v913 = vsub.s32 0, %v912
      %v914 = vadd.s32 %v909, 1
      %vm915 = vcmp.gt.s32.totalorder %v914, 0
      %v916 = vsel %vm915, %v914, 0
      %v917 = vshrl.u32 %v916, 5
      %v918 = vand.u32 %v916, 31
      %v919 = vsub.s32 32, %v918
      %v920 = vshrl.u32 683565275, %v919
      %v921 = vshll.u32 683565275, %v918
      %v922 = vshrl.u32 2475754826, %v919
      %v923 = vor.u32 %v921, %v922
      %v924 = vshll.u32 2475754826, %v918
      %v925 = vshrl.u32 2131351028, %v919
      %v926 = vor.u32 %v924, %v925
      %v927 = vshll.u32 2131351028, %v918
      %v928 = vshrl.u32 2102212464, %v919
      %v929 = vor.u32 %v927, %v928
      %v930 = vshll.u32 2102212464, %v918
      %v931 = vshrl.u32 920167782, %v919
      %v932 = vor.u32 %v930, %v931
      %v933 = vshll.u32 920167782, %v918
      %v934 = vshrl.u32 1326507024, %v919
      %v935 = vor.u32 %v933, %v934
      %vm936 = vcmp.lt.s32.totalorder %v917, 1
      %vm937 = vcmp.lt.s32.totalorder %v917, 2
      %vm938 = vcmp.lt.s32.totalorder %v917, 3
      %vm939 = vcmp.lt.s32.totalorder %v917, 4
      %v940 = vsel %vm936, %v920, %v923
      %v941 = vsel %vm939, %v929, 2102212464
      %v942 = vsel %vm938, %v926, %v941
      %v943 = vsel %vm937, %v940, %v942
      %v944 = vsel %vm936, %v923, %v926
      %v945 = vsel %vm939, %v932, 920167782
      %v946 = vsel %vm938, %v929, %v945
      %v947 = vsel %vm937, %v944, %v946
      %v948 = vsel %vm936, %v926, %v929
      %v949 = vsel %vm939, %v935, 1326507024
      %v950 = vsel %vm938, %v932, %v949
      %v951 = vsel %vm937, %v948, %v950
      %v952 = vshll.u32 %v912, 8
      %v953 = vmul.u32.u64.compose %v952, %v951
      %v954 = vextract.low.u32 %v953
      %v955 = vextract.high.u32 %v953
      %v956 = vmul.u32.u64.compose %v952, %v947
      %v957 = vextract.low.u32 %v956
      %v958 = vextract.high.u32 %v956
      %v959 = vmul.u32 %v952, %v943
      %v960 = vadd.s32 %v955, %v957
      %vm961 = vc.u32 %v955, %v957
      %v962 = vadd.s32 %v958, 1
      %v963 = vsel %vm961, %v962, %v958
      %v964 = vadd.s32 %v959, %v963
      %v965 = vadd.s32 %v964, 536870912
      %v966 = vshrl.u32 %v965, 30
      %v967 = vshll.u32 %v966, 30
      %v968 = vsub.s32 %v964, %v967
      %vm969 = vcmp.lt.s32.totalorder %v968, 0
      %v970 = vsub.s32 0, %v968
      %v971 = vsel %vm969, %v970, %v968
      %v972 = vclz %v971
      %v973 = vsub.s32 %v972, 2
      %vm974 = vcmp.gt.s32.totalorder 0, %v973
      %v975 = vsel %vm974, 0, %v973
      %v976 = vsub.s32 32, %v975
      %v977 = vshll.u32 %v968, %v975
      %v978 = vshrl.u32 %v960, %v976
      %v979 = vor.u32 %v977, %v978
      %v980 = vsub.s32 4294967266, %v975
      %v981 = vadd.s32 %v980, 127
      %v982 = vshll.u32 %v981, 23
      %v983 = vor.u32 4788187, %v982
      %v984 = vand.u32 2147483647, %v983
      %v986 = vcvt.s32.f32 %v979
      %v987 = vmul.f32 %v986, %v984
      %v988 = vxor.u32 %v987, 2147483648
      %v989 = vsel %vm906, %v988, %v987
      %v990 = vsub.s32 4, %v966
      %v991 = vsel %vm906, %v990, %v966
      %v992 = vsel %vm905, %v484, %v989
      %v993 = vsel %vm905, 0, %v991
      %v994 = vcosq.f32.pop %v992
      %v995 = vsinq.f32.pop %v992
      %vm996 = vweird.f32 %v484
      %v997 = vadd.s32 %v993, 3
      %v998 = vand.u32 %v997, 3
      %vm999 = vcmp.lt.s32.totalorder %v998, 2
      %vm1000 = vcmp.eq.s32.totalorder %v998, 0
      %v1001 = vxor.u32 %v995, 2147483648
      %v1002 = vsel %vm1000, %v994, %v1001
      %vm1003 = vcmp.eq.s32.totalorder %v998, 2
      %v1004 = vxor.u32 %v994, 2147483648
      %v1005 = vsel %vm1003, %v1004, %v995
      %v1006 = vsel %vm999, %v1002, %v1005
      %v1007 = vsel %vm996, nan, %v1006
      %v1008 = vand.u32 2147483647, %v485
      %vm1009 = vcmp.le.f32.partialorder %v1008, 0.7853982
      %vm1010 = vcmp.lt.s32.totalorder %v485, 0
      %v1011 = vand.u32 %v485, 2139095040
      %v1012 = vshrl.u32 %v1011, 23
      %v1013 = vsub.s32 %v1012, 127
      %v1014 = vand.u32 2147483647, %v485
      %v1015 = vand.u32 %v1014, 8388607
      %v1016 = vor.u32 %v1015, 8388608
      %v1017 = vsub.s32 0, %v1016
      %v1018 = vadd.s32 %v1013, 1
      %vm1019 = vcmp.gt.s32.totalorder %v1018, 0
      %v1020 = vsel %vm1019, %v1018, 0
      %v1021 = vshrl.u32 %v1020, 5
      %v1022 = vand.u32 %v1020, 31
      %v1023 = vsub.s32 32, %v1022
      %v1024 = vshrl.u32 683565275, %v1023
      %v1025 = vshll.u32 683565275, %v1022
      %v1026 = vshrl.u32 2475754826, %v1023
      %v1027 = vor.u32 %v1025, %v1026
      %v1028 = vshll.u32 2475754826, %v1022
      %v1029 = vshrl.u32 2131351028, %v1023
      %v1030 = vor.u32 %v1028, %v1029
      %v1031 = vshll.u32 2131351028, %v1022
      %v1032 = vshrl.u32 2102212464, %v1023
      %v1033 = vor.u32 %v1031, %v1032
      %v1034 = vshll.u32 2102212464, %v1022
      %v1035 = vshrl.u32 920167782, %v1023
      %v1036 = vor.u32 %v1034, %v1035
      %v1037 = vshll.u32 920167782, %v1022
      %v1038 = vshrl.u32 1326507024, %v1023
      %v1039 = vor.u32 %v1037, %v1038
      %vm1040 = vcmp.lt.s32.totalorder %v1021, 1
      %vm1041 = vcmp.lt.s32.totalorder %v1021, 2
      %vm1042 = vcmp.lt.s32.totalorder %v1021, 3
      %vm1043 = vcmp.lt.s32.totalorder %v1021, 4
      %v1044 = vsel %vm1040, %v1024, %v1027
      %v1045 = vsel %vm1043, %v1033, 2102212464
      %v1046 = vsel %vm1042, %v1030, %v1045
      %v1047 = vsel %vm1041, %v1044, %v1046
      %v1048 = vsel %vm1040, %v1027, %v1030
      %v1049 = vsel %vm1043, %v1036, 920167782
      %v1050 = vsel %vm1042, %v1033, %v1049
      %v1051 = vsel %vm1041, %v1048, %v1050
      %v1052 = vsel %vm1040, %v1030, %v1033
      %v1053 = vsel %vm1043, %v1039, 1326507024
      %v1054 = vsel %vm1042, %v1036, %v1053
      %v1055 = vsel %vm1041, %v1052, %v1054
      %v1056 = vshll.u32 %v1016, 8
      %v1057 = vmul.u32.u64.compose %v1056, %v1055
      %v1058 = vextract.low.u32 %v1057
      %v1059 = vextract.high.u32 %v1057
      %v1060 = vmul.u32.u64.compose %v1056, %v1051
      %v1061 = vextract.low.u32 %v1060
      %v1062 = vextract.high.u32 %v1060
      %v1063 = vmul.u32 %v1056, %v1047
      %v1064 = vadd.s32 %v1059, %v1061
      %vm1065 = vc.u32 %v1059, %v1061
      %v1066 = vadd.s32 %v1062, 1
      %v1067 = vsel %vm1065, %v1066, %v1062
      %v1068 = vadd.s32 %v1063, %v1067
      %v1069 = vadd.s32 %v1068, 536870912
      %v1070 = vshrl.u32 %v1069, 30
      %v1071 = vshll.u32 %v1070, 30
      %v1072 = vsub.s32 %v1068, %v1071
      %vm1073 = vcmp.lt.s32.totalorder %v1072, 0
      %v1074 = vsub.s32 0, %v1072
      %v1075 = vsel %vm1073, %v1074, %v1072
      %v1076 = vclz %v1075
      %v1077 = vsub.s32 %v1076, 2
      %vm1078 = vcmp.gt.s32.totalorder 0, %v1077
      %v1079 = vsel %vm1078, 0, %v1077
      %v1080 = vsub.s32 32, %v1079
      %v1081 = vshll.u32 %v1072, %v1079
      %v1082 = vshrl.u32 %v1064, %v1080
      %v1083 = vor.u32 %v1081, %v1082
      %v1084 = vsub.s32 4294967266, %v1079
      %v1085 = vadd.s32 %v1084, 127
      %v1086 = vshll.u32 %v1085, 23
      %v1087 = vor.u32 4788187, %v1086
      %v1088 = vand.u32 2147483647, %v1087
      %v1090 = vcvt.s32.f32 %v1083
      %v1091 = vmul.f32 %v1090, %v1088
      %v1092 = vxor.u32 %v1091, 2147483648
      %v1093 = vsel %vm1010, %v1092, %v1091
      %v1094 = vsub.s32 4, %v1070
      %v1095 = vsel %vm1010, %v1094, %v1070
      %v1096 = vsel %vm1009, %v485, %v1093
      %v1097 = vsel %vm1009, 0, %v1095
      %v1098 = vcosq.f32.pop %v1096
      %v1099 = vsinq.f32.pop %v1096
      %vm1100 = vweird.f32 %v485
      %v1101 = vadd.s32 %v1097, 3
      %v1102 = vand.u32 %v1101, 3
      %vm1103 = vcmp.lt.s32.totalorder %v1102, 2
      %vm1104 = vcmp.eq.s32.totalorder %v1102, 0
      %v1105 = vxor.u32 %v1099, 2147483648
      %v1106 = vsel %vm1104, %v1098, %v1105
      %vm1107 = vcmp.eq.s32.totalorder %v1102, 2
      %v1108 = vxor.u32 %v1098, 2147483648
      %v1109 = vsel %vm1107, %v1108, %v1099
      %v1110 = vsel %vm1103, %v1106, %v1109
      %v1111 = vsel %vm1100, nan, %v1110
      %v1112 = vand.u32 2147483647, %v486
      %vm1113 = vcmp.le.f32.partialorder %v1112, 0.7853982
      %vm1114 = vcmp.lt.s32.totalorder %v486, 0
      %v1115 = vand.u32 %v486, 2139095040
      %v1116 = vshrl.u32 %v1115, 23
      %v1117 = vsub.s32 %v1116, 127
      %v1118 = vand.u32 2147483647, %v486
      %v1119 = vand.u32 %v1118, 8388607
      %v1120 = vor.u32 %v1119, 8388608
      %v1121 = vsub.s32 0, %v1120
      %v1122 = vadd.s32 %v1117, 1
      %vm1123 = vcmp.gt.s32.totalorder %v1122, 0
      %v1124 = vsel %vm1123, %v1122, 0
      %v1125 = vshrl.u32 %v1124, 5
      %v1126 = vand.u32 %v1124, 31
      %v1127 = vsub.s32 32, %v1126
      %v1128 = vshrl.u32 683565275, %v1127
      %v1129 = vshll.u32 683565275, %v1126
      %v1130 = vshrl.u32 2475754826, %v1127
      %v1131 = vor.u32 %v1129, %v1130
      %v1132 = vshll.u32 2475754826, %v1126
      %v1133 = vshrl.u32 2131351028, %v1127
      %v1134 = vor.u32 %v1132, %v1133
      %v1135 = vshll.u32 2131351028, %v1126
      %v1136 = vshrl.u32 2102212464, %v1127
      %v1137 = vor.u32 %v1135, %v1136
      %v1138 = vshll.u32 2102212464, %v1126
      %v1139 = vshrl.u32 920167782, %v1127
      %v1140 = vor.u32 %v1138, %v1139
      %v1141 = vshll.u32 920167782, %v1126
      %v1142 = vshrl.u32 1326507024, %v1127
      %v1143 = vor.u32 %v1141, %v1142
      %vm1144 = vcmp.lt.s32.totalorder %v1125, 1
      %vm1145 = vcmp.lt.s32.totalorder %v1125, 2
      %vm1146 = vcmp.lt.s32.totalorder %v1125, 3
      %vm1147 = vcmp.lt.s32.totalorder %v1125, 4
      %v1148 = vsel %vm1144, %v1128, %v1131
      %v1149 = vsel %vm1147, %v1137, 2102212464
      %v1150 = vsel %vm1146, %v1134, %v1149
      %v1151 = vsel %vm1145, %v1148, %v1150
      %v1152 = vsel %vm1144, %v1131, %v1134
      %v1153 = vsel %vm1147, %v1140, 920167782
      %v1154 = vsel %vm1146, %v1137, %v1153
      %v1155 = vsel %vm1145, %v1152, %v1154
      %v1156 = vsel %vm1144, %v1134, %v1137
      %v1157 = vsel %vm1147, %v1143, 1326507024
      %v1158 = vsel %vm1146, %v1140, %v1157
      %v1159 = vsel %vm1145, %v1156, %v1158
      %v1160 = vshll.u32 %v1120, 8
      %v1161 = vmul.u32.u64.compose %v1160, %v1159
      %v1162 = vextract.low.u32 %v1161
      %v1163 = vextract.high.u32 %v1161
      %v1164 = vmul.u32.u64.compose %v1160, %v1155
      %v1165 = vextract.low.u32 %v1164
      %v1166 = vextract.high.u32 %v1164
      %v1167 = vmul.u32 %v1160, %v1151
      %v1168 = vadd.s32 %v1163, %v1165
      %vm1169 = vc.u32 %v1163, %v1165
      %v1170 = vadd.s32 %v1166, 1
      %v1171 = vsel %vm1169, %v1170, %v1166
      %v1172 = vadd.s32 %v1167, %v1171
      %v1173 = vadd.s32 %v1172, 536870912
      %v1174 = vshrl.u32 %v1173, 30
      %v1175 = vshll.u32 %v1174, 30
      %v1176 = vsub.s32 %v1172, %v1175
      %vm1177 = vcmp.lt.s32.totalorder %v1176, 0
      %v1178 = vsub.s32 0, %v1176
      %v1179 = vsel %vm1177, %v1178, %v1176
      %v1180 = vclz %v1179
      %v1181 = vsub.s32 %v1180, 2
      %vm1182 = vcmp.gt.s32.totalorder 0, %v1181
      %v1183 = vsel %vm1182, 0, %v1181
      %v1184 = vsub.s32 32, %v1183
      %v1185 = vshll.u32 %v1176, %v1183
      %v1186 = vshrl.u32 %v1168, %v1184
      %v1187 = vor.u32 %v1185, %v1186
      %v1188 = vsub.s32 4294967266, %v1183
      %v1189 = vadd.s32 %v1188, 127
      %v1190 = vshll.u32 %v1189, 23
      %v1191 = vor.u32 4788187, %v1190
      %v1192 = vand.u32 2147483647, %v1191
      %v1194 = vcvt.s32.f32 %v1187
      %v1195 = vmul.f32 %v1194, %v1192
      %v1196 = vxor.u32 %v1195, 2147483648
      %v1197 = vsel %vm1114, %v1196, %v1195
      %v1198 = vsub.s32 4, %v1174
      %v1199 = vsel %vm1114, %v1198, %v1174
      %v1200 = vsel %vm1113, %v486, %v1197
      %v1201 = vsel %vm1113, 0, %v1199
      %v1202 = vcosq.f32.pop %v1200
      %v1203 = vsinq.f32.pop %v1200
      %vm1204 = vweird.f32 %v486
      %v1205 = vadd.s32 %v1201, 3
      %v1206 = vand.u32 %v1205, 3
      %vm1207 = vcmp.lt.s32.totalorder %v1206, 2
      %vm1208 = vcmp.eq.s32.totalorder %v1206, 0
      %v1209 = vxor.u32 %v1203, 2147483648
      %v1210 = vsel %vm1208, %v1202, %v1209
      %vm1211 = vcmp.eq.s32.totalorder %v1206, 2
      %v1212 = vxor.u32 %v1202, 2147483648
      %v1213 = vsel %vm1211, %v1212, %v1203
      %v1214 = vsel %vm1207, %v1210, %v1213
      %v1215 = vsel %vm1204, nan, %v1214
      %v1216 = vand.u32 2147483647, %v487
      %vm1217 = vcmp.le.f32.partialorder %v1216, 0.7853982
      %vm1218 = vcmp.lt.s32.totalorder %v487, 0
      %v1219 = vand.u32 %v487, 2139095040
      %v1220 = vshrl.u32 %v1219, 23
      %v1221 = vsub.s32 %v1220, 127
      %v1222 = vand.u32 2147483647, %v487
      %v1223 = vand.u32 %v1222, 8388607
      %v1224 = vor.u32 %v1223, 8388608
      %v1225 = vsub.s32 0, %v1224
      %v1226 = vadd.s32 %v1221, 1
      %vm1227 = vcmp.gt.s32.totalorder %v1226, 0
      %v1228 = vsel %vm1227, %v1226, 0
      %v1229 = vshrl.u32 %v1228, 5
      %v1230 = vand.u32 %v1228, 31
      %v1231 = vsub.s32 32, %v1230
      %v1232 = vshrl.u32 683565275, %v1231
      %v1233 = vshll.u32 683565275, %v1230
      %v1234 = vshrl.u32 2475754826, %v1231
      %v1235 = vor.u32 %v1233, %v1234
      %v1236 = vshll.u32 2475754826, %v1230
      %v1237 = vshrl.u32 2131351028, %v1231
      %v1238 = vor.u32 %v1236, %v1237
      %v1239 = vshll.u32 2131351028, %v1230
      %v1240 = vshrl.u32 2102212464, %v1231
      %v1241 = vor.u32 %v1239, %v1240
      %v1242 = vshll.u32 2102212464, %v1230
      %v1243 = vshrl.u32 920167782, %v1231
      %v1244 = vor.u32 %v1242, %v1243
      %v1245 = vshll.u32 920167782, %v1230
      %v1246 = vshrl.u32 1326507024, %v1231
      %v1247 = vor.u32 %v1245, %v1246
      %vm1248 = vcmp.lt.s32.totalorder %v1229, 1
      %vm1249 = vcmp.lt.s32.totalorder %v1229, 2
      %vm1250 = vcmp.lt.s32.totalorder %v1229, 3
      %vm1251 = vcmp.lt.s32.totalorder %v1229, 4
      %v1252 = vsel %vm1248, %v1232, %v1235
      %v1253 = vsel %vm1251, %v1241, 2102212464
      %v1254 = vsel %vm1250, %v1238, %v1253
      %v1255 = vsel %vm1249, %v1252, %v1254
      %v1256 = vsel %vm1248, %v1235, %v1238
      %v1257 = vsel %vm1251, %v1244, 920167782
      %v1258 = vsel %vm1250, %v1241, %v1257
      %v1259 = vsel %vm1249, %v1256, %v1258
      %v1260 = vsel %vm1248, %v1238, %v1241
      %v1261 = vsel %vm1251, %v1247, 1326507024
      %v1262 = vsel %vm1250, %v1244, %v1261
      %v1263 = vsel %vm1249, %v1260, %v1262
      %v1264 = vshll.u32 %v1224, 8
      %v1265 = vmul.u32.u64.compose %v1264, %v1263
      %v1266 = vextract.low.u32 %v1265
      %v1267 = vextract.high.u32 %v1265
      %v1268 = vmul.u32.u64.compose %v1264, %v1259
      %v1269 = vextract.low.u32 %v1268
      %v1270 = vextract.high.u32 %v1268
      %v1271 = vmul.u32 %v1264, %v1255
      %v1272 = vadd.s32 %v1267, %v1269
      %vm1273 = vc.u32 %v1267, %v1269
      %v1274 = vadd.s32 %v1270, 1
      %v1275 = vsel %vm1273, %v1274, %v1270
      %v1276 = vadd.s32 %v1271, %v1275
      %v1277 = vadd.s32 %v1276, 536870912
      %v1278 = vshrl.u32 %v1277, 30
      %v1279 = vshll.u32 %v1278, 30
      %v1280 = vsub.s32 %v1276, %v1279
      %vm1281 = vcmp.lt.s32.totalorder %v1280, 0
      %v1282 = vsub.s32 0, %v1280
      %v1283 = vsel %vm1281, %v1282, %v1280
      %v1284 = vclz %v1283
      %v1285 = vsub.s32 %v1284, 2
      %vm1286 = vcmp.gt.s32.totalorder 0, %v1285
      %v1287 = vsel %vm1286, 0, %v1285
      %v1288 = vsub.s32 32, %v1287
      %v1289 = vshll.u32 %v1280, %v1287
      %v1290 = vshrl.u32 %v1272, %v1288
      %v1291 = vor.u32 %v1289, %v1290
      %v1292 = vsub.s32 4294967266, %v1287
      %v1293 = vadd.s32 %v1292, 127
      %v1294 = vshll.u32 %v1293, 23
      %v1295 = vor.u32 4788187, %v1294
      %v1296 = vand.u32 2147483647, %v1295
      %v1298 = vcvt.s32.f32 %v1291
      %v1299 = vmul.f32 %v1298, %v1296
      %v1300 = vxor.u32 %v1299, 2147483648
      %v1301 = vsel %vm1218, %v1300, %v1299
      %v1302 = vsub.s32 4, %v1278
      %v1303 = vsel %vm1218, %v1302, %v1278
      %v1304 = vsel %vm1217, %v487, %v1301
      %v1305 = vsel %vm1217, 0, %v1303
      %v1306 = vcosq.f32.pop %v1304
      %v1307 = vsinq.f32.pop %v1304
      %vm1308 = vweird.f32 %v487
      %v1309 = vadd.s32 %v1305, 3
      %v1310 = vand.u32 %v1309, 3
      %vm1311 = vcmp.lt.s32.totalorder %v1310, 2
      %vm1312 = vcmp.eq.s32.totalorder %v1310, 0
      %v1313 = vxor.u32 %v1307, 2147483648
      %v1314 = vsel %vm1312, %v1306, %v1313
      %vm1315 = vcmp.eq.s32.totalorder %v1310, 2
      %v1316 = vxor.u32 %v1306, 2147483648
      %v1317 = vsel %vm1315, %v1316, %v1307
      %v1318 = vsel %vm1311, %v1314, %v1317
      %v1319 = vsel %vm1308, nan, %v1318
      %v1320 = vand.u32 2147483647, %v455
      %vm1321 = vcmp.le.f32.partialorder %v1320, 0.7853982
      %vm1322 = vcmp.lt.s32.totalorder %v455, 0
      %v1323 = vand.u32 %v455, 2139095040
      %v1324 = vshrl.u32 %v1323, 23
      %v1325 = vsub.s32 %v1324, 127
      %v1326 = vand.u32 2147483647, %v455
      %v1327 = vand.u32 %v1326, 8388607
      %v1328 = vor.u32 %v1327, 8388608
      %v1329 = vsub.s32 0, %v1328
      %v1330 = vadd.s32 %v1325, 1
      %vm1331 = vcmp.gt.s32.totalorder %v1330, 0
      %v1332 = vsel %vm1331, %v1330, 0
      %v1333 = vshrl.u32 %v1332, 5
      %v1334 = vand.u32 %v1332, 31
      %v1335 = vsub.s32 32, %v1334
      %v1336 = vshrl.u32 683565275, %v1335
      %v1337 = vshll.u32 683565275, %v1334
      %v1338 = vshrl.u32 2475754826, %v1335
      %v1339 = vor.u32 %v1337, %v1338
      %v1340 = vshll.u32 2475754826, %v1334
      %v1341 = vshrl.u32 2131351028, %v1335
      %v1342 = vor.u32 %v1340, %v1341
      %v1343 = vshll.u32 2131351028, %v1334
      %v1344 = vshrl.u32 2102212464, %v1335
      %v1345 = vor.u32 %v1343, %v1344
      %v1346 = vshll.u32 2102212464, %v1334
      %v1347 = vshrl.u32 920167782, %v1335
      %v1348 = vor.u32 %v1346, %v1347
      %v1349 = vshll.u32 920167782, %v1334
      %v1350 = vshrl.u32 1326507024, %v1335
      %v1351 = vor.u32 %v1349, %v1350
      %vm1352 = vcmp.lt.s32.totalorder %v1333, 1
      %vm1353 = vcmp.lt.s32.totalorder %v1333, 2
      %vm1354 = vcmp.lt.s32.totalorder %v1333, 3
      %vm1355 = vcmp.lt.s32.totalorder %v1333, 4
      %v1356 = vsel %vm1352, %v1336, %v1339
      %v1357 = vsel %vm1355, %v1345, 2102212464
      %v1358 = vsel %vm1354, %v1342, %v1357
      %v1359 = vsel %vm1353, %v1356, %v1358
      %v1360 = vsel %vm1352, %v1339, %v1342
      %v1361 = vsel %vm1355, %v1348, 920167782
      %v1362 = vsel %vm1354, %v1345, %v1361
      %v1363 = vsel %vm1353, %v1360, %v1362
      %v1364 = vsel %vm1352, %v1342, %v1345
      %v1365 = vsel %vm1355, %v1351, 1326507024
      %v1366 = vsel %vm1354, %v1348, %v1365
      %v1367 = vsel %vm1353, %v1364, %v1366
      %v1368 = vshll.u32 %v1328, 8
      %v1369 = vmul.u32.u64.compose %v1368, %v1367
      %v1370 = vextract.low.u32 %v1369
      %v1371 = vextract.high.u32 %v1369
      %v1372 = vmul.u32.u64.compose %v1368, %v1363
      %v1373 = vextract.low.u32 %v1372
      %v1374 = vextract.high.u32 %v1372
      %v1375 = vmul.u32 %v1368, %v1359
      %v1376 = vadd.s32 %v1371, %v1373
      %vm1377 = vc.u32 %v1371, %v1373
      %v1378 = vadd.s32 %v1374, 1
      %v1379 = vsel %vm1377, %v1378, %v1374
      %v1380 = vadd.s32 %v1375, %v1379
      %v1381 = vadd.s32 %v1380, 536870912
      %v1382 = vshrl.u32 %v1381, 30
      %v1383 = vshll.u32 %v1382, 30
      %v1384 = vsub.s32 %v1380, %v1383
      %vm1385 = vcmp.lt.s32.totalorder %v1384, 0
      %v1386 = vsub.s32 0, %v1384
      %v1387 = vsel %vm1385, %v1386, %v1384
      %v1388 = vclz %v1387
      %v1389 = vsub.s32 %v1388, 2
      %vm1390 = vcmp.gt.s32.totalorder 0, %v1389
      %v1391 = vsel %vm1390, 0, %v1389
      %v1392 = vsub.s32 32, %v1391
      %v1393 = vshll.u32 %v1384, %v1391
      %v1394 = vshrl.u32 %v1376, %v1392
      %v1395 = vor.u32 %v1393, %v1394
      %v1396 = vsub.s32 4294967266, %v1391
      %v1397 = vadd.s32 %v1396, 127
      %v1398 = vshll.u32 %v1397, 23
      %v1399 = vor.u32 4788187, %v1398
      %v1400 = vand.u32 2147483647, %v1399
      %v1402 = vcvt.s32.f32 %v1395
      %v1403 = vmul.f32 %v1402, %v1400
      %v1404 = vxor.u32 %v1403, 2147483648
      %v1405 = vsel %vm1322, %v1404, %v1403
      %v1406 = vsub.s32 4, %v1382
      %v1407 = vsel %vm1322, %v1406, %v1382
      %v1408 = vsel %vm1321, %v455, %v1405
      %v1409 = vsel %vm1321, 0, %v1407
      %v1410 = vcosq.f32.pop %v1408
      %v1411 = vsinq.f32.pop %v1408
      %vm1412 = vweird.f32 %v455
      %v1413 = vadd.s32 %v1409, 3
      %v1414 = vand.u32 %v1413, 3
      %vm1415 = vcmp.lt.s32.totalorder %v1414, 2
      %vm1416 = vcmp.eq.s32.totalorder %v1414, 0
      %v1417 = vxor.u32 %v1411, 2147483648
      %v1418 = vsel %vm1416, %v1410, %v1417
      %vm1419 = vcmp.eq.s32.totalorder %v1414, 2
      %v1420 = vxor.u32 %v1410, 2147483648
      %v1421 = vsel %vm1419, %v1420, %v1411
      %v1422 = vsel %vm1415, %v1418, %v1421
      %v1423 = vsel %vm1412, nan, %v1422
      %v1424 = vand.u32 2147483647, %v456
      %vm1425 = vcmp.le.f32.partialorder %v1424, 0.7853982
      %vm1426 = vcmp.lt.s32.totalorder %v456, 0
      %v1427 = vand.u32 %v456, 2139095040
      %v1428 = vshrl.u32 %v1427, 23
      %v1429 = vsub.s32 %v1428, 127
      %v1430 = vand.u32 2147483647, %v456
      %v1431 = vand.u32 %v1430, 8388607
      %v1432 = vor.u32 %v1431, 8388608
      %v1433 = vsub.s32 0, %v1432
      %v1434 = vadd.s32 %v1429, 1
      %vm1435 = vcmp.gt.s32.totalorder %v1434, 0
      %v1436 = vsel %vm1435, %v1434, 0
      %v1437 = vshrl.u32 %v1436, 5
      %v1438 = vand.u32 %v1436, 31
      %v1439 = vsub.s32 32, %v1438
      %v1440 = vshrl.u32 683565275, %v1439
      %v1441 = vshll.u32 683565275, %v1438
      %v1442 = vshrl.u32 2475754826, %v1439
      %v1443 = vor.u32 %v1441, %v1442
      %v1444 = vshll.u32 2475754826, %v1438
      %v1445 = vshrl.u32 2131351028, %v1439
      %v1446 = vor.u32 %v1444, %v1445
      %v1447 = vshll.u32 2131351028, %v1438
      %v1448 = vshrl.u32 2102212464, %v1439
      %v1449 = vor.u32 %v1447, %v1448
      %v1450 = vshll.u32 2102212464, %v1438
      %v1451 = vshrl.u32 920167782, %v1439
      %v1452 = vor.u32 %v1450, %v1451
      %v1453 = vshll.u32 920167782, %v1438
      %v1454 = vshrl.u32 1326507024, %v1439
      %v1455 = vor.u32 %v1453, %v1454
      %vm1456 = vcmp.lt.s32.totalorder %v1437, 1
      %vm1457 = vcmp.lt.s32.totalorder %v1437, 2
      %vm1458 = vcmp.lt.s32.totalorder %v1437, 3
      %vm1459 = vcmp.lt.s32.totalorder %v1437, 4
      %v1460 = vsel %vm1456, %v1440, %v1443
      %v1461 = vsel %vm1459, %v1449, 2102212464
      %v1462 = vsel %vm1458, %v1446, %v1461
      %v1463 = vsel %vm1457, %v1460, %v1462
      %v1464 = vsel %vm1456, %v1443, %v1446
      %v1465 = vsel %vm1459, %v1452, 920167782
      %v1466 = vsel %vm1458, %v1449, %v1465
      %v1467 = vsel %vm1457, %v1464, %v1466
      %v1468 = vsel %vm1456, %v1446, %v1449
      %v1469 = vsel %vm1459, %v1455, 1326507024
      %v1470 = vsel %vm1458, %v1452, %v1469
      %v1471 = vsel %vm1457, %v1468, %v1470
      %v1472 = vshll.u32 %v1432, 8
      %v1473 = vmul.u32.u64.compose %v1472, %v1471
      %v1474 = vextract.low.u32 %v1473
      %v1475 = vextract.high.u32 %v1473
      %v1476 = vmul.u32.u64.compose %v1472, %v1467
      %v1477 = vextract.low.u32 %v1476
      %v1478 = vextract.high.u32 %v1476
      %v1479 = vmul.u32 %v1472, %v1463
      %v1480 = vadd.s32 %v1475, %v1477
      %vm1481 = vc.u32 %v1475, %v1477
      %v1482 = vadd.s32 %v1478, 1
      %v1483 = vsel %vm1481, %v1482, %v1478
      %v1484 = vadd.s32 %v1479, %v1483
      %v1485 = vadd.s32 %v1484, 536870912
      %v1486 = vshrl.u32 %v1485, 30
      %v1487 = vshll.u32 %v1486, 30
      %v1488 = vsub.s32 %v1484, %v1487
      %vm1489 = vcmp.lt.s32.totalorder %v1488, 0
      %v1490 = vsub.s32 0, %v1488
      %v1491 = vsel %vm1489, %v1490, %v1488
      %v1492 = vclz %v1491
      %v1493 = vsub.s32 %v1492, 2
      %vm1494 = vcmp.gt.s32.totalorder 0, %v1493
      %v1495 = vsel %vm1494, 0, %v1493
      %v1496 = vsub.s32 32, %v1495
      %v1497 = vshll.u32 %v1488, %v1495
      %v1498 = vshrl.u32 %v1480, %v1496
      %v1499 = vor.u32 %v1497, %v1498
      %v1500 = vsub.s32 4294967266, %v1495
      %v1501 = vadd.s32 %v1500, 127
      %v1502 = vshll.u32 %v1501, 23
      %v1503 = vor.u32 4788187, %v1502
      %v1504 = vand.u32 2147483647, %v1503
      %v1506 = vcvt.s32.f32 %v1499
      %v1507 = vmul.f32 %v1506, %v1504
      %v1508 = vxor.u32 %v1507, 2147483648
      %v1509 = vsel %vm1426, %v1508, %v1507
      %v1510 = vsub.s32 4, %v1486
      %v1511 = vsel %vm1426, %v1510, %v1486
      %v1512 = vsel %vm1425, %v456, %v1509
      %v1513 = vsel %vm1425, 0, %v1511
      %v1514 = vcosq.f32.pop %v1512
      %v1515 = vsinq.f32.pop %v1512
      %vm1516 = vweird.f32 %v456
      %v1517 = vadd.s32 %v1513, 3
      %v1518 = vand.u32 %v1517, 3
      %vm1519 = vcmp.lt.s32.totalorder %v1518, 2
      %vm1520 = vcmp.eq.s32.totalorder %v1518, 0
      %v1521 = vxor.u32 %v1515, 2147483648
      %v1522 = vsel %vm1520, %v1514, %v1521
      %vm1523 = vcmp.eq.s32.totalorder %v1518, 2
      %v1524 = vxor.u32 %v1514, 2147483648
      %v1525 = vsel %vm1523, %v1524, %v1515
      %v1526 = vsel %vm1519, %v1522, %v1525
      %v1527 = vsel %vm1516, nan, %v1526
      %v1528 = vand.u32 2147483647, %v457
      %vm1529 = vcmp.le.f32.partialorder %v1528, 0.7853982
      %vm1530 = vcmp.lt.s32.totalorder %v457, 0
      %v1531 = vand.u32 %v457, 2139095040
      %v1532 = vshrl.u32 %v1531, 23
      %v1533 = vsub.s32 %v1532, 127
      %v1534 = vand.u32 2147483647, %v457
      %v1535 = vand.u32 %v1534, 8388607
      %v1536 = vor.u32 %v1535, 8388608
      %v1537 = vsub.s32 0, %v1536
      %v1538 = vadd.s32 %v1533, 1
      %vm1539 = vcmp.gt.s32.totalorder %v1538, 0
      %v1540 = vsel %vm1539, %v1538, 0
      %v1541 = vshrl.u32 %v1540, 5
      %v1542 = vand.u32 %v1540, 31
      %v1543 = vsub.s32 32, %v1542
      %v1544 = vshrl.u32 683565275, %v1543
      %v1545 = vshll.u32 683565275, %v1542
      %v1546 = vshrl.u32 2475754826, %v1543
      %v1547 = vor.u32 %v1545, %v1546
      %v1548 = vshll.u32 2475754826, %v1542
      %v1549 = vshrl.u32 2131351028, %v1543
      %v1550 = vor.u32 %v1548, %v1549
      %v1551 = vshll.u32 2131351028, %v1542
      %v1552 = vshrl.u32 2102212464, %v1543
      %v1553 = vor.u32 %v1551, %v1552
      %v1554 = vshll.u32 2102212464, %v1542
      %v1555 = vshrl.u32 920167782, %v1543
      %v1556 = vor.u32 %v1554, %v1555
      %v1557 = vshll.u32 920167782, %v1542
      %v1558 = vshrl.u32 1326507024, %v1543
      %v1559 = vor.u32 %v1557, %v1558
      %vm1560 = vcmp.lt.s32.totalorder %v1541, 1
      %vm1561 = vcmp.lt.s32.totalorder %v1541, 2
      %vm1562 = vcmp.lt.s32.totalorder %v1541, 3
      %vm1563 = vcmp.lt.s32.totalorder %v1541, 4
      %v1564 = vsel %vm1560, %v1544, %v1547
      %v1565 = vsel %vm1563, %v1553, 2102212464
      %v1566 = vsel %vm1562, %v1550, %v1565
      %v1567 = vsel %vm1561, %v1564, %v1566
      %v1568 = vsel %vm1560, %v1547, %v1550
      %v1569 = vsel %vm1563, %v1556, 920167782
      %v1570 = vsel %vm1562, %v1553, %v1569
      %v1571 = vsel %vm1561, %v1568, %v1570
      %v1572 = vsel %vm1560, %v1550, %v1553
      %v1573 = vsel %vm1563, %v1559, 1326507024
      %v1574 = vsel %vm1562, %v1556, %v1573
      %v1575 = vsel %vm1561, %v1572, %v1574
      %v1576 = vshll.u32 %v1536, 8
      %v1577 = vmul.u32.u64.compose %v1576, %v1575
      %v1578 = vextract.low.u32 %v1577
      %v1579 = vextract.high.u32 %v1577
      %v1580 = vmul.u32.u64.compose %v1576, %v1571
      %v1581 = vextract.low.u32 %v1580
      %v1582 = vextract.high.u32 %v1580
      %v1583 = vmul.u32 %v1576, %v1567
      %v1584 = vadd.s32 %v1579, %v1581
      %vm1585 = vc.u32 %v1579, %v1581
      %v1586 = vadd.s32 %v1582, 1
      %v1587 = vsel %vm1585, %v1586, %v1582
      %v1588 = vadd.s32 %v1583, %v1587
      %v1589 = vadd.s32 %v1588, 536870912
      %v1590 = vshrl.u32 %v1589, 30
      %v1591 = vshll.u32 %v1590, 30
      %v1592 = vsub.s32 %v1588, %v1591
      %vm1593 = vcmp.lt.s32.totalorder %v1592, 0
      %v1594 = vsub.s32 0, %v1592
      %v1595 = vsel %vm1593, %v1594, %v1592
      %v1596 = vclz %v1595
      %v1597 = vsub.s32 %v1596, 2
      %vm1598 = vcmp.gt.s32.totalorder 0, %v1597
      %v1599 = vsel %vm1598, 0, %v1597
      %v1600 = vsub.s32 32, %v1599
      %v1601 = vshll.u32 %v1592, %v1599
      %v1602 = vshrl.u32 %v1584, %v1600
      %v1603 = vor.u32 %v1601, %v1602
      %v1604 = vsub.s32 4294967266, %v1599
      %v1605 = vadd.s32 %v1604, 127
      %v1606 = vshll.u32 %v1605, 23
      %v1607 = vor.u32 4788187, %v1606
      %v1608 = vand.u32 2147483647, %v1607
      %v1610 = vcvt.s32.f32 %v1603
      %v1611 = vmul.f32 %v1610, %v1608
      %v1612 = vxor.u32 %v1611, 2147483648
      %v1613 = vsel %vm1530, %v1612, %v1611
      %v1614 = vsub.s32 4, %v1590
      %v1615 = vsel %vm1530, %v1614, %v1590
      %v1616 = vsel %vm1529, %v457, %v1613
      %v1617 = vsel %vm1529, 0, %v1615
      %v1618 = vcosq.f32.pop %v1616
      %v1619 = vsinq.f32.pop %v1616
      %vm1620 = vweird.f32 %v457
      %v1621 = vadd.s32 %v1617, 3
      %v1622 = vand.u32 %v1621, 3
      %vm1623 = vcmp.lt.s32.totalorder %v1622, 2
      %vm1624 = vcmp.eq.s32.totalorder %v1622, 0
      %v1625 = vxor.u32 %v1619, 2147483648
      %v1626 = vsel %vm1624, %v1618, %v1625
      %vm1627 = vcmp.eq.s32.totalorder %v1622, 2
      %v1628 = vxor.u32 %v1618, 2147483648
      %v1629 = vsel %vm1627, %v1628, %v1619
      %v1630 = vsel %vm1623, %v1626, %v1629
      %v1631 = vsel %vm1620, nan, %v1630
      %v1632 = vand.u32 2147483647, %v458
      %vm1633 = vcmp.le.f32.partialorder %v1632, 0.7853982
      %vm1634 = vcmp.lt.s32.totalorder %v458, 0
      %v1635 = vand.u32 %v458, 2139095040
      %v1636 = vshrl.u32 %v1635, 23
      %v1637 = vsub.s32 %v1636, 127
      %v1638 = vand.u32 2147483647, %v458
      %v1639 = vand.u32 %v1638, 8388607
      %v1640 = vor.u32 %v1639, 8388608
      %v1641 = vsub.s32 0, %v1640
      %v1642 = vadd.s32 %v1637, 1
      %vm1643 = vcmp.gt.s32.totalorder %v1642, 0
      %v1644 = vsel %vm1643, %v1642, 0
      %v1645 = vshrl.u32 %v1644, 5
      %v1646 = vand.u32 %v1644, 31
      %v1647 = vsub.s32 32, %v1646
      %v1648 = vshrl.u32 683565275, %v1647
      %v1649 = vshll.u32 683565275, %v1646
      %v1650 = vshrl.u32 2475754826, %v1647
      %v1651 = vor.u32 %v1649, %v1650
      %v1652 = vshll.u32 2475754826, %v1646
      %v1653 = vshrl.u32 2131351028, %v1647
      %v1654 = vor.u32 %v1652, %v1653
      %v1655 = vshll.u32 2131351028, %v1646
      %v1656 = vshrl.u32 2102212464, %v1647
      %v1657 = vor.u32 %v1655, %v1656
      %v1658 = vshll.u32 2102212464, %v1646
      %v1659 = vshrl.u32 920167782, %v1647
      %v1660 = vor.u32 %v1658, %v1659
      %v1661 = vshll.u32 920167782, %v1646
      %v1662 = vshrl.u32 1326507024, %v1647
      %v1663 = vor.u32 %v1661, %v1662
      %vm1664 = vcmp.lt.s32.totalorder %v1645, 1
      %vm1665 = vcmp.lt.s32.totalorder %v1645, 2
      %vm1666 = vcmp.lt.s32.totalorder %v1645, 3
      %vm1667 = vcmp.lt.s32.totalorder %v1645, 4
      %v1668 = vsel %vm1664, %v1648, %v1651
      %v1669 = vsel %vm1667, %v1657, 2102212464
      %v1670 = vsel %vm1666, %v1654, %v1669
      %v1671 = vsel %vm1665, %v1668, %v1670
      %v1672 = vsel %vm1664, %v1651, %v1654
      %v1673 = vsel %vm1667, %v1660, 920167782
      %v1674 = vsel %vm1666, %v1657, %v1673
      %v1675 = vsel %vm1665, %v1672, %v1674
      %v1676 = vsel %vm1664, %v1654, %v1657
      %v1677 = vsel %vm1667, %v1663, 1326507024
      %v1678 = vsel %vm1666, %v1660, %v1677
      %v1679 = vsel %vm1665, %v1676, %v1678
      %v1680 = vshll.u32 %v1640, 8
      %v1681 = vmul.u32.u64.compose %v1680, %v1679
      %v1682 = vextract.low.u32 %v1681
      %v1683 = vextract.high.u32 %v1681
      %v1684 = vmul.u32.u64.compose %v1680, %v1675
      %v1685 = vextract.low.u32 %v1684
      %v1686 = vextract.high.u32 %v1684
      %v1687 = vmul.u32 %v1680, %v1671
      %v1688 = vadd.s32 %v1683, %v1685
      %vm1689 = vc.u32 %v1683, %v1685
      %v1690 = vadd.s32 %v1686, 1
      %v1691 = vsel %vm1689, %v1690, %v1686
      %v1692 = vadd.s32 %v1687, %v1691
      %v1693 = vadd.s32 %v1692, 536870912
      %v1694 = vshrl.u32 %v1693, 30
      %v1695 = vshll.u32 %v1694, 30
      %v1696 = vsub.s32 %v1692, %v1695
      %vm1697 = vcmp.lt.s32.totalorder %v1696, 0
      %v1698 = vsub.s32 0, %v1696
      %v1699 = vsel %vm1697, %v1698, %v1696
      %v1700 = vclz %v1699
      %v1701 = vsub.s32 %v1700, 2
      %vm1702 = vcmp.gt.s32.totalorder 0, %v1701
      %v1703 = vsel %vm1702, 0, %v1701
      %v1704 = vsub.s32 32, %v1703
      %v1705 = vshll.u32 %v1696, %v1703
      %v1706 = vshrl.u32 %v1688, %v1704
      %v1707 = vor.u32 %v1705, %v1706
      %v1708 = vsub.s32 4294967266, %v1703
      %v1709 = vadd.s32 %v1708, 127
      %v1710 = vshll.u32 %v1709, 23
      %v1711 = vor.u32 4788187, %v1710
      %v1712 = vand.u32 2147483647, %v1711
      %v1714 = vcvt.s32.f32 %v1707
      %v1715 = vmul.f32 %v1714, %v1712
      %v1716 = vxor.u32 %v1715, 2147483648
      %v1717 = vsel %vm1634, %v1716, %v1715
      %v1718 = vsub.s32 4, %v1694
      %v1719 = vsel %vm1634, %v1718, %v1694
      %v1720 = vsel %vm1633, %v458, %v1717
      %v1721 = vsel %vm1633, 0, %v1719
      %v1722 = vcosq.f32.pop %v1720
      %v1723 = vsinq.f32.pop %v1720
      %vm1724 = vweird.f32 %v458
      %v1725 = vadd.s32 %v1721, 3
      %v1726 = vand.u32 %v1725, 3
      %vm1727 = vcmp.lt.s32.totalorder %v1726, 2
      %vm1728 = vcmp.eq.s32.totalorder %v1726, 0
      %v1729 = vxor.u32 %v1723, 2147483648
      %v1730 = vsel %vm1728, %v1722, %v1729
      %vm1731 = vcmp.eq.s32.totalorder %v1726, 2
      %v1732 = vxor.u32 %v1722, 2147483648
      %v1733 = vsel %vm1731, %v1732, %v1723
      %v1734 = vsel %vm1727, %v1730, %v1733
      %v1735 = vsel %vm1724, nan, %v1734
      %v1736 = vand.u32 2147483647, %v469
      %vm1737 = vcmp.le.f32.partialorder %v1736, 0.7853982
      %vm1738 = vcmp.lt.s32.totalorder %v469, 0
      %v1739 = vand.u32 %v469, 2139095040
      %v1740 = vshrl.u32 %v1739, 23
      %v1741 = vsub.s32 %v1740, 127
      %v1742 = vand.u32 2147483647, %v469
      %v1743 = vand.u32 %v1742, 8388607
      %v1744 = vor.u32 %v1743, 8388608
      %v1745 = vsub.s32 0, %v1744
      %v1746 = vadd.s32 %v1741, 1
      %vm1747 = vcmp.gt.s32.totalorder %v1746, 0
      %v1748 = vsel %vm1747, %v1746, 0
      %v1749 = vshrl.u32 %v1748, 5
      %v1750 = vand.u32 %v1748, 31
      %v1751 = vsub.s32 32, %v1750
      %v1752 = vshrl.u32 683565275, %v1751
      %v1753 = vshll.u32 683565275, %v1750
      %v1754 = vshrl.u32 2475754826, %v1751
      %v1755 = vor.u32 %v1753, %v1754
      %v1756 = vshll.u32 2475754826, %v1750
      %v1757 = vshrl.u32 2131351028, %v1751
      %v1758 = vor.u32 %v1756, %v1757
      %v1759 = vshll.u32 2131351028, %v1750
      %v1760 = vshrl.u32 2102212464, %v1751
      %v1761 = vor.u32 %v1759, %v1760
      %v1762 = vshll.u32 2102212464, %v1750
      %v1763 = vshrl.u32 920167782, %v1751
      %v1764 = vor.u32 %v1762, %v1763
      %v1765 = vshll.u32 920167782, %v1750
      %v1766 = vshrl.u32 1326507024, %v1751
      %v1767 = vor.u32 %v1765, %v1766
      %vm1768 = vcmp.lt.s32.totalorder %v1749, 1
      %vm1769 = vcmp.lt.s32.totalorder %v1749, 2
      %vm1770 = vcmp.lt.s32.totalorder %v1749, 3
      %vm1771 = vcmp.lt.s32.totalorder %v1749, 4
      %v1772 = vsel %vm1768, %v1752, %v1755
      %v1773 = vsel %vm1771, %v1761, 2102212464
      %v1774 = vsel %vm1770, %v1758, %v1773
      %v1775 = vsel %vm1769, %v1772, %v1774
      %v1776 = vsel %vm1768, %v1755, %v1758
      %v1777 = vsel %vm1771, %v1764, 920167782
      %v1778 = vsel %vm1770, %v1761, %v1777
      %v1779 = vsel %vm1769, %v1776, %v1778
      %v1780 = vsel %vm1768, %v1758, %v1761
      %v1781 = vsel %vm1771, %v1767, 1326507024
      %v1782 = vsel %vm1770, %v1764, %v1781
      %v1783 = vsel %vm1769, %v1780, %v1782
      %v1784 = vshll.u32 %v1744, 8
      %v1785 = vmul.u32.u64.compose %v1784, %v1783
      %v1786 = vextract.low.u32 %v1785
      %v1787 = vextract.high.u32 %v1785
      %v1788 = vmul.u32.u64.compose %v1784, %v1779
      %v1789 = vextract.low.u32 %v1788
      %v1790 = vextract.high.u32 %v1788
      %v1791 = vmul.u32 %v1784, %v1775
      %v1792 = vadd.s32 %v1787, %v1789
      %vm1793 = vc.u32 %v1787, %v1789
      %v1794 = vadd.s32 %v1790, 1
      %v1795 = vsel %vm1793, %v1794, %v1790
      %v1796 = vadd.s32 %v1791, %v1795
      %v1797 = vadd.s32 %v1796, 536870912
      %v1798 = vshrl.u32 %v1797, 30
      %v1799 = vshll.u32 %v1798, 30
      %v1800 = vsub.s32 %v1796, %v1799
      %vm1801 = vcmp.lt.s32.totalorder %v1800, 0
      %v1802 = vsub.s32 0, %v1800
      %v1803 = vsel %vm1801, %v1802, %v1800
      %v1804 = vclz %v1803
      %v1805 = vsub.s32 %v1804, 2
      %vm1806 = vcmp.gt.s32.totalorder 0, %v1805
      %v1807 = vsel %vm1806, 0, %v1805
      %v1808 = vsub.s32 32, %v1807
      %v1809 = vshll.u32 %v1800, %v1807
      %v1810 = vshrl.u32 %v1792, %v1808
      %v1811 = vor.u32 %v1809, %v1810
      %v1812 = vsub.s32 4294967266, %v1807
      %v1813 = vadd.s32 %v1812, 127
      %v1814 = vshll.u32 %v1813, 23
      %v1815 = vor.u32 4788187, %v1814
      %v1816 = vand.u32 2147483647, %v1815
      %v1818 = vcvt.s32.f32 %v1811
      %v1819 = vmul.f32 %v1818, %v1816
      %v1820 = vxor.u32 %v1819, 2147483648
      %v1821 = vsel %vm1738, %v1820, %v1819
      %v1822 = vsub.s32 4, %v1798
      %v1823 = vsel %vm1738, %v1822, %v1798
      %v1824 = vsel %vm1737, %v469, %v1821
      %v1825 = vsel %vm1737, 0, %v1823
      %v1826 = vcosq.f32.pop %v1824
      %v1827 = vsinq.f32.pop %v1824
      %vm1828 = vweird.f32 %v469
      %v1829 = vand.u32 %v1825, 3
      %vm1830 = vcmp.lt.s32.totalorder %v1829, 2
      %vm1831 = vcmp.eq.s32.totalorder %v1829, 0
      %v1832 = vxor.u32 %v1827, 2147483648
      %v1833 = vsel %vm1831, %v1826, %v1832
      %vm1834 = vcmp.eq.s32.totalorder %v1829, 2
      %v1835 = vxor.u32 %v1826, 2147483648
      %v1836 = vsel %vm1834, %v1835, %v1827
      %v1837 = vsel %vm1830, %v1833, %v1836
      %v1838 = vsel %vm1828, nan, %v1837
      %v1839 = vand.u32 2147483647, %v470
      %vm1840 = vcmp.le.f32.partialorder %v1839, 0.7853982
      %vm1841 = vcmp.lt.s32.totalorder %v470, 0
      %v1842 = vand.u32 %v470, 2139095040
      %v1843 = vshrl.u32 %v1842, 23
      %v1844 = vsub.s32 %v1843, 127
      %v1845 = vand.u32 2147483647, %v470
      %v1846 = vand.u32 %v1845, 8388607
      %v1847 = vor.u32 %v1846, 8388608
      %v1848 = vsub.s32 0, %v1847
      %v1849 = vadd.s32 %v1844, 1
      %vm1850 = vcmp.gt.s32.totalorder %v1849, 0
      %v1851 = vsel %vm1850, %v1849, 0
      %v1852 = vshrl.u32 %v1851, 5
      %v1853 = vand.u32 %v1851, 31
      %v1854 = vsub.s32 32, %v1853
      %v1855 = vshrl.u32 683565275, %v1854
      %v1856 = vshll.u32 683565275, %v1853
      %v1857 = vshrl.u32 2475754826, %v1854
      %v1858 = vor.u32 %v1856, %v1857
      %v1859 = vshll.u32 2475754826, %v1853
      %v1860 = vshrl.u32 2131351028, %v1854
      %v1861 = vor.u32 %v1859, %v1860
      %v1862 = vshll.u32 2131351028, %v1853
      %v1863 = vshrl.u32 2102212464, %v1854
      %v1864 = vor.u32 %v1862, %v1863
      %v1865 = vshll.u32 2102212464, %v1853
      %v1866 = vshrl.u32 920167782, %v1854
      %v1867 = vor.u32 %v1865, %v1866
      %v1868 = vshll.u32 920167782, %v1853
      %v1869 = vshrl.u32 1326507024, %v1854
      %v1870 = vor.u32 %v1868, %v1869
      %vm1871 = vcmp.lt.s32.totalorder %v1852, 1
      %vm1872 = vcmp.lt.s32.totalorder %v1852, 2
      %vm1873 = vcmp.lt.s32.totalorder %v1852, 3
      %vm1874 = vcmp.lt.s32.totalorder %v1852, 4
      %v1875 = vsel %vm1871, %v1855, %v1858
      %v1876 = vsel %vm1874, %v1864, 2102212464
      %v1877 = vsel %vm1873, %v1861, %v1876
      %v1878 = vsel %vm1872, %v1875, %v1877
      %v1879 = vsel %vm1871, %v1858, %v1861
      %v1880 = vsel %vm1874, %v1867, 920167782
      %v1881 = vsel %vm1873, %v1864, %v1880
      %v1882 = vsel %vm1872, %v1879, %v1881
      %v1883 = vsel %vm1871, %v1861, %v1864
      %v1884 = vsel %vm1874, %v1870, 1326507024
      %v1885 = vsel %vm1873, %v1867, %v1884
      %v1886 = vsel %vm1872, %v1883, %v1885
      %v1887 = vshll.u32 %v1847, 8
      %v1888 = vmul.u32.u64.compose %v1887, %v1886
      %v1889 = vextract.low.u32 %v1888
      %v1890 = vextract.high.u32 %v1888
      %v1891 = vmul.u32.u64.compose %v1887, %v1882
      %v1892 = vextract.low.u32 %v1891
      %v1893 = vextract.high.u32 %v1891
      %v1894 = vmul.u32 %v1887, %v1878
      %v1895 = vadd.s32 %v1890, %v1892
      %vm1896 = vc.u32 %v1890, %v1892
      %v1897 = vadd.s32 %v1893, 1
      %v1898 = vsel %vm1896, %v1897, %v1893
      %v1899 = vadd.s32 %v1894, %v1898
      %v1900 = vadd.s32 %v1899, 536870912
      %v1901 = vshrl.u32 %v1900, 30
      %v1902 = vshll.u32 %v1901, 30
      %v1903 = vsub.s32 %v1899, %v1902
      %vm1904 = vcmp.lt.s32.totalorder %v1903, 0
      %v1905 = vsub.s32 0, %v1903
      %v1906 = vsel %vm1904, %v1905, %v1903
      %v1907 = vclz %v1906
      %v1908 = vsub.s32 %v1907, 2
      %vm1909 = vcmp.gt.s32.totalorder 0, %v1908
      %v1910 = vsel %vm1909, 0, %v1908
      %v1911 = vsub.s32 32, %v1910
      %v1912 = vshll.u32 %v1903, %v1910
      %v1913 = vshrl.u32 %v1895, %v1911
      %v1914 = vor.u32 %v1912, %v1913
      %v1915 = vsub.s32 4294967266, %v1910
      %v1916 = vadd.s32 %v1915, 127
      %v1917 = vshll.u32 %v1916, 23
      %v1918 = vor.u32 4788187, %v1917
      %v1919 = vand.u32 2147483647, %v1918
      %v1921 = vcvt.s32.f32 %v1914
      %v1922 = vmul.f32 %v1921, %v1919
      %v1923 = vxor.u32 %v1922, 2147483648
      %v1924 = vsel %vm1841, %v1923, %v1922
      %v1925 = vsub.s32 4, %v1901
      %v1926 = vsel %vm1841, %v1925, %v1901
      %v1927 = vsel %vm1840, %v470, %v1924
      %v1928 = vsel %vm1840, 0, %v1926
      %v1929 = vcosq.f32.pop %v1927
      %v1930 = vsinq.f32.pop %v1927
      %vm1931 = vweird.f32 %v470
      %v1932 = vand.u32 %v1928, 3
      %vm1933 = vcmp.lt.s32.totalorder %v1932, 2
      %vm1934 = vcmp.eq.s32.totalorder %v1932, 0
      %v1935 = vxor.u32 %v1930, 2147483648
      %v1936 = vsel %vm1934, %v1929, %v1935
      %vm1937 = vcmp.eq.s32.totalorder %v1932, 2
      %v1938 = vxor.u32 %v1929, 2147483648
      %v1939 = vsel %vm1937, %v1938, %v1930
      %v1940 = vsel %vm1933, %v1936, %v1939
      %v1941 = vsel %vm1931, nan, %v1940
      %v1942 = vand.u32 2147483647, %v471
      %vm1943 = vcmp.le.f32.partialorder %v1942, 0.7853982
      %vm1944 = vcmp.lt.s32.totalorder %v471, 0
      %v1945 = vand.u32 %v471, 2139095040
      %v1946 = vshrl.u32 %v1945, 23
      %v1947 = vsub.s32 %v1946, 127
      %v1948 = vand.u32 2147483647, %v471
      %v1949 = vand.u32 %v1948, 8388607
      %v1950 = vor.u32 %v1949, 8388608
      %v1951 = vsub.s32 0, %v1950
      %v1952 = vadd.s32 %v1947, 1
      %vm1953 = vcmp.gt.s32.totalorder %v1952, 0
      %v1954 = vsel %vm1953, %v1952, 0
      %v1955 = vshrl.u32 %v1954, 5
      %v1956 = vand.u32 %v1954, 31
      %v1957 = vsub.s32 32, %v1956
      %v1958 = vshrl.u32 683565275, %v1957
      %v1959 = vshll.u32 683565275, %v1956
      %v1960 = vshrl.u32 2475754826, %v1957
      %v1961 = vor.u32 %v1959, %v1960
      %v1962 = vshll.u32 2475754826, %v1956
      %v1963 = vshrl.u32 2131351028, %v1957
      %v1964 = vor.u32 %v1962, %v1963
      %v1965 = vshll.u32 2131351028, %v1956
      %v1966 = vshrl.u32 2102212464, %v1957
      %v1967 = vor.u32 %v1965, %v1966
      %v1968 = vshll.u32 2102212464, %v1956
      %v1969 = vshrl.u32 920167782, %v1957
      %v1970 = vor.u32 %v1968, %v1969
      %v1971 = vshll.u32 920167782, %v1956
      %v1972 = vshrl.u32 1326507024, %v1957
      %v1973 = vor.u32 %v1971, %v1972
      %vm1974 = vcmp.lt.s32.totalorder %v1955, 1
      %vm1975 = vcmp.lt.s32.totalorder %v1955, 2
      %vm1976 = vcmp.lt.s32.totalorder %v1955, 3
      %vm1977 = vcmp.lt.s32.totalorder %v1955, 4
      %v1978 = vsel %vm1974, %v1958, %v1961
      %v1979 = vsel %vm1977, %v1967, 2102212464
      %v1980 = vsel %vm1976, %v1964, %v1979
      %v1981 = vsel %vm1975, %v1978, %v1980
      %v1982 = vsel %vm1974, %v1961, %v1964
      %v1983 = vsel %vm1977, %v1970, 920167782
      %v1984 = vsel %vm1976, %v1967, %v1983
      %v1985 = vsel %vm1975, %v1982, %v1984
      %v1986 = vsel %vm1974, %v1964, %v1967
      %v1987 = vsel %vm1977, %v1973, 1326507024
      %v1988 = vsel %vm1976, %v1970, %v1987
      %v1989 = vsel %vm1975, %v1986, %v1988
      %v1990 = vshll.u32 %v1950, 8
      %v1991 = vmul.u32.u64.compose %v1990, %v1989
      %v1992 = vextract.low.u32 %v1991
      %v1993 = vextract.high.u32 %v1991
      %v1994 = vmul.u32.u64.compose %v1990, %v1985
      %v1995 = vextract.low.u32 %v1994
      %v1996 = vextract.high.u32 %v1994
      %v1997 = vmul.u32 %v1990, %v1981
      %v1998 = vadd.s32 %v1993, %v1995
      %vm1999 = vc.u32 %v1993, %v1995
      %v2000 = vadd.s32 %v1996, 1
      %v2001 = vsel %vm1999, %v2000, %v1996
      %v2002 = vadd.s32 %v1997, %v2001
      %v2003 = vadd.s32 %v2002, 536870912
      %v2004 = vshrl.u32 %v2003, 30
      %v2005 = vshll.u32 %v2004, 30
      %v2006 = vsub.s32 %v2002, %v2005
      %vm2007 = vcmp.lt.s32.totalorder %v2006, 0
      %v2008 = vsub.s32 0, %v2006
      %v2009 = vsel %vm2007, %v2008, %v2006
      %v2010 = vclz %v2009
      %v2011 = vsub.s32 %v2010, 2
      %vm2012 = vcmp.gt.s32.totalorder 0, %v2011
      %v2013 = vsel %vm2012, 0, %v2011
      %v2014 = vsub.s32 32, %v2013
      %v2015 = vshll.u32 %v2006, %v2013
      %v2016 = vshrl.u32 %v1998, %v2014
      %v2017 = vor.u32 %v2015, %v2016
      %v2018 = vsub.s32 4294967266, %v2013
      %v2019 = vadd.s32 %v2018, 127
      %v2020 = vshll.u32 %v2019, 23
      %v2021 = vor.u32 4788187, %v2020
      %v2022 = vand.u32 2147483647, %v2021
      %v2024 = vcvt.s32.f32 %v2017
      %v2025 = vmul.f32 %v2024, %v2022
      %v2026 = vxor.u32 %v2025, 2147483648
      %v2027 = vsel %vm1944, %v2026, %v2025
      %v2028 = vsub.s32 4, %v2004
      %v2029 = vsel %vm1944, %v2028, %v2004
      %v2030 = vsel %vm1943, %v471, %v2027
      %v2031 = vsel %vm1943, 0, %v2029
      %v2032 = vcosq.f32.pop %v2030
      %v2033 = vsinq.f32.pop %v2030
      %vm2034 = vweird.f32 %v471
      %v2035 = vand.u32 %v2031, 3
      %vm2036 = vcmp.lt.s32.totalorder %v2035, 2
      %vm2037 = vcmp.eq.s32.totalorder %v2035, 0
      %v2038 = vxor.u32 %v2033, 2147483648
      %v2039 = vsel %vm2037, %v2032, %v2038
      %vm2040 = vcmp.eq.s32.totalorder %v2035, 2
      %v2041 = vxor.u32 %v2032, 2147483648
      %v2042 = vsel %vm2040, %v2041, %v2033
      %v2043 = vsel %vm2036, %v2039, %v2042
      %v2044 = vsel %vm2034, nan, %v2043
      %v2045 = vand.u32 2147483647, %v472
      %vm2046 = vcmp.le.f32.partialorder %v2045, 0.7853982
      %vm2047 = vcmp.lt.s32.totalorder %v472, 0
      %v2048 = vand.u32 %v472, 2139095040
      %v2049 = vshrl.u32 %v2048, 23
      %v2050 = vsub.s32 %v2049, 127
      %v2051 = vand.u32 2147483647, %v472
      %v2052 = vand.u32 %v2051, 8388607
      %v2053 = vor.u32 %v2052, 8388608
      %v2054 = vsub.s32 0, %v2053
      %v2055 = vadd.s32 %v2050, 1
      %vm2056 = vcmp.gt.s32.totalorder %v2055, 0
      %v2057 = vsel %vm2056, %v2055, 0
      %v2058 = vshrl.u32 %v2057, 5
      %v2059 = vand.u32 %v2057, 31
      %v2060 = vsub.s32 32, %v2059
      %v2061 = vshrl.u32 683565275, %v2060
      %v2062 = vshll.u32 683565275, %v2059
      %v2063 = vshrl.u32 2475754826, %v2060
      %v2064 = vor.u32 %v2062, %v2063
      %v2065 = vshll.u32 2475754826, %v2059
      %v2066 = vshrl.u32 2131351028, %v2060
      %v2067 = vor.u32 %v2065, %v2066
      %v2068 = vshll.u32 2131351028, %v2059
      %v2069 = vshrl.u32 2102212464, %v2060
      %v2070 = vor.u32 %v2068, %v2069
      %v2071 = vshll.u32 2102212464, %v2059
      %v2072 = vshrl.u32 920167782, %v2060
      %v2073 = vor.u32 %v2071, %v2072
      %v2074 = vshll.u32 920167782, %v2059
      %v2075 = vshrl.u32 1326507024, %v2060
      %v2076 = vor.u32 %v2074, %v2075
      %vm2077 = vcmp.lt.s32.totalorder %v2058, 1
      %vm2078 = vcmp.lt.s32.totalorder %v2058, 2
      %vm2079 = vcmp.lt.s32.totalorder %v2058, 3
      %vm2080 = vcmp.lt.s32.totalorder %v2058, 4
      %v2081 = vsel %vm2077, %v2061, %v2064
      %v2082 = vsel %vm2080, %v2070, 2102212464
      %v2083 = vsel %vm2079, %v2067, %v2082
      %v2084 = vsel %vm2078, %v2081, %v2083
      %v2085 = vsel %vm2077, %v2064, %v2067
      %v2086 = vsel %vm2080, %v2073, 920167782
      %v2087 = vsel %vm2079, %v2070, %v2086
      %v2088 = vsel %vm2078, %v2085, %v2087
      %v2089 = vsel %vm2077, %v2067, %v2070
      %v2090 = vsel %vm2080, %v2076, 1326507024
      %v2091 = vsel %vm2079, %v2073, %v2090
      %v2092 = vsel %vm2078, %v2089, %v2091
      %v2093 = vshll.u32 %v2053, 8
      %v2094 = vmul.u32.u64.compose %v2093, %v2092
      %v2095 = vextract.low.u32 %v2094
      %v2096 = vextract.high.u32 %v2094
      %v2097 = vmul.u32.u64.compose %v2093, %v2088
      %v2098 = vextract.low.u32 %v2097
      %v2099 = vextract.high.u32 %v2097
      %v2100 = vmul.u32 %v2093, %v2084
      %v2101 = vadd.s32 %v2096, %v2098
      %vm2102 = vc.u32 %v2096, %v2098
      %v2103 = vadd.s32 %v2099, 1
      %v2104 = vsel %vm2102, %v2103, %v2099
      %v2105 = vadd.s32 %v2100, %v2104
      %v2106 = vadd.s32 %v2105, 536870912
      %v2107 = vshrl.u32 %v2106, 30
      %v2108 = vshll.u32 %v2107, 30
      %v2109 = vsub.s32 %v2105, %v2108
      %vm2110 = vcmp.lt.s32.totalorder %v2109, 0
      %v2111 = vsub.s32 0, %v2109
      %v2112 = vsel %vm2110, %v2111, %v2109
      %v2113 = vclz %v2112
      %v2114 = vsub.s32 %v2113, 2
      %vm2115 = vcmp.gt.s32.totalorder 0, %v2114
      %v2116 = vsel %vm2115, 0, %v2114
      %v2117 = vsub.s32 32, %v2116
      %v2118 = vshll.u32 %v2109, %v2116
      %v2119 = vshrl.u32 %v2101, %v2117
      %v2120 = vor.u32 %v2118, %v2119
      %v2121 = vsub.s32 4294967266, %v2116
      %v2122 = vadd.s32 %v2121, 127
      %v2123 = vshll.u32 %v2122, 23
      %v2124 = vor.u32 4788187, %v2123
      %v2125 = vand.u32 2147483647, %v2124
      %v2127 = vcvt.s32.f32 %v2120
      %v2128 = vmul.f32 %v2127, %v2125
      %v2129 = vxor.u32 %v2128, 2147483648
      %v2130 = vsel %vm2047, %v2129, %v2128
      %v2131 = vsub.s32 4, %v2107
      %v2132 = vsel %vm2047, %v2131, %v2107
      %v2133 = vsel %vm2046, %v472, %v2130
      %v2134 = vsel %vm2046, 0, %v2132
      %v2135 = vcosq.f32.pop %v2133
      %v2136 = vsinq.f32.pop %v2133
      %vm2137 = vweird.f32 %v472
      %v2138 = vand.u32 %v2134, 3
      %vm2139 = vcmp.lt.s32.totalorder %v2138, 2
      %vm2140 = vcmp.eq.s32.totalorder %v2138, 0
      %v2141 = vxor.u32 %v2136, 2147483648
      %v2142 = vsel %vm2140, %v2135, %v2141
      %vm2143 = vcmp.eq.s32.totalorder %v2138, 2
      %v2144 = vxor.u32 %v2135, 2147483648
      %v2145 = vsel %vm2143, %v2144, %v2136
      %v2146 = vsel %vm2139, %v2142, %v2145
      %v2147 = vsel %vm2137, nan, %v2146
      %v2148 = vand.u32 2147483647, %v484
      %vm2149 = vcmp.le.f32.partialorder %v2148, 0.7853982
      %vm2150 = vcmp.lt.s32.totalorder %v484, 0
      %v2151 = vand.u32 %v484, 2139095040
      %v2152 = vshrl.u32 %v2151, 23
      %v2153 = vsub.s32 %v2152, 127
      %v2154 = vand.u32 2147483647, %v484
      %v2155 = vand.u32 %v2154, 8388607
      %v2156 = vor.u32 %v2155, 8388608
      %v2157 = vsub.s32 0, %v2156
      %v2158 = vadd.s32 %v2153, 1
      %vm2159 = vcmp.gt.s32.totalorder %v2158, 0
      %v2160 = vsel %vm2159, %v2158, 0
      %v2161 = vshrl.u32 %v2160, 5
      %v2162 = vand.u32 %v2160, 31
      %v2163 = vsub.s32 32, %v2162
      %v2164 = vshrl.u32 683565275, %v2163
      %v2165 = vshll.u32 683565275, %v2162
      %v2166 = vshrl.u32 2475754826, %v2163
      %v2167 = vor.u32 %v2165, %v2166
      %v2168 = vshll.u32 2475754826, %v2162
      %v2169 = vshrl.u32 2131351028, %v2163
      %v2170 = vor.u32 %v2168, %v2169
      %v2171 = vshll.u32 2131351028, %v2162
      %v2172 = vshrl.u32 2102212464, %v2163
      %v2173 = vor.u32 %v2171, %v2172
      %v2174 = vshll.u32 2102212464, %v2162
      %v2175 = vshrl.u32 920167782, %v2163
      %v2176 = vor.u32 %v2174, %v2175
      %v2177 = vshll.u32 920167782, %v2162
      %v2178 = vshrl.u32 1326507024, %v2163
      %v2179 = vor.u32 %v2177, %v2178
      %vm2180 = vcmp.lt.s32.totalorder %v2161, 1
      %vm2181 = vcmp.lt.s32.totalorder %v2161, 2
      %vm2182 = vcmp.lt.s32.totalorder %v2161, 3
      %vm2183 = vcmp.lt.s32.totalorder %v2161, 4
      %v2184 = vsel %vm2180, %v2164, %v2167
      %v2185 = vsel %vm2183, %v2173, 2102212464
      %v2186 = vsel %vm2182, %v2170, %v2185
      %v2187 = vsel %vm2181, %v2184, %v2186
      %v2188 = vsel %vm2180, %v2167, %v2170
      %v2189 = vsel %vm2183, %v2176, 920167782
      %v2190 = vsel %vm2182, %v2173, %v2189
      %v2191 = vsel %vm2181, %v2188, %v2190
      %v2192 = vsel %vm2180, %v2170, %v2173
      %v2193 = vsel %vm2183, %v2179, 1326507024
      %v2194 = vsel %vm2182, %v2176, %v2193
      %v2195 = vsel %vm2181, %v2192, %v2194
      %v2196 = vshll.u32 %v2156, 8
      %v2197 = vmul.u32.u64.compose %v2196, %v2195
      %v2198 = vextract.low.u32 %v2197
      %v2199 = vextract.high.u32 %v2197
      %v2200 = vmul.u32.u64.compose %v2196, %v2191
      %v2201 = vextract.low.u32 %v2200
      %v2202 = vextract.high.u32 %v2200
      %v2203 = vmul.u32 %v2196, %v2187
      %v2204 = vadd.s32 %v2199, %v2201
      %vm2205 = vc.u32 %v2199, %v2201
      %v2206 = vadd.s32 %v2202, 1
      %v2207 = vsel %vm2205, %v2206, %v2202
      %v2208 = vadd.s32 %v2203, %v2207
      %v2209 = vadd.s32 %v2208, 536870912
      %v2210 = vshrl.u32 %v2209, 30
      %v2211 = vshll.u32 %v2210, 30
      %v2212 = vsub.s32 %v2208, %v2211
      %vm2213 = vcmp.lt.s32.totalorder %v2212, 0
      %v2214 = vsub.s32 0, %v2212
      %v2215 = vsel %vm2213, %v2214, %v2212
      %v2216 = vclz %v2215
      %v2217 = vsub.s32 %v2216, 2
      %vm2218 = vcmp.gt.s32.totalorder 0, %v2217
      %v2219 = vsel %vm2218, 0, %v2217
      %v2220 = vsub.s32 32, %v2219
      %v2221 = vshll.u32 %v2212, %v2219
      %v2222 = vshrl.u32 %v2204, %v2220
      %v2223 = vor.u32 %v2221, %v2222
      %v2224 = vsub.s32 4294967266, %v2219
      %v2225 = vadd.s32 %v2224, 127
      %v2226 = vshll.u32 %v2225, 23
      %v2227 = vor.u32 4788187, %v2226
      %v2228 = vand.u32 2147483647, %v2227
      %v2230 = vcvt.s32.f32 %v2223
      %v2231 = vmul.f32 %v2230, %v2228
      %v2232 = vxor.u32 %v2231, 2147483648
      %v2233 = vsel %vm2150, %v2232, %v2231
      %v2234 = vsub.s32 4, %v2210
      %v2235 = vsel %vm2150, %v2234, %v2210
      %v2236 = vsel %vm2149, %v484, %v2233
      %v2237 = vsel %vm2149, 0, %v2235
      %v2238 = vcosq.f32.pop %v2236
      %v2239 = vsinq.f32.pop %v2236
      %vm2240 = vweird.f32 %v484
      %v2241 = vand.u32 %v2237, 3
      %vm2242 = vcmp.lt.s32.totalorder %v2241, 2
      %vm2243 = vcmp.eq.s32.totalorder %v2241, 0
      %v2244 = vxor.u32 %v2239, 2147483648
      %v2245 = vsel %vm2243, %v2238, %v2244
      %vm2246 = vcmp.eq.s32.totalorder %v2241, 2
      %v2247 = vxor.u32 %v2238, 2147483648
      %v2248 = vsel %vm2246, %v2247, %v2239
      %v2249 = vsel %vm2242, %v2245, %v2248
      %v2250 = vsel %vm2240, nan, %v2249
      %v2251 = vand.u32 2147483647, %v485
      %vm2252 = vcmp.le.f32.partialorder %v2251, 0.7853982
      %vm2253 = vcmp.lt.s32.totalorder %v485, 0
      %v2254 = vand.u32 %v485, 2139095040
      %v2255 = vshrl.u32 %v2254, 23
      %v2256 = vsub.s32 %v2255, 127
      %v2257 = vand.u32 2147483647, %v485
      %v2258 = vand.u32 %v2257, 8388607
      %v2259 = vor.u32 %v2258, 8388608
      %v2260 = vsub.s32 0, %v2259
      %v2261 = vadd.s32 %v2256, 1
      %vm2262 = vcmp.gt.s32.totalorder %v2261, 0
      %v2263 = vsel %vm2262, %v2261, 0
      %v2264 = vshrl.u32 %v2263, 5
      %v2265 = vand.u32 %v2263, 31
      %v2266 = vsub.s32 32, %v2265
      %v2267 = vshrl.u32 683565275, %v2266
      %v2268 = vshll.u32 683565275, %v2265
      %v2269 = vshrl.u32 2475754826, %v2266
      %v2270 = vor.u32 %v2268, %v2269
      %v2271 = vshll.u32 2475754826, %v2265
      %v2272 = vshrl.u32 2131351028, %v2266
      %v2273 = vor.u32 %v2271, %v2272
      %v2274 = vshll.u32 2131351028, %v2265
      %v2275 = vshrl.u32 2102212464, %v2266
      %v2276 = vor.u32 %v2274, %v2275
      %v2277 = vshll.u32 2102212464, %v2265
      %v2278 = vshrl.u32 920167782, %v2266
      %v2279 = vor.u32 %v2277, %v2278
      %v2280 = vshll.u32 920167782, %v2265
      %v2281 = vshrl.u32 1326507024, %v2266
      %v2282 = vor.u32 %v2280, %v2281
      %vm2283 = vcmp.lt.s32.totalorder %v2264, 1
      %vm2284 = vcmp.lt.s32.totalorder %v2264, 2
      %vm2285 = vcmp.lt.s32.totalorder %v2264, 3
      %vm2286 = vcmp.lt.s32.totalorder %v2264, 4
      %v2287 = vsel %vm2283, %v2267, %v2270
      %v2288 = vsel %vm2286, %v2276, 2102212464
      %v2289 = vsel %vm2285, %v2273, %v2288
      %v2290 = vsel %vm2284, %v2287, %v2289
      %v2291 = vsel %vm2283, %v2270, %v2273
      %v2292 = vsel %vm2286, %v2279, 920167782
      %v2293 = vsel %vm2285, %v2276, %v2292
      %v2294 = vsel %vm2284, %v2291, %v2293
      %v2295 = vsel %vm2283, %v2273, %v2276
      %v2296 = vsel %vm2286, %v2282, 1326507024
      %v2297 = vsel %vm2285, %v2279, %v2296
      %v2298 = vsel %vm2284, %v2295, %v2297
      %v2299 = vshll.u32 %v2259, 8
      %v2300 = vmul.u32.u64.compose %v2299, %v2298
      %v2301 = vextract.low.u32 %v2300
      %v2302 = vextract.high.u32 %v2300
      %v2303 = vmul.u32.u64.compose %v2299, %v2294
      %v2304 = vextract.low.u32 %v2303
      %v2305 = vextract.high.u32 %v2303
      %v2306 = vmul.u32 %v2299, %v2290
      %v2307 = vadd.s32 %v2302, %v2304
      %vm2308 = vc.u32 %v2302, %v2304
      %v2309 = vadd.s32 %v2305, 1
      %v2310 = vsel %vm2308, %v2309, %v2305
      %v2311 = vadd.s32 %v2306, %v2310
      %v2312 = vadd.s32 %v2311, 536870912
      %v2313 = vshrl.u32 %v2312, 30
      %v2314 = vshll.u32 %v2313, 30
      %v2315 = vsub.s32 %v2311, %v2314
      %vm2316 = vcmp.lt.s32.totalorder %v2315, 0
      %v2317 = vsub.s32 0, %v2315
      %v2318 = vsel %vm2316, %v2317, %v2315
      %v2319 = vclz %v2318
      %v2320 = vsub.s32 %v2319, 2
      %vm2321 = vcmp.gt.s32.totalorder 0, %v2320
      %v2322 = vsel %vm2321, 0, %v2320
      %v2323 = vsub.s32 32, %v2322
      %v2324 = vshll.u32 %v2315, %v2322
      %v2325 = vshrl.u32 %v2307, %v2323
      %v2326 = vor.u32 %v2324, %v2325
      %v2327 = vsub.s32 4294967266, %v2322
      %v2328 = vadd.s32 %v2327, 127
      %v2329 = vshll.u32 %v2328, 23
      %v2330 = vor.u32 4788187, %v2329
      %v2331 = vand.u32 2147483647, %v2330
      %v2333 = vcvt.s32.f32 %v2326
      %v2334 = vmul.f32 %v2333, %v2331
      %v2335 = vxor.u32 %v2334, 2147483648
      %v2336 = vsel %vm2253, %v2335, %v2334
      %v2337 = vsub.s32 4, %v2313
      %v2338 = vsel %vm2253, %v2337, %v2313
      %v2339 = vsel %vm2252, %v485, %v2336
      %v2340 = vsel %vm2252, 0, %v2338
      %v2341 = vcosq.f32.pop %v2339
      %v2342 = vsinq.f32.pop %v2339
      %vm2343 = vweird.f32 %v485
      %v2344 = vand.u32 %v2340, 3
      %vm2345 = vcmp.lt.s32.totalorder %v2344, 2
      %vm2346 = vcmp.eq.s32.totalorder %v2344, 0
      %v2347 = vxor.u32 %v2342, 2147483648
      %v2348 = vsel %vm2346, %v2341, %v2347
      %vm2349 = vcmp.eq.s32.totalorder %v2344, 2
      %v2350 = vxor.u32 %v2341, 2147483648
      %v2351 = vsel %vm2349, %v2350, %v2342
      %v2352 = vsel %vm2345, %v2348, %v2351
      %v2353 = vsel %vm2343, nan, %v2352
      %v2354 = vand.u32 2147483647, %v486
      %vm2355 = vcmp.le.f32.partialorder %v2354, 0.7853982
      %vm2356 = vcmp.lt.s32.totalorder %v486, 0
      %v2357 = vand.u32 %v486, 2139095040
      %v2358 = vshrl.u32 %v2357, 23
      %v2359 = vsub.s32 %v2358, 127
      %v2360 = vand.u32 2147483647, %v486
      %v2361 = vand.u32 %v2360, 8388607
      %v2362 = vor.u32 %v2361, 8388608
      %v2363 = vsub.s32 0, %v2362
      %v2364 = vadd.s32 %v2359, 1
      %vm2365 = vcmp.gt.s32.totalorder %v2364, 0
      %v2366 = vsel %vm2365, %v2364, 0
      %v2367 = vshrl.u32 %v2366, 5
      %v2368 = vand.u32 %v2366, 31
      %v2369 = vsub.s32 32, %v2368
      %v2370 = vshrl.u32 683565275, %v2369
      %v2371 = vshll.u32 683565275, %v2368
      %v2372 = vshrl.u32 2475754826, %v2369
      %v2373 = vor.u32 %v2371, %v2372
      %v2374 = vshll.u32 2475754826, %v2368
      %v2375 = vshrl.u32 2131351028, %v2369
      %v2376 = vor.u32 %v2374, %v2375
      %v2377 = vshll.u32 2131351028, %v2368
      %v2378 = vshrl.u32 2102212464, %v2369
      %v2379 = vor.u32 %v2377, %v2378
      %v2380 = vshll.u32 2102212464, %v2368
      %v2381 = vshrl.u32 920167782, %v2369
      %v2382 = vor.u32 %v2380, %v2381
      %v2383 = vshll.u32 920167782, %v2368
      %v2384 = vshrl.u32 1326507024, %v2369
      %v2385 = vor.u32 %v2383, %v2384
      %vm2386 = vcmp.lt.s32.totalorder %v2367, 1
      %vm2387 = vcmp.lt.s32.totalorder %v2367, 2
      %vm2388 = vcmp.lt.s32.totalorder %v2367, 3
      %vm2389 = vcmp.lt.s32.totalorder %v2367, 4
      %v2390 = vsel %vm2386, %v2370, %v2373
      %v2391 = vsel %vm2389, %v2379, 2102212464
      %v2392 = vsel %vm2388, %v2376, %v2391
      %v2393 = vsel %vm2387, %v2390, %v2392
      %v2394 = vsel %vm2386, %v2373, %v2376
      %v2395 = vsel %vm2389, %v2382, 920167782
      %v2396 = vsel %vm2388, %v2379, %v2395
      %v2397 = vsel %vm2387, %v2394, %v2396
      %v2398 = vsel %vm2386, %v2376, %v2379
      %v2399 = vsel %vm2389, %v2385, 1326507024
      %v2400 = vsel %vm2388, %v2382, %v2399
      %v2401 = vsel %vm2387, %v2398, %v2400
      %v2402 = vshll.u32 %v2362, 8
      %v2403 = vmul.u32.u64.compose %v2402, %v2401
      %v2404 = vextract.low.u32 %v2403
      %v2405 = vextract.high.u32 %v2403
      %v2406 = vmul.u32.u64.compose %v2402, %v2397
      %v2407 = vextract.low.u32 %v2406
      %v2408 = vextract.high.u32 %v2406
      %v2409 = vmul.u32 %v2402, %v2393
      %v2410 = vadd.s32 %v2405, %v2407
      %vm2411 = vc.u32 %v2405, %v2407
      %v2412 = vadd.s32 %v2408, 1
      %v2413 = vsel %vm2411, %v2412, %v2408
      %v2414 = vadd.s32 %v2409, %v2413
      %v2415 = vadd.s32 %v2414, 536870912
      %v2416 = vshrl.u32 %v2415, 30
      %v2417 = vshll.u32 %v2416, 30
      %v2418 = vsub.s32 %v2414, %v2417
      %vm2419 = vcmp.lt.s32.totalorder %v2418, 0
      %v2420 = vsub.s32 0, %v2418
      %v2421 = vsel %vm2419, %v2420, %v2418
      %v2422 = vclz %v2421
      %v2423 = vsub.s32 %v2422, 2
      %vm2424 = vcmp.gt.s32.totalorder 0, %v2423
      %v2425 = vsel %vm2424, 0, %v2423
      %v2426 = vsub.s32 32, %v2425
      %v2427 = vshll.u32 %v2418, %v2425
      %v2428 = vshrl.u32 %v2410, %v2426
      %v2429 = vor.u32 %v2427, %v2428
      %v2430 = vsub.s32 4294967266, %v2425
      %v2431 = vadd.s32 %v2430, 127
      %v2432 = vshll.u32 %v2431, 23
      %v2433 = vor.u32 4788187, %v2432
      %v2434 = vand.u32 2147483647, %v2433
      %v2436 = vcvt.s32.f32 %v2429
      %v2437 = vmul.f32 %v2436, %v2434
      %v2438 = vxor.u32 %v2437, 2147483648
      %v2439 = vsel %vm2356, %v2438, %v2437
      %v2440 = vsub.s32 4, %v2416
      %v2441 = vsel %vm2356, %v2440, %v2416
      %v2442 = vsel %vm2355, %v486, %v2439
      %v2443 = vsel %vm2355, 0, %v2441
      %v2444 = vcosq.f32.pop %v2442
      %v2445 = vsinq.f32.pop %v2442
      %vm2446 = vweird.f32 %v486
      %v2447 = vand.u32 %v2443, 3
      %vm2448 = vcmp.lt.s32.totalorder %v2447, 2
      %vm2449 = vcmp.eq.s32.totalorder %v2447, 0
      %v2450 = vxor.u32 %v2445, 2147483648
      %v2451 = vsel %vm2449, %v2444, %v2450
      %vm2452 = vcmp.eq.s32.totalorder %v2447, 2
      %v2453 = vxor.u32 %v2444, 2147483648
      %v2454 = vsel %vm2452, %v2453, %v2445
      %v2455 = vsel %vm2448, %v2451, %v2454
      %v2456 = vsel %vm2446, nan, %v2455
      %v2457 = vand.u32 2147483647, %v487
      %vm2458 = vcmp.le.f32.partialorder %v2457, 0.7853982
      %vm2459 = vcmp.lt.s32.totalorder %v487, 0
      %v2460 = vand.u32 %v487, 2139095040
      %v2461 = vshrl.u32 %v2460, 23
      %v2462 = vsub.s32 %v2461, 127
      %v2463 = vand.u32 2147483647, %v487
      %v2464 = vand.u32 %v2463, 8388607
      %v2465 = vor.u32 %v2464, 8388608
      %v2466 = vsub.s32 0, %v2465
      %v2467 = vadd.s32 %v2462, 1
      %vm2468 = vcmp.gt.s32.totalorder %v2467, 0
      %v2469 = vsel %vm2468, %v2467, 0
      %v2470 = vshrl.u32 %v2469, 5
      %v2471 = vand.u32 %v2469, 31
      %v2472 = vsub.s32 32, %v2471
      %v2473 = vshrl.u32 683565275, %v2472
      %v2474 = vshll.u32 683565275, %v2471
      %v2475 = vshrl.u32 2475754826, %v2472
      %v2476 = vor.u32 %v2474, %v2475
      %v2477 = vshll.u32 2475754826, %v2471
      %v2478 = vshrl.u32 2131351028, %v2472
      %v2479 = vor.u32 %v2477, %v2478
      %v2480 = vshll.u32 2131351028, %v2471
      %v2481 = vshrl.u32 2102212464, %v2472
      %v2482 = vor.u32 %v2480, %v2481
      %v2483 = vshll.u32 2102212464, %v2471
      %v2484 = vshrl.u32 920167782, %v2472
      %v2485 = vor.u32 %v2483, %v2484
      %v2486 = vshll.u32 920167782, %v2471
      %v2487 = vshrl.u32 1326507024, %v2472
      %v2488 = vor.u32 %v2486, %v2487
      %vm2489 = vcmp.lt.s32.totalorder %v2470, 1
      %vm2490 = vcmp.lt.s32.totalorder %v2470, 2
      %vm2491 = vcmp.lt.s32.totalorder %v2470, 3
      %vm2492 = vcmp.lt.s32.totalorder %v2470, 4
      %v2493 = vsel %vm2489, %v2473, %v2476
      %v2494 = vsel %vm2492, %v2482, 2102212464
      %v2495 = vsel %vm2491, %v2479, %v2494
      %v2496 = vsel %vm2490, %v2493, %v2495
      %v2497 = vsel %vm2489, %v2476, %v2479
      %v2498 = vsel %vm2492, %v2485, 920167782
      %v2499 = vsel %vm2491, %v2482, %v2498
      %v2500 = vsel %vm2490, %v2497, %v2499
      %v2501 = vsel %vm2489, %v2479, %v2482
      %v2502 = vsel %vm2492, %v2488, 1326507024
      %v2503 = vsel %vm2491, %v2485, %v2502
      %v2504 = vsel %vm2490, %v2501, %v2503
      %v2505 = vshll.u32 %v2465, 8
      %v2506 = vmul.u32.u64.compose %v2505, %v2504
      %v2507 = vextract.low.u32 %v2506
      %v2508 = vextract.high.u32 %v2506
      %v2509 = vmul.u32.u64.compose %v2505, %v2500
      %v2510 = vextract.low.u32 %v2509
      %v2511 = vextract.high.u32 %v2509
      %v2512 = vmul.u32 %v2505, %v2496
      %v2513 = vadd.s32 %v2508, %v2510
      %vm2514 = vc.u32 %v2508, %v2510
      %v2515 = vadd.s32 %v2511, 1
      %v2516 = vsel %vm2514, %v2515, %v2511
      %v2517 = vadd.s32 %v2512, %v2516
      %v2518 = vadd.s32 %v2517, 536870912
      %v2519 = vshrl.u32 %v2518, 30
      %v2520 = vshll.u32 %v2519, 30
      %v2521 = vsub.s32 %v2517, %v2520
      %vm2522 = vcmp.lt.s32.totalorder %v2521, 0
      %v2523 = vsub.s32 0, %v2521
      %v2524 = vsel %vm2522, %v2523, %v2521
      %v2525 = vclz %v2524
      %v2526 = vsub.s32 %v2525, 2
      %vm2527 = vcmp.gt.s32.totalorder 0, %v2526
      %v2528 = vsel %vm2527, 0, %v2526
      %v2529 = vsub.s32 32, %v2528
      %v2530 = vshll.u32 %v2521, %v2528
      %v2531 = vshrl.u32 %v2513, %v2529
      %v2532 = vor.u32 %v2530, %v2531
      %v2533 = vsub.s32 4294967266, %v2528
      %v2534 = vadd.s32 %v2533, 127
      %v2535 = vshll.u32 %v2534, 23
      %v2536 = vor.u32 4788187, %v2535
      %v2537 = vand.u32 2147483647, %v2536
      %v2539 = vcvt.s32.f32 %v2532
      %v2540 = vmul.f32 %v2539, %v2537
      %v2541 = vxor.u32 %v2540, 2147483648
      %v2542 = vsel %vm2459, %v2541, %v2540
      %v2543 = vsub.s32 4, %v2519
      %v2544 = vsel %vm2459, %v2543, %v2519
      %v2545 = vsel %vm2458, %v487, %v2542
      %v2546 = vsel %vm2458, 0, %v2544
      %v2547 = vcosq.f32.pop %v2545
      %v2548 = vsinq.f32.pop %v2545
      %vm2549 = vweird.f32 %v487
      %v2550 = vand.u32 %v2546, 3
      %vm2551 = vcmp.lt.s32.totalorder %v2550, 2
      %vm2552 = vcmp.eq.s32.totalorder %v2550, 0
      %v2553 = vxor.u32 %v2548, 2147483648
      %v2554 = vsel %vm2552, %v2547, %v2553
      %vm2555 = vcmp.eq.s32.totalorder %v2550, 2
      %v2556 = vxor.u32 %v2547, 2147483648
      %v2557 = vsel %vm2555, %v2556, %v2548
      %v2558 = vsel %vm2551, %v2554, %v2557
      %v2559 = vsel %vm2549, nan, %v2558
      %v2560 = vand.u32 2147483647, %v455
      %vm2561 = vcmp.le.f32.partialorder %v2560, 0.7853982
      %vm2562 = vcmp.lt.s32.totalorder %v455, 0
      %v2563 = vand.u32 %v455, 2139095040
      %v2564 = vshrl.u32 %v2563, 23
      %v2565 = vsub.s32 %v2564, 127
      %v2566 = vand.u32 2147483647, %v455
      %v2567 = vand.u32 %v2566, 8388607
      %v2568 = vor.u32 %v2567, 8388608
      %v2569 = vsub.s32 0, %v2568
      %v2570 = vadd.s32 %v2565, 1
      %vm2571 = vcmp.gt.s32.totalorder %v2570, 0
      %v2572 = vsel %vm2571, %v2570, 0
      %v2573 = vshrl.u32 %v2572, 5
      %v2574 = vand.u32 %v2572, 31
      %v2575 = vsub.s32 32, %v2574
      %v2576 = vshrl.u32 683565275, %v2575
      %v2577 = vshll.u32 683565275, %v2574
      %v2578 = vshrl.u32 2475754826, %v2575
      %v2579 = vor.u32 %v2577, %v2578
      %v2580 = vshll.u32 2475754826, %v2574
      %v2581 = vshrl.u32 2131351028, %v2575
      %v2582 = vor.u32 %v2580, %v2581
      %v2583 = vshll.u32 2131351028, %v2574
      %v2584 = vshrl.u32 2102212464, %v2575
      %v2585 = vor.u32 %v2583, %v2584
      %v2586 = vshll.u32 2102212464, %v2574
      %v2587 = vshrl.u32 920167782, %v2575
      %v2588 = vor.u32 %v2586, %v2587
      %v2589 = vshll.u32 920167782, %v2574
      %v2590 = vshrl.u32 1326507024, %v2575
      %v2591 = vor.u32 %v2589, %v2590
      %vm2592 = vcmp.lt.s32.totalorder %v2573, 1
      %vm2593 = vcmp.lt.s32.totalorder %v2573, 2
      %vm2594 = vcmp.lt.s32.totalorder %v2573, 3
      %vm2595 = vcmp.lt.s32.totalorder %v2573, 4
      %v2596 = vsel %vm2592, %v2576, %v2579
      %v2597 = vsel %vm2595, %v2585, 2102212464
      %v2598 = vsel %vm2594, %v2582, %v2597
      %v2599 = vsel %vm2593, %v2596, %v2598
      %v2600 = vsel %vm2592, %v2579, %v2582
      %v2601 = vsel %vm2595, %v2588, 920167782
      %v2602 = vsel %vm2594, %v2585, %v2601
      %v2603 = vsel %vm2593, %v2600, %v2602
      %v2604 = vsel %vm2592, %v2582, %v2585
      %v2605 = vsel %vm2595, %v2591, 1326507024
      %v2606 = vsel %vm2594, %v2588, %v2605
      %v2607 = vsel %vm2593, %v2604, %v2606
      %v2608 = vshll.u32 %v2568, 8
      %v2609 = vmul.u32.u64.compose %v2608, %v2607
      %v2610 = vextract.low.u32 %v2609
      %v2611 = vextract.high.u32 %v2609
      %v2612 = vmul.u32.u64.compose %v2608, %v2603
      %v2613 = vextract.low.u32 %v2612
      %v2614 = vextract.high.u32 %v2612
      %v2615 = vmul.u32 %v2608, %v2599
      %v2616 = vadd.s32 %v2611, %v2613
      %vm2617 = vc.u32 %v2611, %v2613
      %v2618 = vadd.s32 %v2614, 1
      %v2619 = vsel %vm2617, %v2618, %v2614
      %v2620 = vadd.s32 %v2615, %v2619
      %v2621 = vadd.s32 %v2620, 536870912
      %v2622 = vshrl.u32 %v2621, 30
      %v2623 = vshll.u32 %v2622, 30
      %v2624 = vsub.s32 %v2620, %v2623
      %vm2625 = vcmp.lt.s32.totalorder %v2624, 0
      %v2626 = vsub.s32 0, %v2624
      %v2627 = vsel %vm2625, %v2626, %v2624
      %v2628 = vclz %v2627
      %v2629 = vsub.s32 %v2628, 2
      %vm2630 = vcmp.gt.s32.totalorder 0, %v2629
      %v2631 = vsel %vm2630, 0, %v2629
      %v2632 = vsub.s32 32, %v2631
      %v2633 = vshll.u32 %v2624, %v2631
      %v2634 = vshrl.u32 %v2616, %v2632
      %v2635 = vor.u32 %v2633, %v2634
      %v2636 = vsub.s32 4294967266, %v2631
      %v2637 = vadd.s32 %v2636, 127
      %v2638 = vshll.u32 %v2637, 23
      %v2639 = vor.u32 4788187, %v2638
      %v2640 = vand.u32 2147483647, %v2639
      %v2642 = vcvt.s32.f32 %v2635
      %v2643 = vmul.f32 %v2642, %v2640
      %v2644 = vxor.u32 %v2643, 2147483648
      %v2645 = vsel %vm2562, %v2644, %v2643
      %v2646 = vsub.s32 4, %v2622
      %v2647 = vsel %vm2562, %v2646, %v2622
      %v2648 = vsel %vm2561, %v455, %v2645
      %v2649 = vsel %vm2561, 0, %v2647
      %v2650 = vcosq.f32.pop %v2648
      %v2651 = vsinq.f32.pop %v2648
      %vm2652 = vweird.f32 %v455
      %v2653 = vand.u32 %v2649, 3
      %vm2654 = vcmp.lt.s32.totalorder %v2653, 2
      %vm2655 = vcmp.eq.s32.totalorder %v2653, 0
      %v2656 = vxor.u32 %v2651, 2147483648
      %v2657 = vsel %vm2655, %v2650, %v2656
      %vm2658 = vcmp.eq.s32.totalorder %v2653, 2
      %v2659 = vxor.u32 %v2650, 2147483648
      %v2660 = vsel %vm2658, %v2659, %v2651
      %v2661 = vsel %vm2654, %v2657, %v2660
      %v2662 = vsel %vm2652, nan, %v2661
      %v2663 = vand.u32 2147483647, %v456
      %vm2664 = vcmp.le.f32.partialorder %v2663, 0.7853982
      %vm2665 = vcmp.lt.s32.totalorder %v456, 0
      %v2666 = vand.u32 %v456, 2139095040
      %v2667 = vshrl.u32 %v2666, 23
      %v2668 = vsub.s32 %v2667, 127
      %v2669 = vand.u32 2147483647, %v456
      %v2670 = vand.u32 %v2669, 8388607
      %v2671 = vor.u32 %v2670, 8388608
      %v2672 = vsub.s32 0, %v2671
      %v2673 = vadd.s32 %v2668, 1
      %vm2674 = vcmp.gt.s32.totalorder %v2673, 0
      %v2675 = vsel %vm2674, %v2673, 0
      %v2676 = vshrl.u32 %v2675, 5
      %v2677 = vand.u32 %v2675, 31
      %v2678 = vsub.s32 32, %v2677
      %v2679 = vshrl.u32 683565275, %v2678
      %v2680 = vshll.u32 683565275, %v2677
      %v2681 = vshrl.u32 2475754826, %v2678
      %v2682 = vor.u32 %v2680, %v2681
      %v2683 = vshll.u32 2475754826, %v2677
      %v2684 = vshrl.u32 2131351028, %v2678
      %v2685 = vor.u32 %v2683, %v2684
      %v2686 = vshll.u32 2131351028, %v2677
      %v2687 = vshrl.u32 2102212464, %v2678
      %v2688 = vor.u32 %v2686, %v2687
      %v2689 = vshll.u32 2102212464, %v2677
      %v2690 = vshrl.u32 920167782, %v2678
      %v2691 = vor.u32 %v2689, %v2690
      %v2692 = vshll.u32 920167782, %v2677
      %v2693 = vshrl.u32 1326507024, %v2678
      %v2694 = vor.u32 %v2692, %v2693
      %vm2695 = vcmp.lt.s32.totalorder %v2676, 1
      %vm2696 = vcmp.lt.s32.totalorder %v2676, 2
      %vm2697 = vcmp.lt.s32.totalorder %v2676, 3
      %vm2698 = vcmp.lt.s32.totalorder %v2676, 4
      %v2699 = vsel %vm2695, %v2679, %v2682
      %v2700 = vsel %vm2698, %v2688, 2102212464
      %v2701 = vsel %vm2697, %v2685, %v2700
      %v2702 = vsel %vm2696, %v2699, %v2701
      %v2703 = vsel %vm2695, %v2682, %v2685
      %v2704 = vsel %vm2698, %v2691, 920167782
      %v2705 = vsel %vm2697, %v2688, %v2704
      %v2706 = vsel %vm2696, %v2703, %v2705
      %v2707 = vsel %vm2695, %v2685, %v2688
      %v2708 = vsel %vm2698, %v2694, 1326507024
      %v2709 = vsel %vm2697, %v2691, %v2708
      %v2710 = vsel %vm2696, %v2707, %v2709
      %v2711 = vshll.u32 %v2671, 8
      %v2712 = vmul.u32.u64.compose %v2711, %v2710
      %v2713 = vextract.low.u32 %v2712
      %v2714 = vextract.high.u32 %v2712
      %v2715 = vmul.u32.u64.compose %v2711, %v2706
      %v2716 = vextract.low.u32 %v2715
      %v2717 = vextract.high.u32 %v2715
      %v2718 = vmul.u32 %v2711, %v2702
      %v2719 = vadd.s32 %v2714, %v2716
      %vm2720 = vc.u32 %v2714, %v2716
      %v2721 = vadd.s32 %v2717, 1
      %v2722 = vsel %vm2720, %v2721, %v2717
      %v2723 = vadd.s32 %v2718, %v2722
      %v2724 = vadd.s32 %v2723, 536870912
      %v2725 = vshrl.u32 %v2724, 30
      %v2726 = vshll.u32 %v2725, 30
      %v2727 = vsub.s32 %v2723, %v2726
      %vm2728 = vcmp.lt.s32.totalorder %v2727, 0
      %v2729 = vsub.s32 0, %v2727
      %v2730 = vsel %vm2728, %v2729, %v2727
      %v2731 = vclz %v2730
      %v2732 = vsub.s32 %v2731, 2
      %vm2733 = vcmp.gt.s32.totalorder 0, %v2732
      %v2734 = vsel %vm2733, 0, %v2732
      %v2735 = vsub.s32 32, %v2734
      %v2736 = vshll.u32 %v2727, %v2734
      %v2737 = vshrl.u32 %v2719, %v2735
      %v2738 = vor.u32 %v2736, %v2737
      %v2739 = vsub.s32 4294967266, %v2734
      %v2740 = vadd.s32 %v2739, 127
      %v2741 = vshll.u32 %v2740, 23
      %v2742 = vor.u32 4788187, %v2741
      %v2743 = vand.u32 2147483647, %v2742
      %v2745 = vcvt.s32.f32 %v2738
      %v2746 = vmul.f32 %v2745, %v2743
      %v2747 = vxor.u32 %v2746, 2147483648
      %v2748 = vsel %vm2665, %v2747, %v2746
      %v2749 = vsub.s32 4, %v2725
      %v2750 = vsel %vm2665, %v2749, %v2725
      %v2751 = vsel %vm2664, %v456, %v2748
      %v2752 = vsel %vm2664, 0, %v2750
      %v2753 = vcosq.f32.pop %v2751
      %v2754 = vsinq.f32.pop %v2751
      %vm2755 = vweird.f32 %v456
      %v2756 = vand.u32 %v2752, 3
      %vm2757 = vcmp.lt.s32.totalorder %v2756, 2
      %vm2758 = vcmp.eq.s32.totalorder %v2756, 0
      %v2759 = vxor.u32 %v2754, 2147483648
      %v2760 = vsel %vm2758, %v2753, %v2759
      %vm2761 = vcmp.eq.s32.totalorder %v2756, 2
      %v2762 = vxor.u32 %v2753, 2147483648
      %v2763 = vsel %vm2761, %v2762, %v2754
      %v2764 = vsel %vm2757, %v2760, %v2763
      %v2765 = vsel %vm2755, nan, %v2764
      %v2766 = vand.u32 2147483647, %v457
      %vm2767 = vcmp.le.f32.partialorder %v2766, 0.7853982
      %vm2768 = vcmp.lt.s32.totalorder %v457, 0
      %v2769 = vand.u32 %v457, 2139095040
      %v2770 = vshrl.u32 %v2769, 23
      %v2771 = vsub.s32 %v2770, 127
      %v2772 = vand.u32 2147483647, %v457
      %v2773 = vand.u32 %v2772, 8388607
      %v2774 = vor.u32 %v2773, 8388608
      %v2775 = vsub.s32 0, %v2774
      %v2776 = vadd.s32 %v2771, 1
      %vm2777 = vcmp.gt.s32.totalorder %v2776, 0
      %v2778 = vsel %vm2777, %v2776, 0
      %v2779 = vshrl.u32 %v2778, 5
      %v2780 = vand.u32 %v2778, 31
      %v2781 = vsub.s32 32, %v2780
      %v2782 = vshrl.u32 683565275, %v2781
      %v2783 = vshll.u32 683565275, %v2780
      %v2784 = vshrl.u32 2475754826, %v2781
      %v2785 = vor.u32 %v2783, %v2784
      %v2786 = vshll.u32 2475754826, %v2780
      %v2787 = vshrl.u32 2131351028, %v2781
      %v2788 = vor.u32 %v2786, %v2787
      %v2789 = vshll.u32 2131351028, %v2780
      %v2790 = vshrl.u32 2102212464, %v2781
      %v2791 = vor.u32 %v2789, %v2790
      %v2792 = vshll.u32 2102212464, %v2780
      %v2793 = vshrl.u32 920167782, %v2781
      %v2794 = vor.u32 %v2792, %v2793
      %v2795 = vshll.u32 920167782, %v2780
      %v2796 = vshrl.u32 1326507024, %v2781
      %v2797 = vor.u32 %v2795, %v2796
      %vm2798 = vcmp.lt.s32.totalorder %v2779, 1
      %vm2799 = vcmp.lt.s32.totalorder %v2779, 2
      %vm2800 = vcmp.lt.s32.totalorder %v2779, 3
      %vm2801 = vcmp.lt.s32.totalorder %v2779, 4
      %v2802 = vsel %vm2798, %v2782, %v2785
      %v2803 = vsel %vm2801, %v2791, 2102212464
      %v2804 = vsel %vm2800, %v2788, %v2803
      %v2805 = vsel %vm2799, %v2802, %v2804
      %v2806 = vsel %vm2798, %v2785, %v2788
      %v2807 = vsel %vm2801, %v2794, 920167782
      %v2808 = vsel %vm2800, %v2791, %v2807
      %v2809 = vsel %vm2799, %v2806, %v2808
      %v2810 = vsel %vm2798, %v2788, %v2791
      %v2811 = vsel %vm2801, %v2797, 1326507024
      %v2812 = vsel %vm2800, %v2794, %v2811
      %v2813 = vsel %vm2799, %v2810, %v2812
      %v2814 = vshll.u32 %v2774, 8
      %v2815 = vmul.u32.u64.compose %v2814, %v2813
      %v2816 = vextract.low.u32 %v2815
      %v2817 = vextract.high.u32 %v2815
      %v2818 = vmul.u32.u64.compose %v2814, %v2809
      %v2819 = vextract.low.u32 %v2818
      %v2820 = vextract.high.u32 %v2818
      %v2821 = vmul.u32 %v2814, %v2805
      %v2822 = vadd.s32 %v2817, %v2819
      %vm2823 = vc.u32 %v2817, %v2819
      %v2824 = vadd.s32 %v2820, 1
      %v2825 = vsel %vm2823, %v2824, %v2820
      %v2826 = vadd.s32 %v2821, %v2825
      %v2827 = vadd.s32 %v2826, 536870912
      %v2828 = vshrl.u32 %v2827, 30
      %v2829 = vshll.u32 %v2828, 30
      %v2830 = vsub.s32 %v2826, %v2829
      %vm2831 = vcmp.lt.s32.totalorder %v2830, 0
      %v2832 = vsub.s32 0, %v2830
      %v2833 = vsel %vm2831, %v2832, %v2830
      %v2834 = vclz %v2833
      %v2835 = vsub.s32 %v2834, 2
      %vm2836 = vcmp.gt.s32.totalorder 0, %v2835
      %v2837 = vsel %vm2836, 0, %v2835
      %v2838 = vsub.s32 32, %v2837
      %v2839 = vshll.u32 %v2830, %v2837
      %v2840 = vshrl.u32 %v2822, %v2838
      %v2841 = vor.u32 %v2839, %v2840
      %v2842 = vsub.s32 4294967266, %v2837
      %v2843 = vadd.s32 %v2842, 127
      %v2844 = vshll.u32 %v2843, 23
      %v2845 = vor.u32 4788187, %v2844
      %v2846 = vand.u32 2147483647, %v2845
      %v2848 = vcvt.s32.f32 %v2841
      %v2849 = vmul.f32 %v2848, %v2846
      %v2850 = vxor.u32 %v2849, 2147483648
      %v2851 = vsel %vm2768, %v2850, %v2849
      %v2852 = vsub.s32 4, %v2828
      %v2853 = vsel %vm2768, %v2852, %v2828
      %v2854 = vsel %vm2767, %v457, %v2851
      %v2855 = vsel %vm2767, 0, %v2853
      %v2856 = vcosq.f32.pop %v2854
      %v2857 = vsinq.f32.pop %v2854
      %vm2858 = vweird.f32 %v457
      %v2859 = vand.u32 %v2855, 3
      %vm2860 = vcmp.lt.s32.totalorder %v2859, 2
      %vm2861 = vcmp.eq.s32.totalorder %v2859, 0
      %v2862 = vxor.u32 %v2857, 2147483648
      %v2863 = vsel %vm2861, %v2856, %v2862
      %vm2864 = vcmp.eq.s32.totalorder %v2859, 2
      %v2865 = vxor.u32 %v2856, 2147483648
      %v2866 = vsel %vm2864, %v2865, %v2857
      %v2867 = vsel %vm2860, %v2863, %v2866
      %v2868 = vsel %vm2858, nan, %v2867
      %v2869 = vand.u32 2147483647, %v458
      %vm2870 = vcmp.le.f32.partialorder %v2869, 0.7853982
      %vm2871 = vcmp.lt.s32.totalorder %v458, 0
      %v2872 = vand.u32 %v458, 2139095040
      %v2873 = vshrl.u32 %v2872, 23
      %v2874 = vsub.s32 %v2873, 127
      %v2875 = vand.u32 2147483647, %v458
      %v2876 = vand.u32 %v2875, 8388607
      %v2877 = vor.u32 %v2876, 8388608
      %v2878 = vsub.s32 0, %v2877
      %v2879 = vadd.s32 %v2874, 1
      %vm2880 = vcmp.gt.s32.totalorder %v2879, 0
      %v2881 = vsel %vm2880, %v2879, 0
      %v2882 = vshrl.u32 %v2881, 5
      %v2883 = vand.u32 %v2881, 31
      %v2884 = vsub.s32 32, %v2883
      %v2885 = vshrl.u32 683565275, %v2884
      %v2886 = vshll.u32 683565275, %v2883
      %v2887 = vshrl.u32 2475754826, %v2884
      %v2888 = vor.u32 %v2886, %v2887
      %v2889 = vshll.u32 2475754826, %v2883
      %v2890 = vshrl.u32 2131351028, %v2884
      %v2891 = vor.u32 %v2889, %v2890
      %v2892 = vshll.u32 2131351028, %v2883
      %v2893 = vshrl.u32 2102212464, %v2884
      %v2894 = vor.u32 %v2892, %v2893
      %v2895 = vshll.u32 2102212464, %v2883
      %v2896 = vshrl.u32 920167782, %v2884
      %v2897 = vor.u32 %v2895, %v2896
      %v2898 = vshll.u32 920167782, %v2883
      %v2899 = vshrl.u32 1326507024, %v2884
      %v2900 = vor.u32 %v2898, %v2899
      %vm2901 = vcmp.lt.s32.totalorder %v2882, 1
      %vm2902 = vcmp.lt.s32.totalorder %v2882, 2
      %vm2903 = vcmp.lt.s32.totalorder %v2882, 3
      %vm2904 = vcmp.lt.s32.totalorder %v2882, 4
      %v2905 = vsel %vm2901, %v2885, %v2888
      %v2906 = vsel %vm2904, %v2894, 2102212464
      %v2907 = vsel %vm2903, %v2891, %v2906
      %v2908 = vsel %vm2902, %v2905, %v2907
      %v2909 = vsel %vm2901, %v2888, %v2891
      %v2910 = vsel %vm2904, %v2897, 920167782
      %v2911 = vsel %vm2903, %v2894, %v2910
      %v2912 = vsel %vm2902, %v2909, %v2911
      %v2913 = vsel %vm2901, %v2891, %v2894
      %v2914 = vsel %vm2904, %v2900, 1326507024
      %v2915 = vsel %vm2903, %v2897, %v2914
      %v2916 = vsel %vm2902, %v2913, %v2915
      %v2917 = vshll.u32 %v2877, 8
      %v2918 = vmul.u32.u64.compose %v2917, %v2916
      %v2919 = vextract.low.u32 %v2918
      %v2920 = vextract.high.u32 %v2918
      %v2921 = vmul.u32.u64.compose %v2917, %v2912
      %v2922 = vextract.low.u32 %v2921
      %v2923 = vextract.high.u32 %v2921
      %v2924 = vmul.u32 %v2917, %v2908
      %v2925 = vadd.s32 %v2920, %v2922
      %vm2926 = vc.u32 %v2920, %v2922
      %v2927 = vadd.s32 %v2923, 1
      %v2928 = vsel %vm2926, %v2927, %v2923
      %v2929 = vadd.s32 %v2924, %v2928
      %v2930 = vadd.s32 %v2929, 536870912
      %v2931 = vshrl.u32 %v2930, 30
      %v2932 = vshll.u32 %v2931, 30
      %v2933 = vsub.s32 %v2929, %v2932
      %vm2934 = vcmp.lt.s32.totalorder %v2933, 0
      %v2935 = vsub.s32 0, %v2933
      %v2936 = vsel %vm2934, %v2935, %v2933
      %v2937 = vclz %v2936
      %v2938 = vsub.s32 %v2937, 2
      %vm2939 = vcmp.gt.s32.totalorder 0, %v2938
      %v2940 = vsel %vm2939, 0, %v2938
      %v2941 = vsub.s32 32, %v2940
      %v2942 = vshll.u32 %v2933, %v2940
      %v2943 = vshrl.u32 %v2925, %v2941
      %v2944 = vor.u32 %v2942, %v2943
      %v2945 = vsub.s32 4294967266, %v2940
      %v2946 = vadd.s32 %v2945, 127
      %v2947 = vshll.u32 %v2946, 23
      %v2948 = vor.u32 4788187, %v2947
      %v2949 = vand.u32 2147483647, %v2948
      %v2951 = vcvt.s32.f32 %v2944
      %v2952 = vmul.f32 %v2951, %v2949
      %v2953 = vxor.u32 %v2952, 2147483648
      %v2954 = vsel %vm2871, %v2953, %v2952
      %v2955 = vsub.s32 4, %v2931
      %v2956 = vsel %vm2871, %v2955, %v2931
      %v2957 = vsel %vm2870, %v458, %v2954
      %v2958 = vsel %vm2870, 0, %v2956
      %v2959 = vcosq.f32.pop %v2957
      %v2960 = vsinq.f32.pop %v2957
      %vm2961 = vweird.f32 %v458
      %v2962 = vand.u32 %v2958, 3
      %vm2963 = vcmp.lt.s32.totalorder %v2962, 2
      %vm2964 = vcmp.eq.s32.totalorder %v2962, 0
      %v2965 = vxor.u32 %v2960, 2147483648
      %v2966 = vsel %vm2964, %v2959, %v2965
      %vm2967 = vcmp.eq.s32.totalorder %v2962, 2
      %v2968 = vxor.u32 %v2959, 2147483648
      %v2969 = vsel %vm2967, %v2968, %v2960
      %v2970 = vsel %vm2963, %v2966, %v2969
      %v2971 = vsel %vm2961, nan, %v2970
      %v2984 = vrot.slane %v591, 5
      %v2985 = vrot.slane %v695, 5
      %v2986 = vrot.slane %v799, 5
      %v2987 = vrot.slane %v903, 5
      %v2988 = vrot.slane %v1007, 5
      %v2989 = vsel %vm463, %v2984, %v2988
      %v2990 = vrot.slane %v1111, 5
      %v2991 = vsel %vm463, %v2985, %v2990
      %v2992 = vrot.slane %v1215, 5
      %v2993 = vsel %vm463, %v2986, %v2992
      %v2994 = vrot.slane %v1319, 5
      %v2995 = vsel %vm463, %v2987, %v2994
      %v2996 = vrot.slane %v1423, 5
      %v2997 = vsel %vm463, %v2988, %v2996
      %v2998 = vrot.slane %v1527, 5
      %v2999 = vsel %vm463, %v2990, %v2998
      %v3000 = vrot.slane %v1631, 5
      %v3001 = vsel %vm463, %v2992, %v3000
      %v3002 = vrot.slane %v1735, 5
      %v3003 = vsel %vm463, %v2994, %v3002
      %vm3028 = vcmask 1044480
      %v3029 = vrot.slane %v1838, 3
      %v3030 = vrot.slane %v1941, 3
      %v3031 = vrot.slane %v2044, 3
      %v3032 = vrot.slane %v2147, 3
      %v3033 = vrot.slane %v2250, 3
      %v3034 = vsel %vm3028, %v3029, %v3033
      %v3035 = vrot.slane %v2353, 3
      %v3036 = vsel %vm3028, %v3030, %v3035
      %v3037 = vrot.slane %v2456, 3
      %v3038 = vsel %vm3028, %v3031, %v3037
      %v3039 = vrot.slane %v2559, 3
      %v3040 = vsel %vm3028, %v3032, %v3039
      %v3041 = vrot.slane %v2662, 3
      %v3042 = vsel %vm3028, %v3033, %v3041
      %v3043 = vrot.slane %v2765, 3
      %v3044 = vsel %vm3028, %v3035, %v3043
      %v3045 = vrot.slane %v2868, 3
      %v3046 = vsel %vm3028, %v3037, %v3045
      %v3047 = vrot.slane %v2971, 3
      %v3048 = vsel %vm3028, %v3039, %v3047
      %v3061 = vsel %vm463, %v391, %v2984
      %v3062 = vsel %vm463, %v405, %v2985
      %v3063 = vsel %vm463, %v392, %v2986
      %v3064 = vsel %vm463, %v406, %v2987
      %v3065 = vsel %vm3028, %v2997, %v3029
      %v3066 = vsel %vm3028, %v2999, %v3030
      %v3067 = vsel %vm3028, %v3001, %v3031
      %v3068 = vsel %vm3028, %v3003, %v3032
      %v3069 = vld [vmem:[%s1] sm:$0xf]
      %v3070 = vld [vmem:[%s1 + $0x4] sm:$0xf]
      %v3071 = vld [vmem:[%s1 + $0x8] sm:$0xf]
      %v3072 = vld [vmem:[%s1 + $0xc] sm:$0xf]
      %v3073 = vld [vmem:[%s1 + $0x10] sm:$0xf]
      %v3074 = vld [vmem:[%s1 + $0x14] sm:$0xf]
      %v3075 = vld [vmem:[%s1 + $0x18] sm:$0xf]
      %v3076 = vld [vmem:[%s1 + $0x1c] sm:$0xf]
      %v3077 = vld [vmem:[%s1 + $0x20] sm:$0xf]
      %v3078 = vld [vmem:[%s1 + $0x24] sm:$0xf]
      %v3079 = vld [vmem:[%s1 + $0x28] sm:$0xf]
      %v3080 = vld [vmem:[%s1 + $0x2c] sm:$0xf]
      %v3081 = vld [vmem:[%s1 + $0x30] sm:$0xf]
      %v3082 = vld [vmem:[%s1 + $0x34] sm:$0xf]
      %v3083 = vld [vmem:[%s1 + $0x38] sm:$0xf]
      %v3084 = vld [vmem:[%s1 + $0x3c] sm:$0xf]
      %v3085 = vpack.c.bf16 %v2989, %v3061
      %v3086 = vpack.c.bf16 %v2991, %v3062
      %v3087 = vpack.c.bf16 %v2993, %v3063
      %v3088 = vpack.c.bf16 %v2995, %v3064
      %v3089 = vpack.c.bf16 %v3034, %v3065
      %v3090 = vpack.c.bf16 %v3036, %v3066
      %v3091 = vpack.c.bf16 %v3038, %v3067
      %v3092 = vpack.c.bf16 %v3040, %v3068
      %v3093 = vpack.c.bf16 %v3042, %v3042
      %v3094 = vpack.c.bf16 %v3044, %v3044
      %v3095 = vpack.c.bf16 %v3046, %v3046
      %v3096 = vpack.c.bf16 %v3048, %v3048
      %v3097 = vld [vmem:[%s2] sm:$0xff]
      %v3098 = vld [vmem:[%s2 + $0x8] sm:$0xff]
      %v3099 = vld [vmem:[%s2 + $0x10] sm:$0xff]
      %v3100 = vld [vmem:[%s2 + $0x18] sm:$0xff]
      %v3101 = vld [vmem:[%s2 + $0x20] sm:$0xff]
      %v3102 = vld [vmem:[%s2 + $0x28] sm:$0xff]
      %v3103 = vld [vmem:[%s2 + $0x30] sm:$0xff]
      %v3104 = vld [vmem:[%s2 + $0x38] sm:$0xff]
      %v3105 = vld [vmem:[%s2 + $0x40] sm:$0xff]
      %v3106 = vld [vmem:[%s2 + $0x48] sm:$0xff]
      %v3107 = vld [vmem:[%s2 + $0x50] sm:$0xff]
      %v3108 = vld [vmem:[%s2 + $0x58] sm:$0xff]
      %v3109 = vld [vmem:[%s2 + $0x60] sm:$0xff]
      %v3110 = vld [vmem:[%s2 + $0x68] sm:$0xff]
      %v3111 = vld [vmem:[%s2 + $0x70] sm:$0xff]
      %v3112 = vld [vmem:[%s2 + $0x78] sm:$0xff]
      %3114 = vset.pattern.permute.xlu0 0
      %3115 = vperm.xlu0 %3114, %v3097
      %v3116 = vpop.permute.xlu0 %3115
      %3119 = vset.pattern.permute.xlu0 0
      %3120 = vperm.xlu0 %3119, %v3098
      %v3121 = vpop.permute.xlu0 %3120
      %3124 = vset.pattern.permute.xlu0 0
      %3125 = vperm.xlu0 %3124, %v3099
      %v3126 = vpop.permute.xlu0 %3125
      %3129 = vset.pattern.permute.xlu0 0
      %3130 = vperm.xlu0 %3129, %v3100
      %v3131 = vpop.permute.xlu0 %3130
      %3134 = vset.pattern.permute.xlu0 0
      %3135 = vperm.xlu0 %3134, %v3101
      %v3136 = vpop.permute.xlu0 %3135
      %3139 = vset.pattern.permute.xlu0 0
      %3140 = vperm.xlu0 %3139, %v3102
      %v3141 = vpop.permute.xlu0 %3140
      %3144 = vset.pattern.permute.xlu0 0
      %3145 = vperm.xlu0 %3144, %v3103
      %v3146 = vpop.permute.xlu0 %3145
      %3149 = vset.pattern.permute.xlu0 0
      %3150 = vperm.xlu0 %3149, %v3104
      %v3151 = vpop.permute.xlu0 %3150
      %3154 = vset.pattern.permute.xlu0 0
      %3155 = vperm.xlu0 %3154, %v3105
      %v3156 = vpop.permute.xlu0 %3155
      %3159 = vset.pattern.permute.xlu0 0
      %3160 = vperm.xlu0 %3159, %v3106
      %v3161 = vpop.permute.xlu0 %3160
      %3164 = vset.pattern.permute.xlu0 0
      %3165 = vperm.xlu0 %3164, %v3107
      %v3166 = vpop.permute.xlu0 %3165
      %3169 = vset.pattern.permute.xlu0 0
      %3170 = vperm.xlu0 %3169, %v3108
      %v3171 = vpop.permute.xlu0 %3170
      %3174 = vset.pattern.permute.xlu0 0
      %3175 = vperm.xlu0 %3174, %v3109
      %v3176 = vpop.permute.xlu0 %3175
      %3179 = vset.pattern.permute.xlu0 0
      %3180 = vperm.xlu0 %3179, %v3110
      %v3181 = vpop.permute.xlu0 %3180
      %3184 = vset.pattern.permute.xlu0 0
      %3185 = vperm.xlu0 %3184, %v3111
      %v3186 = vpop.permute.xlu0 %3185
      %3189 = vset.pattern.permute.xlu0 0
      %3190 = vperm.xlu0 %3189, %v3112
      %v3191 = vpop.permute.xlu0 %3190
      %v3209 = vunpack.c.l.b16 %v3069
      %v3210 = vunpack.c.l.b16 %v3070
      %v3211 = vunpack.c.l.b16 %v3071
      %v3212 = vunpack.c.l.b16 %v3072
      %v3213 = vunpack.c.l.b16 %v3073
      %v3214 = vunpack.c.l.b16 %v3074
      %v3215 = vunpack.c.l.b16 %v3075
      %v3216 = vunpack.c.l.b16 %v3076
      %v3217 = vunpack.c.l.b16 %v3077
      %v3218 = vunpack.c.l.b16 %v3078
      %v3219 = vunpack.c.l.b16 %v3079
      %v3220 = vunpack.c.l.b16 %v3080
      %v3221 = vunpack.c.l.b16 %v3081
      %v3222 = vunpack.c.l.b16 %v3082
      %v3223 = vunpack.c.l.b16 %v3083
      %v3224 = vunpack.c.l.b16 %v3084
      %v3225 = vpack.c.b16 %v3210, %v3209
      %v3226 = vpack.c.b16 %v3212, %v3211
      %v3227 = vpack.c.b16 %v3214, %v3213
      %v3228 = vpack.c.b16 %v3216, %v3215
      %v3229 = vpack.c.b16 %v3218, %v3217
      %v3230 = vpack.c.b16 %v3220, %v3219
      %v3231 = vpack.c.b16 %v3222, %v3221
      %v3232 = vpack.c.b16 %v3224, %v3223
      %vm3233 = vcmask 318464
      %v3235 = vsel %vm3233, %v3225, 0
      %v3238 = vsel %vm3233, %v3226, 0
      %v3241 = vsel %vm3233, %v3227, 0
      %v3244 = vsel %vm3233, %v3228, 0
      %v3247 = vsel %vm3233, %v3229, 0
      %v3250 = vsel %vm3233, %v3230, 0
      %v3253 = vsel %vm3233, %v3231, 0
      %v3256 = vsel %vm3233, %v3232, 0
      %v3258 = vsel %vm463, 4294967295, 65535
      %v3259 = vsel %vm478, %v3258, 0
      %v3261 = vand.u32 %v3093, %v3259
      %v3264 = vand.u32 %v3094, %v3259
      %v3267 = vand.u32 %v3095, %v3259
      %v3270 = vand.u32 %v3096, %v3259
      %3272 = vmatprep.subr.bf16.mxu0 0
      %3273 = vmatpush1.bf16.msra.mxu0 0
      %3274 = vmatprep.subr.bf16.mxu0 0
      %3275 = vmatpush1.bf16.msra.mxu0 0
      %3276 = vmatprep.subr.bf16.mxu0 0
      %3277 = vmatpush1.bf16.msra.mxu0 0
      %3278 = vmatprep.subr.bf16.mxu0 0
      %3279 = vmatpush1.bf16.msra.mxu0 0
      %3280 = vmatprep.subr.bf16.mxu0 0
      %3281 = vmatpush1.bf16.msra.mxu0 0
      %3282 = vmatprep.subr.bf16.mxu0 %v3264
      %3283 = vmatpush1.bf16.msra.mxu0 %v3261
      %3284 = vmatprep.subr.bf16.mxu0 %v3090
      %3285 = vmatpush1.bf16.msra.mxu0 %v3089
      %3286 = vmatprep.subr.bf16.mxu0 %v3086
      %3287 = vmatpush1.bf16.msra.mxu0 %v3085
      %3288 = vmatprep.subr.bf16.mxu0 0
      %3289 = vmatpush2.bf16.msra.mxu0 0
      %3290 = vmatprep.subr.bf16.mxu0 0
      %3291 = vmatpush2.bf16.msra.mxu0 0
      %3292 = vmatprep.subr.bf16.mxu0 0
      %3293 = vmatpush2.bf16.msra.mxu0 0
      %3294 = vmatprep.subr.bf16.mxu0 0
      %3295 = vmatpush2.bf16.msra.mxu0 0
      %3296 = vmatprep.subr.bf16.mxu0 0
      %3297 = vmatpush2.bf16.msra.mxu0 0
      %3298 = vmatprep.subr.bf16.mxu0 0
      %3299 = vmatpush2.bf16.msra.mxu0 0
      %3300 = vmatprep.subr.bf16.mxu0 0
      %3301 = vmatpush2.bf16.msra.mxu0 0
      %3302 = vmatprep.subr.bf16.mxu0 0
      %3303 = vmatpush2.bf16.msra.mxu0 0
      %3304 = vmatprep.mubr.bf16.mxu0 0
      %3305 = vmatmul.mubr.bf16.gmra.mxu0 %v3235
      %v3306 = vpop.f32.mrf.mxu0
      %v3307 = vadd.f32 %v3116, %v3306
      %v3308 = vpop.f32.mrf.mxu0
      %v3309 = vadd.f32 %v3116, %v3308
      %v3310 = vpop.f32.mrf.mxu0
      %v3311 = vadd.f32 %v3121, %v3310
      %v3312 = vpop.f32.mrf.mxu0
      %v3313 = vadd.f32 %v3121, %v3312
      %3314 = vmatprep.mubr.bf16.mxu0 0
      %3315 = vmatmul.mubr.bf16.gmra.mxu0 %v3238
      %v3316 = vpop.f32.mrf.mxu0
      %v3317 = vadd.f32 %v3126, %v3316
      %v3318 = vpop.f32.mrf.mxu0
      %v3319 = vadd.f32 %v3126, %v3318
      %v3320 = vpop.f32.mrf.mxu0
      %v3321 = vadd.f32 %v3131, %v3320
      %v3322 = vpop.f32.mrf.mxu0
      %v3323 = vadd.f32 %v3131, %v3322
      %3324 = vmatprep.mubr.bf16.mxu0 0
      %3325 = vmatmul.mubr.bf16.gmra.mxu0 %v3241
      %v3326 = vpop.f32.mrf.mxu0
      %v3327 = vadd.f32 %v3136, %v3326
      %v3328 = vpop.f32.mrf.mxu0
      %v3329 = vadd.f32 %v3136, %v3328
      %v3330 = vpop.f32.mrf.mxu0
      %v3331 = vadd.f32 %v3141, %v3330
      %v3332 = vpop.f32.mrf.mxu0
      %v3333 = vadd.f32 %v3141, %v3332
      %3334 = vmatprep.mubr.bf16.mxu0 0
      %3335 = vmatmul.mubr.bf16.gmra.mxu0 %v3244
      %v3336 = vpop.f32.mrf.mxu0
      %v3337 = vadd.f32 %v3146, %v3336
      %v3338 = vpop.f32.mrf.mxu0
      %v3339 = vadd.f32 %v3146, %v3338
      %v3340 = vpop.f32.mrf.mxu0
      %v3341 = vadd.f32 %v3151, %v3340
      %v3342 = vpop.f32.mrf.mxu0
      %v3343 = vadd.f32 %v3151, %v3342
      %3344 = vmatprep.mubr.bf16.mxu0 0
      %3345 = vmatmul.mubr.bf16.gmra.mxu0 %v3247
      %v3346 = vpop.f32.mrf.mxu0
      %v3347 = vadd.f32 %v3156, %v3346
      %v3348 = vpop.f32.mrf.mxu0
      %v3349 = vadd.f32 %v3156, %v3348
      %v3350 = vpop.f32.mrf.mxu0
      %v3351 = vadd.f32 %v3161, %v3350
      %v3352 = vpop.f32.mrf.mxu0
      %v3353 = vadd.f32 %v3161, %v3352
      %3354 = vmatprep.mubr.bf16.mxu0 0
      %3355 = vmatmul.mubr.bf16.gmra.mxu0 %v3250
      %v3356 = vpop.f32.mrf.mxu0
      %v3357 = vadd.f32 %v3166, %v3356
      %v3358 = vpop.f32.mrf.mxu0
      %v3359 = vadd.f32 %v3166, %v3358
      %v3360 = vpop.f32.mrf.mxu0
      %v3361 = vadd.f32 %v3171, %v3360
      %v3362 = vpop.f32.mrf.mxu0
      %v3363 = vadd.f32 %v3171, %v3362
      %3364 = vmatprep.mubr.bf16.mxu0 0
      %3365 = vmatmul.mubr.bf16.gmra.mxu0 %v3253
      %v3366 = vpop.f32.mrf.mxu0
      %v3367 = vadd.f32 %v3176, %v3366
      %v3368 = vpop.f32.mrf.mxu0
      %v3369 = vadd.f32 %v3176, %v3368
      %v3370 = vpop.f32.mrf.mxu0
      %v3371 = vadd.f32 %v3181, %v3370
      %v3372 = vpop.f32.mrf.mxu0
      %v3373 = vadd.f32 %v3181, %v3372
      %3374 = vmatprep.mubr.bf16.mxu0 0
      %3375 = vmatmul.mubr.bf16.gmra.mxu0 %v3256
      %v3376 = vpop.f32.mrf.mxu0
      %v3377 = vadd.f32 %v3186, %v3376
      %v3378 = vpop.f32.mrf.mxu0
      %v3379 = vadd.f32 %v3186, %v3378
      %v3380 = vpop.f32.mrf.mxu0
      %v3381 = vadd.f32 %v3191, %v3380
      %v3382 = vpop.f32.mrf.mxu0
      %v3383 = vadd.f32 %v3191, %v3382
      %3384 = vdwg.mxu0
      %3385 = vmatprep.subr.bf16.mxu0 0
      %3386 = vmatpush1.bf16.msra.mxu0 0
      %3387 = vmatprep.subr.bf16.mxu0 0
      %3388 = vmatpush1.bf16.msra.mxu0 0
      %3389 = vmatprep.subr.bf16.mxu0 0
      %3390 = vmatpush1.bf16.msra.mxu0 0
      %3391 = vmatprep.subr.bf16.mxu0 0
      %3392 = vmatpush1.bf16.msra.mxu0 0
      %3393 = vmatprep.subr.bf16.mxu0 0
      %3394 = vmatpush1.bf16.msra.mxu0 0
      %3395 = vmatprep.subr.bf16.mxu0 %v3270
      %3396 = vmatpush1.bf16.msra.mxu0 %v3267
      %3397 = vmatprep.subr.bf16.mxu0 %v3092
      %3398 = vmatpush1.bf16.msra.mxu0 %v3091
      %3399 = vmatprep.subr.bf16.mxu0 %v3088
      %3400 = vmatpush1.bf16.msra.mxu0 %v3087
      %3401 = vmatprep.subr.bf16.mxu0 0
      %3402 = vmatpush2.bf16.msra.mxu0 0
      %3403 = vmatprep.subr.bf16.mxu0 0
      %3404 = vmatpush2.bf16.msra.mxu0 0
      %3405 = vmatprep.subr.bf16.mxu0 0
      %3406 = vmatpush2.bf16.msra.mxu0 0
      %3407 = vmatprep.subr.bf16.mxu0 0
      %3408 = vmatpush2.bf16.msra.mxu0 0
      %3409 = vmatprep.subr.bf16.mxu0 0
      %3410 = vmatpush2.bf16.msra.mxu0 0
      %3411 = vmatprep.subr.bf16.mxu0 0
      %3412 = vmatpush2.bf16.msra.mxu0 0
      %3413 = vmatprep.subr.bf16.mxu0 0
      %3414 = vmatpush2.bf16.msra.mxu0 0
      %3415 = vmatprep.subr.bf16.mxu0 0
      %3416 = vmatpush2.bf16.msra.mxu0 0
      %3417 = vmatprep.mubr.bf16.mxu0 0
      %3418 = vmatmul.mubr.bf16.gmra.mxu0 %v3235
      %v3419 = vpop.f32.mrf.mxu0
      %v3420 = vadd.f32 %v3116, %v3419
      %v3421 = vpop.f32.mrf.mxu0
      %v3422 = vadd.f32 %v3116, %v3421
      %v3423 = vpop.f32.mrf.mxu0
      %v3424 = vadd.f32 %v3121, %v3423
      %v3425 = vpop.f32.mrf.mxu0
      %v3426 = vadd.f32 %v3121, %v3425
      %3427 = vmatprep.mubr.bf16.mxu0 0
      %3428 = vmatmul.mubr.bf16.gmra.mxu0 %v3238
      %v3429 = vpop.f32.mrf.mxu0
      %v3430 = vadd.f32 %v3126, %v3429
      %v3431 = vpop.f32.mrf.mxu0
      %v3432 = vadd.f32 %v3126, %v3431
      %v3433 = vpop.f32.mrf.mxu0
      %v3434 = vadd.f32 %v3131, %v3433
      %v3435 = vpop.f32.mrf.mxu0
      %v3436 = vadd.f32 %v3131, %v3435
      %3437 = vmatprep.mubr.bf16.mxu0 0
      %3438 = vmatmul.mubr.bf16.gmra.mxu0 %v3241
      %v3439 = vpop.f32.mrf.mxu0
      %v3440 = vadd.f32 %v3136, %v3439
      %v3441 = vpop.f32.mrf.mxu0
      %v3442 = vadd.f32 %v3136, %v3441
      %v3443 = vpop.f32.mrf.mxu0
      %v3444 = vadd.f32 %v3141, %v3443
      %v3445 = vpop.f32.mrf.mxu0
      %v3446 = vadd.f32 %v3141, %v3445
      %3447 = vmatprep.mubr.bf16.mxu0 0
      %3448 = vmatmul.mubr.bf16.gmra.mxu0 %v3244
      %v3449 = vpop.f32.mrf.mxu0
      %v3450 = vadd.f32 %v3146, %v3449
      %v3451 = vpop.f32.mrf.mxu0
      %v3452 = vadd.f32 %v3146, %v3451
      %v3453 = vpop.f32.mrf.mxu0
      %v3454 = vadd.f32 %v3151, %v3453
      %v3455 = vpop.f32.mrf.mxu0
      %v3456 = vadd.f32 %v3151, %v3455
      %3457 = vmatprep.mubr.bf16.mxu0 0
      %3458 = vmatmul.mubr.bf16.gmra.mxu0 %v3247
      %v3459 = vpop.f32.mrf.mxu0
      %v3460 = vadd.f32 %v3156, %v3459
      %v3461 = vpop.f32.mrf.mxu0
      %v3462 = vadd.f32 %v3156, %v3461
      %v3463 = vpop.f32.mrf.mxu0
      %v3464 = vadd.f32 %v3161, %v3463
      %v3465 = vpop.f32.mrf.mxu0
      %v3466 = vadd.f32 %v3161, %v3465
      %3467 = vmatprep.mubr.bf16.mxu0 0
      %3468 = vmatmul.mubr.bf16.gmra.mxu0 %v3250
      %v3469 = vpop.f32.mrf.mxu0
      %v3470 = vadd.f32 %v3166, %v3469
      %v3471 = vpop.f32.mrf.mxu0
      %v3472 = vadd.f32 %v3166, %v3471
      %v3473 = vpop.f32.mrf.mxu0
      %v3474 = vadd.f32 %v3171, %v3473
      %v3475 = vpop.f32.mrf.mxu0
      %v3476 = vadd.f32 %v3171, %v3475
      %3477 = vmatprep.mubr.bf16.mxu0 0
      %3478 = vmatmul.mubr.bf16.gmra.mxu0 %v3253
      %v3479 = vpop.f32.mrf.mxu0
      %v3480 = vadd.f32 %v3176, %v3479
      %v3481 = vpop.f32.mrf.mxu0
      %v3482 = vadd.f32 %v3176, %v3481
      %v3483 = vpop.f32.mrf.mxu0
      %v3484 = vadd.f32 %v3181, %v3483
      %v3485 = vpop.f32.mrf.mxu0
      %v3486 = vadd.f32 %v3181, %v3485
      %3487 = vmatprep.mubr.bf16.mxu0 0
      %3488 = vmatmul.mubr.bf16.gmra.mxu0 %v3256
      %v3489 = vpop.f32.mrf.mxu0
      %v3490 = vadd.f32 %v3186, %v3489
      %v3491 = vpop.f32.mrf.mxu0
      %v3492 = vadd.f32 %v3186, %v3491
      %v3493 = vpop.f32.mrf.mxu0
      %v3494 = vadd.f32 %v3191, %v3493
      %v3495 = vpop.f32.mrf.mxu0
      %v3496 = vadd.f32 %v3191, %v3495
      %3497 = vdwg.mxu0
      %vm3498 = vcmp.ge.f32.partialorder %v3307, 0.0
      %vm3499 = vcmp.ge.f32.partialorder %v3309, 0.0
      %vm3500 = vcmp.ge.f32.partialorder %v3420, 0.0
      %vm3501 = vcmp.ge.f32.partialorder %v3422, 0.0
      %vm3502 = vcmp.ge.f32.partialorder %v3311, 0.0
      %vm3503 = vcmp.ge.f32.partialorder %v3313, 0.0
      %vm3504 = vcmp.ge.f32.partialorder %v3424, 0.0
      %vm3505 = vcmp.ge.f32.partialorder %v3426, 0.0
      %vm3506 = vcmp.ge.f32.partialorder %v3317, 0.0
      %vm3507 = vcmp.ge.f32.partialorder %v3319, 0.0
      %vm3508 = vcmp.ge.f32.partialorder %v3430, 0.0
      %vm3509 = vcmp.ge.f32.partialorder %v3432, 0.0
      %vm3510 = vcmp.ge.f32.partialorder %v3321, 0.0
      %vm3511 = vcmp.ge.f32.partialorder %v3323, 0.0
      %vm3512 = vcmp.ge.f32.partialorder %v3434, 0.0
      %vm3513 = vcmp.ge.f32.partialorder %v3436, 0.0
      %vm3514 = vcmp.ge.f32.partialorder %v3327, 0.0
      %vm3515 = vcmp.ge.f32.partialorder %v3329, 0.0
      %vm3516 = vcmp.ge.f32.partialorder %v3440, 0.0
      %vm3517 = vcmp.ge.f32.partialorder %v3442, 0.0
      %vm3518 = vcmp.ge.f32.partialorder %v3331, 0.0
      %vm3519 = vcmp.ge.f32.partialorder %v3333, 0.0
      %vm3520 = vcmp.ge.f32.partialorder %v3444, 0.0
      %vm3521 = vcmp.ge.f32.partialorder %v3446, 0.0
      %vm3522 = vcmp.ge.f32.partialorder %v3337, 0.0
      %vm3523 = vcmp.ge.f32.partialorder %v3339, 0.0
      %vm3524 = vcmp.ge.f32.partialorder %v3450, 0.0
      %vm3525 = vcmp.ge.f32.partialorder %v3452, 0.0
      %vm3526 = vcmp.ge.f32.partialorder %v3341, 0.0
      %vm3527 = vcmp.ge.f32.partialorder %v3343, 0.0
      %vm3528 = vcmp.ge.f32.partialorder %v3454, 0.0
      %vm3529 = vcmp.ge.f32.partialorder %v3456, 0.0
      %vm3530 = vcmp.ge.f32.partialorder %v3347, 0.0
      %vm3531 = vcmp.ge.f32.partialorder %v3349, 0.0
      %vm3532 = vcmp.ge.f32.partialorder %v3460, 0.0
      %vm3533 = vcmp.ge.f32.partialorder %v3462, 0.0
      %vm3534 = vcmp.ge.f32.partialorder %v3351, 0.0
      %vm3535 = vcmp.ge.f32.partialorder %v3353, 0.0
      %vm3536 = vcmp.ge.f32.partialorder %v3464, 0.0
      %vm3537 = vcmp.ge.f32.partialorder %v3466, 0.0
      %vm3538 = vcmp.ge.f32.partialorder %v3357, 0.0
      %vm3539 = vcmp.ge.f32.partialorder %v3359, 0.0
      %vm3540 = vcmp.ge.f32.partialorder %v3470, 0.0
      %vm3541 = vcmp.ge.f32.partialorder %v3472, 0.0
      %vm3542 = vcmp.ge.f32.partialorder %v3361, 0.0
      %vm3543 = vcmp.ge.f32.partialorder %v3363, 0.0
      %vm3544 = vcmp.ge.f32.partialorder %v3474, 0.0
      %vm3545 = vcmp.ge.f32.partialorder %v3476, 0.0
      %vm3546 = vcmp.ge.f32.partialorder %v3367, 0.0
      %vm3547 = vcmp.ge.f32.partialorder %v3369, 0.0
      %vm3548 = vcmp.ge.f32.partialorder %v3480, 0.0
      %vm3549 = vcmp.ge.f32.partialorder %v3482, 0.0
      %vm3550 = vcmp.ge.f32.partialorder %v3371, 0.0
      %vm3551 = vcmp.ge.f32.partialorder %v3373, 0.0
      %vm3552 = vcmp.ge.f32.partialorder %v3484, 0.0
      %vm3553 = vcmp.ge.f32.partialorder %v3486, 0.0
      %vm3554 = vcmp.ge.f32.partialorder %v3377, 0.0
      %vm3555 = vcmp.ge.f32.partialorder %v3379, 0.0
      %vm3556 = vcmp.ge.f32.partialorder %v3490, 0.0
      %vm3557 = vcmp.ge.f32.partialorder %v3492, 0.0
      %vm3558 = vcmp.ge.f32.partialorder %v3381, 0.0
      %vm3559 = vcmp.ge.f32.partialorder %v3383, 0.0
      %vm3560 = vcmp.ge.f32.partialorder %v3494, 0.0
      %vm3561 = vcmp.ge.f32.partialorder %v3496, 0.0
      %v3562 = vmul.f32 %v3307, 0.01
      %v3563 = vmul.f32 %v3309, 0.01
      %v3564 = vmul.f32 %v3420, 0.01
      %v3565 = vmul.f32 %v3422, 0.01
      %v3566 = vmul.f32 %v3311, 0.01
      %v3567 = vmul.f32 %v3313, 0.01
      %v3568 = vmul.f32 %v3424, 0.01
      %v3569 = vmul.f32 %v3426, 0.01
      %v3570 = vmul.f32 %v3317, 0.01
      %v3571 = vmul.f32 %v3319, 0.01
      %v3572 = vmul.f32 %v3430, 0.01
      %v3573 = vmul.f32 %v3432, 0.01
      %v3574 = vmul.f32 %v3321, 0.01
      %v3575 = vmul.f32 %v3323, 0.01
      %v3576 = vmul.f32 %v3434, 0.01
      %v3577 = vmul.f32 %v3436, 0.01
      %v3578 = vmul.f32 %v3327, 0.01
      %v3579 = vmul.f32 %v3329, 0.01
      %v3580 = vmul.f32 %v3440, 0.01
      %v3581 = vmul.f32 %v3442, 0.01
      %v3582 = vmul.f32 %v3331, 0.01
      %v3583 = vmul.f32 %v3333, 0.01
      %v3584 = vmul.f32 %v3444, 0.01
      %v3585 = vmul.f32 %v3446, 0.01
      %v3586 = vmul.f32 %v3337, 0.01
      %v3587 = vmul.f32 %v3339, 0.01
      %v3588 = vmul.f32 %v3450, 0.01
      %v3589 = vmul.f32 %v3452, 0.01
      %v3590 = vmul.f32 %v3341, 0.01
      %v3591 = vmul.f32 %v3343, 0.01
      %v3592 = vmul.f32 %v3454, 0.01
      %v3593 = vmul.f32 %v3456, 0.01
      %v3594 = vmul.f32 %v3347, 0.01
      %v3595 = vmul.f32 %v3349, 0.01
      %v3596 = vmul.f32 %v3460, 0.01
      %v3597 = vmul.f32 %v3462, 0.01
      %v3598 = vmul.f32 %v3351, 0.01
      %v3599 = vmul.f32 %v3353, 0.01
      %v3600 = vmul.f32 %v3464, 0.01
      %v3601 = vmul.f32 %v3466, 0.01
      %v3602 = vmul.f32 %v3357, 0.01
      %v3603 = vmul.f32 %v3359, 0.01
      %v3604 = vmul.f32 %v3470, 0.01
      %v3605 = vmul.f32 %v3472, 0.01
      %v3606 = vmul.f32 %v3361, 0.01
      %v3607 = vmul.f32 %v3363, 0.01
      %v3608 = vmul.f32 %v3474, 0.01
      %v3609 = vmul.f32 %v3476, 0.01
      %v3610 = vmul.f32 %v3367, 0.01
      %v3611 = vmul.f32 %v3369, 0.01
      %v3612 = vmul.f32 %v3480, 0.01
      %v3613 = vmul.f32 %v3482, 0.01
      %v3614 = vmul.f32 %v3371, 0.01
      %v3615 = vmul.f32 %v3373, 0.01
      %v3616 = vmul.f32 %v3484, 0.01
      %v3617 = vmul.f32 %v3486, 0.01
      %v3618 = vmul.f32 %v3377, 0.01
      %v3619 = vmul.f32 %v3379, 0.01
      %v3620 = vmul.f32 %v3490, 0.01
      %v3621 = vmul.f32 %v3492, 0.01
      %v3622 = vmul.f32 %v3381, 0.01
      %v3623 = vmul.f32 %v3383, 0.01
      %v3624 = vmul.f32 %v3494, 0.01
      %v3625 = vmul.f32 %v3496, 0.01
      %v3626 = vsel %vm3498, %v3307, %v3562
      %v3627 = vsel %vm3499, %v3309, %v3563
      %v3628 = vsel %vm3500, %v3420, %v3564
      %v3629 = vsel %vm3501, %v3422, %v3565
      %v3630 = vsel %vm3502, %v3311, %v3566
      %v3631 = vsel %vm3503, %v3313, %v3567
      %v3632 = vsel %vm3504, %v3424, %v3568
      %v3633 = vsel %vm3505, %v3426, %v3569
      %v3634 = vsel %vm3506, %v3317, %v3570
      %v3635 = vsel %vm3507, %v3319, %v3571
      %v3636 = vsel %vm3508, %v3430, %v3572
      %v3637 = vsel %vm3509, %v3432, %v3573
      %v3638 = vsel %vm3510, %v3321, %v3574
      %v3639 = vsel %vm3511, %v3323, %v3575
      %v3640 = vsel %vm3512, %v3434, %v3576
      %v3641 = vsel %vm3513, %v3436, %v3577
      %v3642 = vsel %vm3514, %v3327, %v3578
      %v3643 = vsel %vm3515, %v3329, %v3579
      %v3644 = vsel %vm3516, %v3440, %v3580
      %v3645 = vsel %vm3517, %v3442, %v3581
      %v3646 = vsel %vm3518, %v3331, %v3582
      %v3647 = vsel %vm3519, %v3333, %v3583
      %v3648 = vsel %vm3520, %v3444, %v3584
      %v3649 = vsel %vm3521, %v3446, %v3585
      %v3650 = vsel %vm3522, %v3337, %v3586
      %v3651 = vsel %vm3523, %v3339, %v3587
      %v3652 = vsel %vm3524, %v3450, %v3588
      %v3653 = vsel %vm3525, %v3452, %v3589
      %v3654 = vsel %vm3526, %v3341, %v3590
      %v3655 = vsel %vm3527, %v3343, %v3591
      %v3656 = vsel %vm3528, %v3454, %v3592
      %v3657 = vsel %vm3529, %v3456, %v3593
      %v3658 = vsel %vm3530, %v3347, %v3594
      %v3659 = vsel %vm3531, %v3349, %v3595
      %v3660 = vsel %vm3532, %v3460, %v3596
      %v3661 = vsel %vm3533, %v3462, %v3597
      %v3662 = vsel %vm3534, %v3351, %v3598
      %v3663 = vsel %vm3535, %v3353, %v3599
      %v3664 = vsel %vm3536, %v3464, %v3600
      %v3665 = vsel %vm3537, %v3466, %v3601
      %v3666 = vsel %vm3538, %v3357, %v3602
      %v3667 = vsel %vm3539, %v3359, %v3603
      %v3668 = vsel %vm3540, %v3470, %v3604
      %v3669 = vsel %vm3541, %v3472, %v3605
      %v3670 = vsel %vm3542, %v3361, %v3606
      %v3671 = vsel %vm3543, %v3363, %v3607
      %v3672 = vsel %vm3544, %v3474, %v3608
      %v3673 = vsel %vm3545, %v3476, %v3609
      %v3674 = vsel %vm3546, %v3367, %v3610
      %v3675 = vsel %vm3547, %v3369, %v3611
      %v3676 = vsel %vm3548, %v3480, %v3612
      %v3677 = vsel %vm3549, %v3482, %v3613
      %v3678 = vsel %vm3550, %v3371, %v3614
      %v3679 = vsel %vm3551, %v3373, %v3615
      %v3680 = vsel %vm3552, %v3484, %v3616
      %v3681 = vsel %vm3553, %v3486, %v3617
      %v3682 = vsel %vm3554, %v3377, %v3618
      %v3683 = vsel %vm3555, %v3379, %v3619
      %v3684 = vsel %vm3556, %v3490, %v3620
      %v3685 = vsel %vm3557, %v3492, %v3621
      %v3686 = vsel %vm3558, %v3381, %v3622
      %v3687 = vsel %vm3559, %v3383, %v3623
      %v3688 = vsel %vm3560, %v3494, %v3624
      %v3689 = vsel %vm3561, %v3496, %v3625
      %v3690 = vld [vmem:[%s3] sm:$0xf]
      %v3691 = vld [vmem:[%s3 + $0x4] sm:$0xf]
      %v3692 = vld [vmem:[%s3 + $0x8] sm:$0xf]
      %v3693 = vld [vmem:[%s3 + $0xc] sm:$0xf]
      %v3694 = vld [vmem:[%s3 + $0x10] sm:$0xf]
      %v3695 = vld [vmem:[%s3 + $0x14] sm:$0xf]
      %v3696 = vld [vmem:[%s3 + $0x18] sm:$0x1]
      %v3697 = vpack.c.bf16 %v3630, %v3626
      %v3698 = vpack.c.bf16 %v3631, %v3627
      %v3699 = vpack.c.bf16 %v3632, %v3628
      %v3700 = vpack.c.bf16 %v3633, %v3629
      %v3701 = vpack.c.bf16 %v3638, %v3634
      %v3702 = vpack.c.bf16 %v3639, %v3635
      %v3703 = vpack.c.bf16 %v3640, %v3636
      %v3704 = vpack.c.bf16 %v3641, %v3637
      %v3705 = vpack.c.bf16 %v3646, %v3642
      %v3706 = vpack.c.bf16 %v3647, %v3643
      %v3707 = vpack.c.bf16 %v3648, %v3644
      %v3708 = vpack.c.bf16 %v3649, %v3645
      %v3709 = vpack.c.bf16 %v3654, %v3650
      %v3710 = vpack.c.bf16 %v3655, %v3651
      %v3711 = vpack.c.bf16 %v3656, %v3652
      %v3712 = vpack.c.bf16 %v3657, %v3653
      %v3713 = vpack.c.bf16 %v3662, %v3658
      %v3714 = vpack.c.bf16 %v3663, %v3659
      %v3715 = vpack.c.bf16 %v3664, %v3660
      %v3716 = vpack.c.bf16 %v3665, %v3661
      %v3717 = vpack.c.bf16 %v3670, %v3666
      %v3718 = vpack.c.bf16 %v3671, %v3667
      %v3719 = vpack.c.bf16 %v3672, %v3668
      %v3720 = vpack.c.bf16 %v3673, %v3669
      %v3721 = vpack.c.bf16 %v3678, %v3674
      %v3722 = vpack.c.bf16 %v3679, %v3675
      %v3723 = vpack.c.bf16 %v3680, %v3676
      %v3724 = vpack.c.bf16 %v3681, %v3677
      %v3725 = vpack.c.bf16 %v3686, %v3682
      %v3726 = vpack.c.bf16 %v3687, %v3683
      %v3727 = vpack.c.bf16 %v3688, %v3684
      %v3728 = vpack.c.bf16 %v3689, %v3685
      %v3729 = vld [vmem:[%s4] sm:$0xff]
      %v3730 = vld [vmem:[%s4 + $0x8] sm:$0xff]
      %v3731 = vld [vmem:[%s4 + $0x10] sm:$0xff]
      %v3732 = vld [vmem:[%s4 + $0x18] sm:$0xff]
      %v3733 = vld [vmem:[%s4 + $0x20] sm:$0xff]
      %v3734 = vld [vmem:[%s4 + $0x28] sm:$0xff]
      %v3735 = vld [vmem:[%s4 + $0x30] sm:$0x3]
      %3737 = vset.pattern.permute.xlu0 0
      %3738 = vperm.xlu0 %3737, %v3729
      %v3739 = vpop.permute.xlu0 %3738
      %3742 = vset.pattern.permute.xlu0 0
      %3743 = vperm.xlu0 %3742, %v3730
      %v3744 = vpop.permute.xlu0 %3743
      %3747 = vset.pattern.permute.xlu0 0
      %3748 = vperm.xlu0 %3747, %v3731
      %v3749 = vpop.permute.xlu0 %3748
      %3752 = vset.pattern.permute.xlu0 0
      %3753 = vperm.xlu0 %3752, %v3732
      %v3754 = vpop.permute.xlu0 %3753
      %3757 = vset.pattern.permute.xlu0 0
      %3758 = vperm.xlu0 %3757, %v3733
      %v3759 = vpop.permute.xlu0 %3758
      %3762 = vset.pattern.permute.xlu0 0
      %3763 = vperm.xlu0 %3762, %v3734
      %v3764 = vpop.permute.xlu0 %3763
      %3767 = vset.pattern.permute.xlu0 0
      %3768 = vperm.xlu0 %3767, %v3735
      %v3769 = vpop.permute.xlu0 %3768
      %v3778 = vunpack.c.l.b16 %v3690
      %v3779 = vunpack.c.l.b16 %v3691
      %v3780 = vunpack.c.l.b16 %v3692
      %v3781 = vunpack.c.l.b16 %v3693
      %v3782 = vunpack.c.l.b16 %v3694
      %v3783 = vunpack.c.l.b16 %v3695
      %v3784 = vunpack.c.l.b16 %v3696
      %v3785 = vpack.c.b16 %v3779, %v3778
      %v3786 = vpack.c.b16 %v3781, %v3780
      %v3787 = vpack.c.b16 %v3783, %v3782
      %v3788 = vpack.c.b16 %v3784, %v3784
      %3793 = vmatprep.subr.bf16.mxu0 %v3726
      %3794 = vmatpush1.bf16.msra.mxu0 %v3725
      %3795 = vmatprep.subr.bf16.mxu0 %v3722
      %3796 = vmatpush1.bf16.msra.mxu0 %v3721
      %3797 = vmatprep.subr.bf16.mxu0 %v3718
      %3798 = vmatpush1.bf16.msra.mxu0 %v3717
      %3799 = vmatprep.subr.bf16.mxu0 %v3714
      %3800 = vmatpush1.bf16.msra.mxu0 %v3713
      %3801 = vmatprep.subr.bf16.mxu0 %v3710
      %3802 = vmatpush1.bf16.msra.mxu0 %v3709
      %3803 = vmatprep.subr.bf16.mxu0 %v3706
      %3804 = vmatpush1.bf16.msra.mxu0 %v3705
      %3805 = vmatprep.subr.bf16.mxu0 %v3702
      %3806 = vmatpush1.bf16.msra.mxu0 %v3701
      %3807 = vmatprep.subr.bf16.mxu0 %v3698
      %3808 = vmatpush1.bf16.msra.mxu0 %v3697
      %3809 = vmatprep.subr.bf16.mxu0 0
      %3810 = vmatpush2.bf16.msra.mxu0 0
      %3811 = vmatprep.subr.bf16.mxu0 0
      %3812 = vmatpush2.bf16.msra.mxu0 0
      %3813 = vmatprep.subr.bf16.mxu0 0
      %3814 = vmatpush2.bf16.msra.mxu0 0
      %3815 = vmatprep.subr.bf16.mxu0 0
      %3816 = vmatpush2.bf16.msra.mxu0 0
      %3817 = vmatprep.subr.bf16.mxu0 0
      %3818 = vmatpush2.bf16.msra.mxu0 0
      %3819 = vmatprep.subr.bf16.mxu0 0
      %3820 = vmatpush2.bf16.msra.mxu0 0
      %3821 = vmatprep.subr.bf16.mxu0 0
      %3822 = vmatpush2.bf16.msra.mxu0 0
      %3823 = vmatprep.subr.bf16.mxu0 0
      %3824 = vmatpush2.bf16.msra.mxu0 0
      %3825 = vmatprep.mubr.bf16.mxu0 0
      %3826 = vmatmul.mubr.bf16.gmra.mxu0 %v3785
      %v3827 = vpop.f32.mrf.mxu0
      %v3828 = vadd.f32 %v3739, %v3827
      %v3829 = vpop.f32.mrf.mxu0
      %v3830 = vadd.f32 %v3739, %v3829
      %v3831 = vpop.f32.mrf.mxu0
      %v3832 = vadd.f32 %v3744, %v3831
      %v3833 = vpop.f32.mrf.mxu0
      %v3834 = vadd.f32 %v3744, %v3833
      %3835 = vmatprep.mubr.bf16.mxu0 0
      %3836 = vmatmul.mubr.bf16.gmra.mxu0 %v3786
      %v3837 = vpop.f32.mrf.mxu0
      %v3838 = vadd.f32 %v3749, %v3837
      %v3839 = vpop.f32.mrf.mxu0
      %v3840 = vadd.f32 %v3749, %v3839
      %v3841 = vpop.f32.mrf.mxu0
      %v3842 = vadd.f32 %v3754, %v3841
      %v3843 = vpop.f32.mrf.mxu0
      %v3844 = vadd.f32 %v3754, %v3843
      %3845 = vmatprep.mubr.bf16.mxu0 0
      %3846 = vmatmul.mubr.bf16.gmra.mxu0 %v3787
      %v3847 = vpop.f32.mrf.mxu0
      %v3848 = vadd.f32 %v3759, %v3847
      %v3849 = vpop.f32.mrf.mxu0
      %v3850 = vadd.f32 %v3759, %v3849
      %v3851 = vpop.f32.mrf.mxu0
      %v3852 = vadd.f32 %v3764, %v3851
      %v3853 = vpop.f32.mrf.mxu0
      %v3854 = vadd.f32 %v3764, %v3853
      %3855 = vmatprep.mubr.bf16.mxu0 0
      %3856 = vmatmul.mubr.bf16.gmra.mxu0 %v3788
      %v3857 = vpop.f32.mrf.mxu0
      %v3858 = vadd.f32 %v3769, %v3857
      %v3859 = vpop.f32.mrf.mxu0
      %v3860 = vadd.f32 %v3769, %v3859
      %v3861 = vpop.f32.mrf.mxu0
      %v3862 = vpop.f32.mrf.mxu0
      %3863 = vdwg.mxu0
      %3864 = vmatprep.subr.bf16.mxu0 %v3728
      %3865 = vmatpush1.bf16.msra.mxu0 %v3727
      %3866 = vmatprep.subr.bf16.mxu0 %v3724
      %3867 = vmatpush1.bf16.msra.mxu0 %v3723
      %3868 = vmatprep.subr.bf16.mxu0 %v3720
      %3869 = vmatpush1.bf16.msra.mxu0 %v3719
      %3870 = vmatprep.subr.bf16.mxu0 %v3716
      %3871 = vmatpush1.bf16.msra.mxu0 %v3715
      %3872 = vmatprep.subr.bf16.mxu0 %v3712
      %3873 = vmatpush1.bf16.msra.mxu0 %v3711
      %3874 = vmatprep.subr.bf16.mxu0 %v3708
      %3875 = vmatpush1.bf16.msra.mxu0 %v3707
      %3876 = vmatprep.subr.bf16.mxu0 %v3704
      %3877 = vmatpush1.bf16.msra.mxu0 %v3703
      %3878 = vmatprep.subr.bf16.mxu0 %v3700
      %3879 = vmatpush1.bf16.msra.mxu0 %v3699
      %3880 = vmatprep.subr.bf16.mxu0 0
      %3881 = vmatpush2.bf16.msra.mxu0 0
      %3882 = vmatprep.subr.bf16.mxu0 0
      %3883 = vmatpush2.bf16.msra.mxu0 0
      %3884 = vmatprep.subr.bf16.mxu0 0
      %3885 = vmatpush2.bf16.msra.mxu0 0
      %3886 = vmatprep.subr.bf16.mxu0 0
      %3887 = vmatpush2.bf16.msra.mxu0 0
      %3888 = vmatprep.subr.bf16.mxu0 0
      %3889 = vmatpush2.bf16.msra.mxu0 0
      %3890 = vmatprep.subr.bf16.mxu0 0
      %3891 = vmatpush2.bf16.msra.mxu0 0
      %3892 = vmatprep.subr.bf16.mxu0 0
      %3893 = vmatpush2.bf16.msra.mxu0 0
      %3894 = vmatprep.subr.bf16.mxu0 0
      %3895 = vmatpush2.bf16.msra.mxu0 0
      %3896 = vmatprep.mubr.bf16.mxu0 0
      %3897 = vmatmul.mubr.bf16.gmra.mxu0 %v3785
      %v3898 = vpop.f32.mrf.mxu0
      %v3899 = vadd.f32 %v3739, %v3898
      %v3900 = vpop.f32.mrf.mxu0
      %v3901 = vadd.f32 %v3739, %v3900
      %v3902 = vpop.f32.mrf.mxu0
      %v3903 = vadd.f32 %v3744, %v3902
      %v3904 = vpop.f32.mrf.mxu0
      %v3905 = vadd.f32 %v3744, %v3904
      %3906 = vmatprep.mubr.bf16.mxu0 0
      %3907 = vmatmul.mubr.bf16.gmra.mxu0 %v3786
      %v3908 = vpop.f32.mrf.mxu0
      %v3909 = vadd.f32 %v3749, %v3908
      %v3910 = vpop.f32.mrf.mxu0
      %v3911 = vadd.f32 %v3749, %v3910
      %v3912 = vpop.f32.mrf.mxu0
      %v3913 = vadd.f32 %v3754, %v3912
      %v3914 = vpop.f32.mrf.mxu0
      %v3915 = vadd.f32 %v3754, %v3914
      %3916 = vmatprep.mubr.bf16.mxu0 0
      %3917 = vmatmul.mubr.bf16.gmra.mxu0 %v3787
      %v3918 = vpop.f32.mrf.mxu0
      %v3919 = vadd.f32 %v3759, %v3918
      %v3920 = vpop.f32.mrf.mxu0
      %v3921 = vadd.f32 %v3759, %v3920
      %v3922 = vpop.f32.mrf.mxu0
      %v3923 = vadd.f32 %v3764, %v3922
      %v3924 = vpop.f32.mrf.mxu0
      %v3925 = vadd.f32 %v3764, %v3924
      %3926 = vmatprep.mubr.bf16.mxu0 0
      %3927 = vmatmul.mubr.bf16.gmra.mxu0 %v3788
      %v3928 = vpop.f32.mrf.mxu0
      %v3929 = vadd.f32 %v3769, %v3928
      %v3930 = vpop.f32.mrf.mxu0
      %v3931 = vadd.f32 %v3769, %v3930
      %v3932 = vpop.f32.mrf.mxu0
      %v3933 = vpop.f32.mrf.mxu0
      %3934 = vdwg.mxu0
      %vm3935 = vcmp.ge.f32.partialorder %v3828, 0.0
      %vm3936 = vcmp.ge.f32.partialorder %v3830, 0.0
      %vm3937 = vcmp.ge.f32.partialorder %v3899, 0.0
      %vm3938 = vcmp.ge.f32.partialorder %v3901, 0.0
      %vm3939 = vcmp.ge.f32.partialorder %v3832, 0.0
      %vm3940 = vcmp.ge.f32.partialorder %v3834, 0.0
      %vm3941 = vcmp.ge.f32.partialorder %v3903, 0.0
      %vm3942 = vcmp.ge.f32.partialorder %v3905, 0.0
      %vm3943 = vcmp.ge.f32.partialorder %v3838, 0.0
      %vm3944 = vcmp.ge.f32.partialorder %v3840, 0.0
      %vm3945 = vcmp.ge.f32.partialorder %v3909, 0.0
      %vm3946 = vcmp.ge.f32.partialorder %v3911, 0.0
      %vm3947 = vcmp.ge.f32.partialorder %v3842, 0.0
      %vm3948 = vcmp.ge.f32.partialorder %v3844, 0.0
      %vm3949 = vcmp.ge.f32.partialorder %v3913, 0.0
      %vm3950 = vcmp.ge.f32.partialorder %v3915, 0.0
      %vm3951 = vcmp.ge.f32.partialorder %v3848, 0.0
      %vm3952 = vcmp.ge.f32.partialorder %v3850, 0.0
      %vm3953 = vcmp.ge.f32.partialorder %v3919, 0.0
      %vm3954 = vcmp.ge.f32.partialorder %v3921, 0.0
      %vm3955 = vcmp.ge.f32.partialorder %v3852, 0.0
      %vm3956 = vcmp.ge.f32.partialorder %v3854, 0.0
      %vm3957 = vcmp.ge.f32.partialorder %v3923, 0.0
      %vm3958 = vcmp.ge.f32.partialorder %v3925, 0.0
      %vm3959 = vcmp.ge.f32.partialorder %v3858, 0.0
      %vm3960 = vcmp.ge.f32.partialorder %v3860, 0.0
      %vm3961 = vcmp.ge.f32.partialorder %v3929, 0.0
      %vm3962 = vcmp.ge.f32.partialorder %v3931, 0.0
      %v3963 = vmul.f32 %v3828, 0.01
      %v3964 = vmul.f32 %v3830, 0.01
      %v3965 = vmul.f32 %v3899, 0.01
      %v3966 = vmul.f32 %v3901, 0.01
      %v3967 = vmul.f32 %v3832, 0.01
      %v3968 = vmul.f32 %v3834, 0.01
      %v3969 = vmul.f32 %v3903, 0.01
      %v3970 = vmul.f32 %v3905, 0.01
      %v3971 = vmul.f32 %v3838, 0.01
      %v3972 = vmul.f32 %v3840, 0.01
      %v3973 = vmul.f32 %v3909, 0.01
      %v3974 = vmul.f32 %v3911, 0.01
      %v3975 = vmul.f32 %v3842, 0.01
      %v3976 = vmul.f32 %v3844, 0.01
      %v3977 = vmul.f32 %v3913, 0.01
      %v3978 = vmul.f32 %v3915, 0.01
      %v3979 = vmul.f32 %v3848, 0.01
      %v3980 = vmul.f32 %v3850, 0.01
      %v3981 = vmul.f32 %v3919, 0.01
      %v3982 = vmul.f32 %v3921, 0.01
      %v3983 = vmul.f32 %v3852, 0.01
      %v3984 = vmul.f32 %v3854, 0.01
      %v3985 = vmul.f32 %v3923, 0.01
      %v3986 = vmul.f32 %v3925, 0.01
      %v3987 = vmul.f32 %v3858, 0.01
      %v3988 = vmul.f32 %v3860, 0.01
      %v3989 = vmul.f32 %v3929, 0.01
      %v3990 = vmul.f32 %v3931, 0.01
      %v3991 = vsel %vm3935, %v3828, %v3963
      %v3992 = vsel %vm3936, %v3830, %v3964
      %v3993 = vsel %vm3937, %v3899, %v3965
      %v3994 = vsel %vm3938, %v3901, %v3966
      %v3995 = vsel %vm3939, %v3832, %v3967
      %v3996 = vsel %vm3940, %v3834, %v3968
      %v3997 = vsel %vm3941, %v3903, %v3969
      %v3998 = vsel %vm3942, %v3905, %v3970
      %v3999 = vsel %vm3943, %v3838, %v3971
      %v4000 = vsel %vm3944, %v3840, %v3972
      %v4001 = vsel %vm3945, %v3909, %v3973
      %v4002 = vsel %vm3946, %v3911, %v3974
      %v4003 = vsel %vm3947, %v3842, %v3975
      %v4004 = vsel %vm3948, %v3844, %v3976
      %v4005 = vsel %vm3949, %v3913, %v3977
      %v4006 = vsel %vm3950, %v3915, %v3978
      %v4007 = vsel %vm3951, %v3848, %v3979
      %v4008 = vsel %vm3952, %v3850, %v3980
      %v4009 = vsel %vm3953, %v3919, %v3981
      %v4010 = vsel %vm3954, %v3921, %v3982
      %v4011 = vsel %vm3955, %v3852, %v3983
      %v4012 = vsel %vm3956, %v3854, %v3984
      %v4013 = vsel %vm3957, %v3923, %v3985
      %v4014 = vsel %vm3958, %v3925, %v3986
      %v4015 = vsel %vm3959, %v3858, %v3987
      %v4016 = vsel %vm3960, %v3860, %v3988
      %v4017 = vsel %vm3961, %v3929, %v3989
      %v4018 = vsel %vm3962, %v3931, %v3990
      %vm4027 = vcmask 1041408
      %v4028 = vrot.slane %v3061, 6
      %v4029 = vrot.slane %v3062, 6
      %v4030 = vrot.slane %v3063, 6
      %v4031 = vrot.slane %v3064, 6
      %v4032 = vrot.slane %v2989, 6
      %v4033 = vsel %vm4027, %v4028, %v4032
      %v4034 = vrot.slane %v2991, 6
      %v4035 = vsel %vm4027, %v4029, %v4034
      %v4036 = vrot.slane %v2993, 6
      %v4037 = vsel %vm4027, %v4030, %v4036
      %v4038 = vrot.slane %v2995, 6
      %v4039 = vsel %vm4027, %v4031, %v4038
      %v4040 = vrot.slane %v3065, 6
      %v4041 = vsel %vm4027, %v4032, %v4040
      %v4042 = vrot.slane %v3066, 6
      %v4043 = vsel %vm4027, %v4034, %v4042
      %v4044 = vrot.slane %v3067, 6
      %v4045 = vsel %vm4027, %v4036, %v4044
      %v4046 = vrot.slane %v3068, 6
      %v4047 = vsel %vm4027, %v4038, %v4046
      %v4048 = vrot.slane %v3034, 6
      %v4049 = vsel %vm4027, %v4040, %v4048
      %v4050 = vrot.slane %v3036, 6
      %v4051 = vsel %vm4027, %v4042, %v4050
      %v4052 = vrot.slane %v3038, 6
      %v4053 = vsel %vm4027, %v4044, %v4052
      %v4054 = vrot.slane %v3040, 6
      %v4055 = vsel %vm4027, %v4046, %v4054
      %v4056 = vrot.slane %v3042, 6
      %v4057 = vsel %vm4027, %v4048, %v4056
      %v4058 = vrot.slane %v3044, 6
      %v4059 = vsel %vm4027, %v4050, %v4058
      %v4060 = vrot.slane %v3046, 6
      %v4061 = vsel %vm4027, %v4052, %v4060
      %v4062 = vrot.slane %v3048, 6
      %v4063 = vsel %vm4027, %v4054, %v4062
      %v4088 = vsel %vm4027, %v4015, %v4028
      %v4089 = vsel %vm4027, %v4016, %v4029
      %v4090 = vsel %vm4027, %v4017, %v4030
      %v4091 = vsel %vm4027, %v4018, %v4031
      %v4092 = vld [vmem:[%s5] sm:$0xf]
      %v4093 = vld [vmem:[%s5 + $0x4] sm:$0xf]
      %v4094 = vld [vmem:[%s5 + $0x8] sm:$0xf]
      %v4095 = vld [vmem:[%s5 + $0xc] sm:$0xf]
      %v4096 = vld [vmem:[%s5 + $0x10] sm:$0xf]
      %v4097 = vld [vmem:[%s5 + $0x14] sm:$0xf]
      %v4098 = vld [vmem:[%s5 + $0x18] sm:$0xf]
      %v4099 = vld [vmem:[%s5 + $0x1c] sm:$0xf]
      %v4100 = vld [vmem:[%s5 + $0x20] sm:$0xf]
      %v4101 = vld [vmem:[%s5 + $0x24] sm:$0xf]
      %v4102 = vld [vmem:[%s5 + $0x28] sm:$0xf]
      %v4103 = vld [vmem:[%s5 + $0x2c] sm:$0xf]
      %v4104 = vld [vmem:[%s5 + $0x30] sm:$0xf]
      %v4105 = vld [vmem:[%s5 + $0x34] sm:$0xf]
      %v4106 = vld [vmem:[%s5 + $0x38] sm:$0xf]
      %v4107 = vld [vmem:[%s5 + $0x3c] sm:$0xf]
      %v4108 = vpack.c.bf16 %v3995, %v3991
      %v4109 = vpack.c.bf16 %v3996, %v3992
      %v4110 = vpack.c.bf16 %v3997, %v3993
      %v4111 = vpack.c.bf16 %v3998, %v3994
      %v4112 = vpack.c.bf16 %v4003, %v3999
      %v4113 = vpack.c.bf16 %v4004, %v4000
      %v4114 = vpack.c.bf16 %v4005, %v4001
      %v4115 = vpack.c.bf16 %v4006, %v4002
      %v4116 = vpack.c.bf16 %v4011, %v4007
      %v4117 = vpack.c.bf16 %v4012, %v4008
      %v4118 = vpack.c.bf16 %v4013, %v4009
      %v4119 = vpack.c.bf16 %v4014, %v4010
      %v4120 = vpack.c.bf16 %v4033, %v4088
      %v4121 = vpack.c.bf16 %v4035, %v4089
      %v4122 = vpack.c.bf16 %v4037, %v4090
      %v4123 = vpack.c.bf16 %v4039, %v4091
      %v4124 = vpack.c.bf16 %v4049, %v4041
      %v4125 = vpack.c.bf16 %v4051, %v4043
      %v4126 = vpack.c.bf16 %v4053, %v4045
      %v4127 = vpack.c.bf16 %v4055, %v4047
      %v4128 = vpack.c.bf16 %v4056, %v4057
      %v4129 = vpack.c.bf16 %v4058, %v4059
      %v4130 = vpack.c.bf16 %v4060, %v4061
      %v4131 = vpack.c.bf16 %v4062, %v4063
      %v4132 = vld [vmem:[%s6] sm:$0xff]
      %v4133 = vld [vmem:[%s6 + $0x8] sm:$0xff]
      %v4134 = vld [vmem:[%s6 + $0x10] sm:$0xff]
      %v4135 = vld [vmem:[%s6 + $0x18] sm:$0xff]
      %v4136 = vld [vmem:[%s6 + $0x20] sm:$0xff]
      %v4137 = vld [vmem:[%s6 + $0x28] sm:$0xff]
      %v4138 = vld [vmem:[%s6 + $0x30] sm:$0xff]
      %v4139 = vld [vmem:[%s6 + $0x38] sm:$0xff]
      %v4140 = vld [vmem:[%s6 + $0x40] sm:$0xff]
      %v4141 = vld [vmem:[%s6 + $0x48] sm:$0xff]
      %v4142 = vld [vmem:[%s6 + $0x50] sm:$0xff]
      %v4143 = vld [vmem:[%s6 + $0x58] sm:$0xff]
      %v4144 = vld [vmem:[%s6 + $0x60] sm:$0xff]
      %v4145 = vld [vmem:[%s6 + $0x68] sm:$0xff]
      %v4146 = vld [vmem:[%s6 + $0x70] sm:$0xff]
      %v4147 = vld [vmem:[%s6 + $0x78] sm:$0xff]
      %4149 = vset.pattern.permute.xlu0 0
      %4150 = vperm.xlu0 %4149, %v4132
      %v4151 = vpop.permute.xlu0 %4150
      %4154 = vset.pattern.permute.xlu0 0
      %4155 = vperm.xlu0 %4154, %v4133
      %v4156 = vpop.permute.xlu0 %4155
      %4159 = vset.pattern.permute.xlu0 0
      %4160 = vperm.xlu0 %4159, %v4134
      %v4161 = vpop.permute.xlu0 %4160
      %4164 = vset.pattern.permute.xlu0 0
      %4165 = vperm.xlu0 %4164, %v4135
      %v4166 = vpop.permute.xlu0 %4165
      %4169 = vset.pattern.permute.xlu0 0
      %4170 = vperm.xlu0 %4169, %v4136
      %v4171 = vpop.permute.xlu0 %4170
      %4174 = vset.pattern.permute.xlu0 0
      %4175 = vperm.xlu0 %4174, %v4137
      %v4176 = vpop.permute.xlu0 %4175
      %4179 = vset.pattern.permute.xlu0 0
      %4180 = vperm.xlu0 %4179, %v4138
      %v4181 = vpop.permute.xlu0 %4180
      %4184 = vset.pattern.permute.xlu0 0
      %4185 = vperm.xlu0 %4184, %v4139
      %v4186 = vpop.permute.xlu0 %4185
      %4189 = vset.pattern.permute.xlu0 0
      %4190 = vperm.xlu0 %4189, %v4140
      %v4191 = vpop.permute.xlu0 %4190
      %4194 = vset.pattern.permute.xlu0 0
      %4195 = vperm.xlu0 %4194, %v4141
      %v4196 = vpop.permute.xlu0 %4195
      %4199 = vset.pattern.permute.xlu0 0
      %4200 = vperm.xlu0 %4199, %v4142
      %v4201 = vpop.permute.xlu0 %4200
      %4204 = vset.pattern.permute.xlu0 0
      %4205 = vperm.xlu0 %4204, %v4143
      %v4206 = vpop.permute.xlu0 %4205
      %4209 = vset.pattern.permute.xlu0 0
      %4210 = vperm.xlu0 %4209, %v4144
      %v4211 = vpop.permute.xlu0 %4210
      %4214 = vset.pattern.permute.xlu0 0
      %4215 = vperm.xlu0 %4214, %v4145
      %v4216 = vpop.permute.xlu0 %4215
      %4219 = vset.pattern.permute.xlu0 0
      %4220 = vperm.xlu0 %4219, %v4146
      %v4221 = vpop.permute.xlu0 %4220
      %4224 = vset.pattern.permute.xlu0 0
      %4225 = vperm.xlu0 %4224, %v4147
      %v4226 = vpop.permute.xlu0 %4225
      %v4244 = vunpack.c.l.b16 %v4092
      %v4245 = vunpack.c.l.b16 %v4093
      %v4246 = vunpack.c.l.b16 %v4094
      %v4247 = vunpack.c.l.b16 %v4095
      %v4248 = vunpack.c.l.b16 %v4096
      %v4249 = vunpack.c.l.b16 %v4097
      %v4250 = vunpack.c.l.b16 %v4098
      %v4251 = vunpack.c.l.b16 %v4099
      %v4252 = vunpack.c.l.b16 %v4100
      %v4253 = vunpack.c.l.b16 %v4101
      %v4254 = vunpack.c.l.b16 %v4102
      %v4255 = vunpack.c.l.b16 %v4103
      %v4256 = vunpack.c.l.b16 %v4104
      %v4257 = vunpack.c.l.b16 %v4105
      %v4258 = vunpack.c.l.b16 %v4106
      %v4259 = vunpack.c.l.b16 %v4107
      %v4260 = vpack.c.b16 %v4245, %v4244
      %v4261 = vpack.c.b16 %v4247, %v4246
      %v4262 = vpack.c.b16 %v4249, %v4248
      %v4263 = vpack.c.b16 %v4251, %v4250
      %v4264 = vpack.c.b16 %v4253, %v4252
      %v4265 = vpack.c.b16 %v4255, %v4254
      %v4266 = vpack.c.b16 %v4257, %v4256
      %v4267 = vpack.c.b16 %v4259, %v4258
      %vm4268 = vcmask 728064
      %v4270 = vsel %vm4268, %v4260, 0
      %v4273 = vsel %vm4268, %v4261, 0
      %v4276 = vsel %vm4268, %v4262, 0
      %v4279 = vsel %vm4268, %v4263, 0
      %v4282 = vsel %vm4268, %v4264, 0
      %v4285 = vsel %vm4268, %v4265, 0
      %v4288 = vsel %vm4268, %v4266, 0
      %v4291 = vsel %vm4268, %v4267, 0
      %v4293 = vsel %vm478, 4294967295, 65535
      %v4294 = vsel %vm3028, %v4293, 0
      %v4296 = vand.u32 %v4128, %v4294
      %v4299 = vand.u32 %v4129, %v4294
      %v4302 = vand.u32 %v4130, %v4294
      %v4305 = vand.u32 %v4131, %v4294
      %4307 = vmatprep.subr.bf16.mxu0 0
      %4308 = vmatpush1.bf16.msra.mxu0 0
      %4309 = vmatprep.subr.bf16.mxu0 0
      %4310 = vmatpush1.bf16.msra.mxu0 0
      %4311 = vmatprep.subr.bf16.mxu0 %v4299
      %4312 = vmatpush1.bf16.msra.mxu0 %v4296
      %4313 = vmatprep.subr.bf16.mxu0 %v4125
      %4314 = vmatpush1.bf16.msra.mxu0 %v4124
      %4315 = vmatprep.subr.bf16.mxu0 %v4121
      %4316 = vmatpush1.bf16.msra.mxu0 %v4120
      %4317 = vmatprep.subr.bf16.mxu0 %v4117
      %4318 = vmatpush1.bf16.msra.mxu0 %v4116
      %4319 = vmatprep.subr.bf16.mxu0 %v4113
      %4320 = vmatpush1.bf16.msra.mxu0 %v4112
      %4321 = vmatprep.subr.bf16.mxu0 %v4109
      %4322 = vmatpush1.bf16.msra.mxu0 %v4108
      %4323 = vmatprep.subr.bf16.mxu0 0
      %4324 = vmatpush2.bf16.msra.mxu0 0
      %4325 = vmatprep.subr.bf16.mxu0 0
      %4326 = vmatpush2.bf16.msra.mxu0 0
      %4327 = vmatprep.subr.bf16.mxu0 0
      %4328 = vmatpush2.bf16.msra.mxu0 0
      %4329 = vmatprep.subr.bf16.mxu0 0
      %4330 = vmatpush2.bf16.msra.mxu0 0
      %4331 = vmatprep.subr.bf16.mxu0 0
      %4332 = vmatpush2.bf16.msra.mxu0 0
      %4333 = vmatprep.subr.bf16.mxu0 0
      %4334 = vmatpush2.bf16.msra.mxu0 0
      %4335 = vmatprep.subr.bf16.mxu0 0
      %4336 = vmatpush2.bf16.msra.mxu0 0
      %4337 = vmatprep.subr.bf16.mxu0 0
      %4338 = vmatpush2.bf16.msra.mxu0 0
      %4339 = vmatprep.mubr.bf16.mxu0 0
      %4340 = vmatmul.mubr.bf16.gmra.mxu0 %v4270
      %v4341 = vpop.f32.mrf.mxu0
      %v4342 = vadd.f32 %v4151, %v4341
      %v4343 = vpop.f32.mrf.mxu0
      %v4344 = vadd.f32 %v4151, %v4343
      %v4345 = vpop.f32.mrf.mxu0
      %v4346 = vadd.f32 %v4156, %v4345
      %v4347 = vpop.f32.mrf.mxu0
      %v4348 = vadd.f32 %v4156, %v4347
      %4349 = vmatprep.mubr.bf16.mxu0 0
      %4350 = vmatmul.mubr.bf16.gmra.mxu0 %v4273
      %v4351 = vpop.f32.mrf.mxu0
      %v4352 = vadd.f32 %v4161, %v4351
      %v4353 = vpop.f32.mrf.mxu0
      %v4354 = vadd.f32 %v4161, %v4353
      %v4355 = vpop.f32.mrf.mxu0
      %v4356 = vadd.f32 %v4166, %v4355
      %v4357 = vpop.f32.mrf.mxu0
      %v4358 = vadd.f32 %v4166, %v4357
      %4359 = vmatprep.mubr.bf16.mxu0 0
      %4360 = vmatmul.mubr.bf16.gmra.mxu0 %v4276
      %v4361 = vpop.f32.mrf.mxu0
      %v4362 = vadd.f32 %v4171, %v4361
      %v4363 = vpop.f32.mrf.mxu0
      %v4364 = vadd.f32 %v4171, %v4363
      %v4365 = vpop.f32.mrf.mxu0
      %v4366 = vadd.f32 %v4176, %v4365
      %v4367 = vpop.f32.mrf.mxu0
      %v4368 = vadd.f32 %v4176, %v4367
      %4369 = vmatprep.mubr.bf16.mxu0 0
      %4370 = vmatmul.mubr.bf16.gmra.mxu0 %v4279
      %v4371 = vpop.f32.mrf.mxu0
      %v4372 = vadd.f32 %v4181, %v4371
      %v4373 = vpop.f32.mrf.mxu0
      %v4374 = vadd.f32 %v4181, %v4373
      %v4375 = vpop.f32.mrf.mxu0
      %v4376 = vadd.f32 %v4186, %v4375
      %v4377 = vpop.f32.mrf.mxu0
      %v4378 = vadd.f32 %v4186, %v4377
      %4379 = vmatprep.mubr.bf16.mxu0 0
      %4380 = vmatmul.mubr.bf16.gmra.mxu0 %v4282
      %v4381 = vpop.f32.mrf.mxu0
      %v4382 = vadd.f32 %v4191, %v4381
      %v4383 = vpop.f32.mrf.mxu0
      %v4384 = vadd.f32 %v4191, %v4383
      %v4385 = vpop.f32.mrf.mxu0
      %v4386 = vadd.f32 %v4196, %v4385
      %v4387 = vpop.f32.mrf.mxu0
      %v4388 = vadd.f32 %v4196, %v4387
      %4389 = vmatprep.mubr.bf16.mxu0 0
      %4390 = vmatmul.mubr.bf16.gmra.mxu0 %v4285
      %v4391 = vpop.f32.mrf.mxu0
      %v4392 = vadd.f32 %v4201, %v4391
      %v4393 = vpop.f32.mrf.mxu0
      %v4394 = vadd.f32 %v4201, %v4393
      %v4395 = vpop.f32.mrf.mxu0
      %v4396 = vadd.f32 %v4206, %v4395
      %v4397 = vpop.f32.mrf.mxu0
      %v4398 = vadd.f32 %v4206, %v4397
      %4399 = vmatprep.mubr.bf16.mxu0 0
      %4400 = vmatmul.mubr.bf16.gmra.mxu0 %v4288
      %v4401 = vpop.f32.mrf.mxu0
      %v4402 = vadd.f32 %v4211, %v4401
      %v4403 = vpop.f32.mrf.mxu0
      %v4404 = vadd.f32 %v4211, %v4403
      %v4405 = vpop.f32.mrf.mxu0
      %v4406 = vadd.f32 %v4216, %v4405
      %v4407 = vpop.f32.mrf.mxu0
      %v4408 = vadd.f32 %v4216, %v4407
      %4409 = vmatprep.mubr.bf16.mxu0 0
      %4410 = vmatmul.mubr.bf16.gmra.mxu0 %v4291
      %v4411 = vpop.f32.mrf.mxu0
      %v4412 = vadd.f32 %v4221, %v4411
      %v4413 = vpop.f32.mrf.mxu0
      %v4414 = vadd.f32 %v4221, %v4413
      %v4415 = vpop.f32.mrf.mxu0
      %v4416 = vadd.f32 %v4226, %v4415
      %v4417 = vpop.f32.mrf.mxu0
      %v4418 = vadd.f32 %v4226, %v4417
      %4419 = vdwg.mxu0
      %4420 = vmatprep.subr.bf16.mxu0 0
      %4421 = vmatpush1.bf16.msra.mxu0 0
      %4422 = vmatprep.subr.bf16.mxu0 0
      %4423 = vmatpush1.bf16.msra.mxu0 0
      %4424 = vmatprep.subr.bf16.mxu0 %v4305
      %4425 = vmatpush1.bf16.msra.mxu0 %v4302
      %4426 = vmatprep.subr.bf16.mxu0 %v4127
      %4427 = vmatpush1.bf16.msra.mxu0 %v4126
      %4428 = vmatprep.subr.bf16.mxu0 %v4123
      %4429 = vmatpush1.bf16.msra.mxu0 %v4122
      %4430 = vmatprep.subr.bf16.mxu0 %v4119
      %4431 = vmatpush1.bf16.msra.mxu0 %v4118
      %4432 = vmatprep.subr.bf16.mxu0 %v4115
      %4433 = vmatpush1.bf16.msra.mxu0 %v4114
      %4434 = vmatprep.subr.bf16.mxu0 %v4111
      %4435 = vmatpush1.bf16.msra.mxu0 %v4110
      %4436 = vmatprep.subr.bf16.mxu0 0
      %4437 = vmatpush2.bf16.msra.mxu0 0
      %4438 = vmatprep.subr.bf16.mxu0 0
      %4439 = vmatpush2.bf16.msra.mxu0 0
      %4440 = vmatprep.subr.bf16.mxu0 0
      %4441 = vmatpush2.bf16.msra.mxu0 0
      %4442 = vmatprep.subr.bf16.mxu0 0
      %4443 = vmatpush2.bf16.msra.mxu0 0
      %4444 = vmatprep.subr.bf16.mxu0 0
      %4445 = vmatpush2.bf16.msra.mxu0 0
      %4446 = vmatprep.subr.bf16.mxu0 0
      %4447 = vmatpush2.bf16.msra.mxu0 0
      %4448 = vmatprep.subr.bf16.mxu0 0
      %4449 = vmatpush2.bf16.msra.mxu0 0
      %4450 = vmatprep.subr.bf16.mxu0 0
      %4451 = vmatpush2.bf16.msra.mxu0 0
      %4452 = vmatprep.mubr.bf16.mxu0 0
      %4453 = vmatmul.mubr.bf16.gmra.mxu0 %v4270
      %v4454 = vpop.f32.mrf.mxu0
      %v4455 = vadd.f32 %v4151, %v4454
      %v4456 = vpop.f32.mrf.mxu0
      %v4457 = vadd.f32 %v4151, %v4456
      %v4458 = vpop.f32.mrf.mxu0
      %v4459 = vadd.f32 %v4156, %v4458
      %v4460 = vpop.f32.mrf.mxu0
      %v4461 = vadd.f32 %v4156, %v4460
      %4462 = vmatprep.mubr.bf16.mxu0 0
      %4463 = vmatmul.mubr.bf16.gmra.mxu0 %v4273
      %v4464 = vpop.f32.mrf.mxu0
      %v4465 = vadd.f32 %v4161, %v4464
      %v4466 = vpop.f32.mrf.mxu0
      %v4467 = vadd.f32 %v4161, %v4466
      %v4468 = vpop.f32.mrf.mxu0
      %v4469 = vadd.f32 %v4166, %v4468
      %v4470 = vpop.f32.mrf.mxu0
      %v4471 = vadd.f32 %v4166, %v4470
      %4472 = vmatprep.mubr.bf16.mxu0 0
      %4473 = vmatmul.mubr.bf16.gmra.mxu0 %v4276
      %v4474 = vpop.f32.mrf.mxu0
      %v4475 = vadd.f32 %v4171, %v4474
      %v4476 = vpop.f32.mrf.mxu0
      %v4477 = vadd.f32 %v4171, %v4476
      %v4478 = vpop.f32.mrf.mxu0
      %v4479 = vadd.f32 %v4176, %v4478
      %v4480 = vpop.f32.mrf.mxu0
      %v4481 = vadd.f32 %v4176, %v4480
      %4482 = vmatprep.mubr.bf16.mxu0 0
      %4483 = vmatmul.mubr.bf16.gmra.mxu0 %v4279
      %v4484 = vpop.f32.mrf.mxu0
      %v4485 = vadd.f32 %v4181, %v4484
      %v4486 = vpop.f32.mrf.mxu0
      %v4487 = vadd.f32 %v4181, %v4486
      %v4488 = vpop.f32.mrf.mxu0
      %v4489 = vadd.f32 %v4186, %v4488
      %v4490 = vpop.f32.mrf.mxu0
      %v4491 = vadd.f32 %v4186, %v4490
      %4492 = vmatprep.mubr.bf16.mxu0 0
      %4493 = vmatmul.mubr.bf16.gmra.mxu0 %v4282
      %v4494 = vpop.f32.mrf.mxu0
      %v4495 = vadd.f32 %v4191, %v4494
      %v4496 = vpop.f32.mrf.mxu0
      %v4497 = vadd.f32 %v4191, %v4496
      %v4498 = vpop.f32.mrf.mxu0
      %v4499 = vadd.f32 %v4196, %v4498
      %v4500 = vpop.f32.mrf.mxu0
      %v4501 = vadd.f32 %v4196, %v4500
      %4502 = vmatprep.mubr.bf16.mxu0 0
      %4503 = vmatmul.mubr.bf16.gmra.mxu0 %v4285
      %v4504 = vpop.f32.mrf.mxu0
      %v4505 = vadd.f32 %v4201, %v4504
      %v4506 = vpop.f32.mrf.mxu0
      %v4507 = vadd.f32 %v4201, %v4506
      %v4508 = vpop.f32.mrf.mxu0
      %v4509 = vadd.f32 %v4206, %v4508
      %v4510 = vpop.f32.mrf.mxu0
      %v4511 = vadd.f32 %v4206, %v4510
      %4512 = vmatprep.mubr.bf16.mxu0 0
      %4513 = vmatmul.mubr.bf16.gmra.mxu0 %v4288
      %v4514 = vpop.f32.mrf.mxu0
      %v4515 = vadd.f32 %v4211, %v4514
      %v4516 = vpop.f32.mrf.mxu0
      %v4517 = vadd.f32 %v4211, %v4516
      %v4518 = vpop.f32.mrf.mxu0
      %v4519 = vadd.f32 %v4216, %v4518
      %v4520 = vpop.f32.mrf.mxu0
      %v4521 = vadd.f32 %v4216, %v4520
      %4522 = vmatprep.mubr.bf16.mxu0 0
      %4523 = vmatmul.mubr.bf16.gmra.mxu0 %v4291
      %v4524 = vpop.f32.mrf.mxu0
      %v4525 = vadd.f32 %v4221, %v4524
      %v4526 = vpop.f32.mrf.mxu0
      %v4527 = vadd.f32 %v4221, %v4526
      %v4528 = vpop.f32.mrf.mxu0
      %v4529 = vadd.f32 %v4226, %v4528
      %v4530 = vpop.f32.mrf.mxu0
      %v4531 = vadd.f32 %v4226, %v4530
      %4532 = vdwg.mxu0
      %vm4533 = vcmp.ge.f32.partialorder %v4342, 0.0
      %vm4534 = vcmp.ge.f32.partialorder %v4344, 0.0
      %vm4535 = vcmp.ge.f32.partialorder %v4455, 0.0
      %vm4536 = vcmp.ge.f32.partialorder %v4457, 0.0
      %vm4537 = vcmp.ge.f32.partialorder %v4346, 0.0
      %vm4538 = vcmp.ge.f32.partialorder %v4348, 0.0
      %vm4539 = vcmp.ge.f32.partialorder %v4459, 0.0
      %vm4540 = vcmp.ge.f32.partialorder %v4461, 0.0
      %vm4541 = vcmp.ge.f32.partialorder %v4352, 0.0
      %vm4542 = vcmp.ge.f32.partialorder %v4354, 0.0
      %vm4543 = vcmp.ge.f32.partialorder %v4465, 0.0
      %vm4544 = vcmp.ge.f32.partialorder %v4467, 0.0
      %vm4545 = vcmp.ge.f32.partialorder %v4356, 0.0
      %vm4546 = vcmp.ge.f32.partialorder %v4358, 0.0
      %vm4547 = vcmp.ge.f32.partialorder %v4469, 0.0
      %vm4548 = vcmp.ge.f32.partialorder %v4471, 0.0
      %vm4549 = vcmp.ge.f32.partialorder %v4362, 0.0
      %vm4550 = vcmp.ge.f32.partialorder %v4364, 0.0
      %vm4551 = vcmp.ge.f32.partialorder %v4475, 0.0
      %vm4552 = vcmp.ge.f32.partialorder %v4477, 0.0
      %vm4553 = vcmp.ge.f32.partialorder %v4366, 0.0
      %vm4554 = vcmp.ge.f32.partialorder %v4368, 0.0
      %vm4555 = vcmp.ge.f32.partialorder %v4479, 0.0
      %vm4556 = vcmp.ge.f32.partialorder %v4481, 0.0
      %vm4557 = vcmp.ge.f32.partialorder %v4372, 0.0
      %vm4558 = vcmp.ge.f32.partialorder %v4374, 0.0
      %vm4559 = vcmp.ge.f32.partialorder %v4485, 0.0
      %vm4560 = vcmp.ge.f32.partialorder %v4487, 0.0
      %vm4561 = vcmp.ge.f32.partialorder %v4376, 0.0
      %vm4562 = vcmp.ge.f32.partialorder %v4378, 0.0
      %vm4563 = vcmp.ge.f32.partialorder %v4489, 0.0
      %vm4564 = vcmp.ge.f32.partialorder %v4491, 0.0
      %vm4565 = vcmp.ge.f32.partialorder %v4382, 0.0
      %vm4566 = vcmp.ge.f32.partialorder %v4384, 0.0
      %vm4567 = vcmp.ge.f32.partialorder %v4495, 0.0
      %vm4568 = vcmp.ge.f32.partialorder %v4497, 0.0
      %vm4569 = vcmp.ge.f32.partialorder %v4386, 0.0
      %vm4570 = vcmp.ge.f32.partialorder %v4388, 0.0
      %vm4571 = vcmp.ge.f32.partialorder %v4499, 0.0
      %vm4572 = vcmp.ge.f32.partialorder %v4501, 0.0
      %vm4573 = vcmp.ge.f32.partialorder %v4392, 0.0
      %vm4574 = vcmp.ge.f32.partialorder %v4394, 0.0
      %vm4575 = vcmp.ge.f32.partialorder %v4505, 0.0
      %vm4576 = vcmp.ge.f32.partialorder %v4507, 0.0
      %vm4577 = vcmp.ge.f32.partialorder %v4396, 0.0
      %vm4578 = vcmp.ge.f32.partialorder %v4398, 0.0
      %vm4579 = vcmp.ge.f32.partialorder %v4509, 0.0
      %vm4580 = vcmp.ge.f32.partialorder %v4511, 0.0
      %vm4581 = vcmp.ge.f32.partialorder %v4402, 0.0
      %vm4582 = vcmp.ge.f32.partialorder %v4404, 0.0
      %vm4583 = vcmp.ge.f32.partialorder %v4515, 0.0
      %vm4584 = vcmp.ge.f32.partialorder %v4517, 0.0
      %vm4585 = vcmp.ge.f32.partialorder %v4406, 0.0
      %vm4586 = vcmp.ge.f32.partialorder %v4408, 0.0
      %vm4587 = vcmp.ge.f32.partialorder %v4519, 0.0
      %vm4588 = vcmp.ge.f32.partialorder %v4521, 0.0
      %vm4589 = vcmp.ge.f32.partialorder %v4412, 0.0
      %vm4590 = vcmp.ge.f32.partialorder %v4414, 0.0
      %vm4591 = vcmp.ge.f32.partialorder %v4525, 0.0
      %vm4592 = vcmp.ge.f32.partialorder %v4527, 0.0
      %vm4593 = vcmp.ge.f32.partialorder %v4416, 0.0
      %vm4594 = vcmp.ge.f32.partialorder %v4418, 0.0
      %vm4595 = vcmp.ge.f32.partialorder %v4529, 0.0
      %vm4596 = vcmp.ge.f32.partialorder %v4531, 0.0
      %v4597 = vmul.f32 %v4342, 0.01
      %v4598 = vmul.f32 %v4344, 0.01
      %v4599 = vmul.f32 %v4455, 0.01
      %v4600 = vmul.f32 %v4457, 0.01
      %v4601 = vmul.f32 %v4346, 0.01
      %v4602 = vmul.f32 %v4348, 0.01
      %v4603 = vmul.f32 %v4459, 0.01
      %v4604 = vmul.f32 %v4461, 0.01
      %v4605 = vmul.f32 %v4352, 0.01
      %v4606 = vmul.f32 %v4354, 0.01
      %v4607 = vmul.f32 %v4465, 0.01
      %v4608 = vmul.f32 %v4467, 0.01
      %v4609 = vmul.f32 %v4356, 0.01
      %v4610 = vmul.f32 %v4358, 0.01
      %v4611 = vmul.f32 %v4469, 0.01
      %v4612 = vmul.f32 %v4471, 0.01
      %v4613 = vmul.f32 %v4362, 0.01
      %v4614 = vmul.f32 %v4364, 0.01
      %v4615 = vmul.f32 %v4475, 0.01
      %v4616 = vmul.f32 %v4477, 0.01
      %v4617 = vmul.f32 %v4366, 0.01
      %v4618 = vmul.f32 %v4368, 0.01
      %v4619 = vmul.f32 %v4479, 0.01
      %v4620 = vmul.f32 %v4481, 0.01
      %v4621 = vmul.f32 %v4372, 0.01
      %v4622 = vmul.f32 %v4374, 0.01
      %v4623 = vmul.f32 %v4485, 0.01
      %v4624 = vmul.f32 %v4487, 0.01
      %v4625 = vmul.f32 %v4376, 0.01
      %v4626 = vmul.f32 %v4378, 0.01
      %v4627 = vmul.f32 %v4489, 0.01
      %v4628 = vmul.f32 %v4491, 0.01
      %v4629 = vmul.f32 %v4382, 0.01
      %v4630 = vmul.f32 %v4384, 0.01
      %v4631 = vmul.f32 %v4495, 0.01
      %v4632 = vmul.f32 %v4497, 0.01
      %v4633 = vmul.f32 %v4386, 0.01
      %v4634 = vmul.f32 %v4388, 0.01
      %v4635 = vmul.f32 %v4499, 0.01
      %v4636 = vmul.f32 %v4501, 0.01
      %v4637 = vmul.f32 %v4392, 0.01
      %v4638 = vmul.f32 %v4394, 0.01
      %v4639 = vmul.f32 %v4505, 0.01
      %v4640 = vmul.f32 %v4507, 0.01
      %v4641 = vmul.f32 %v4396, 0.01
      %v4642 = vmul.f32 %v4398, 0.01
      %v4643 = vmul.f32 %v4509, 0.01
      %v4644 = vmul.f32 %v4511, 0.01
      %v4645 = vmul.f32 %v4402, 0.01
      %v4646 = vmul.f32 %v4404, 0.01
      %v4647 = vmul.f32 %v4515, 0.01
      %v4648 = vmul.f32 %v4517, 0.01
      %v4649 = vmul.f32 %v4406, 0.01
      %v4650 = vmul.f32 %v4408, 0.01
      %v4651 = vmul.f32 %v4519, 0.01
      %v4652 = vmul.f32 %v4521, 0.01
      %v4653 = vmul.f32 %v4412, 0.01
      %v4654 = vmul.f32 %v4414, 0.01
      %v4655 = vmul.f32 %v4525, 0.01
      %v4656 = vmul.f32 %v4527, 0.01
      %v4657 = vmul.f32 %v4416, 0.01
      %v4658 = vmul.f32 %v4418, 0.01
      %v4659 = vmul.f32 %v4529, 0.01
      %v4660 = vmul.f32 %v4531, 0.01
      %v4661 = vsel %vm4533, %v4342, %v4597
      %v4662 = vsel %vm4534, %v4344, %v4598
      %v4663 = vsel %vm4535, %v4455, %v4599
      %v4664 = vsel %vm4536, %v4457, %v4600
      %v4665 = vsel %vm4537, %v4346, %v4601
      %v4666 = vsel %vm4538, %v4348, %v4602
      %v4667 = vsel %vm4539, %v4459, %v4603
      %v4668 = vsel %vm4540, %v4461, %v4604
      %v4669 = vsel %vm4541, %v4352, %v4605
      %v4670 = vsel %vm4542, %v4354, %v4606
      %v4671 = vsel %vm4543, %v4465, %v4607
      %v4672 = vsel %vm4544, %v4467, %v4608
      %v4673 = vsel %vm4545, %v4356, %v4609
      %v4674 = vsel %vm4546, %v4358, %v4610
      %v4675 = vsel %vm4547, %v4469, %v4611
      %v4676 = vsel %vm4548, %v4471, %v4612
      %v4677 = vsel %vm4549, %v4362, %v4613
      %v4678 = vsel %vm4550, %v4364, %v4614
      %v4679 = vsel %vm4551, %v4475, %v4615
      %v4680 = vsel %vm4552, %v4477, %v4616
      %v4681 = vsel %vm4553, %v4366, %v4617
      %v4682 = vsel %vm4554, %v4368, %v4618
      %v4683 = vsel %vm4555, %v4479, %v4619
      %v4684 = vsel %vm4556, %v4481, %v4620
      %v4685 = vsel %vm4557, %v4372, %v4621
      %v4686 = vsel %vm4558, %v4374, %v4622
      %v4687 = vsel %vm4559, %v4485, %v4623
      %v4688 = vsel %vm4560, %v4487, %v4624
      %v4689 = vsel %vm4561, %v4376, %v4625
      %v4690 = vsel %vm4562, %v4378, %v4626
      %v4691 = vsel %vm4563, %v4489, %v4627
      %v4692 = vsel %vm4564, %v4491, %v4628
      %v4693 = vsel %vm4565, %v4382, %v4629
      %v4694 = vsel %vm4566, %v4384, %v4630
      %v4695 = vsel %vm4567, %v4495, %v4631
      %v4696 = vsel %vm4568, %v4497, %v4632
      %v4697 = vsel %vm4569, %v4386, %v4633
      %v4698 = vsel %vm4570, %v4388, %v4634
      %v4699 = vsel %vm4571, %v4499, %v4635
      %v4700 = vsel %vm4572, %v4501, %v4636
      %v4701 = vsel %vm4573, %v4392, %v4637
      %v4702 = vsel %vm4574, %v4394, %v4638
      %v4703 = vsel %vm4575, %v4505, %v4639
      %v4704 = vsel %vm4576, %v4507, %v4640
      %v4705 = vsel %vm4577, %v4396, %v4641
      %v4706 = vsel %vm4578, %v4398, %v4642
      %v4707 = vsel %vm4579, %v4509, %v4643
      %v4708 = vsel %vm4580, %v4511, %v4644
      %v4709 = vsel %vm4581, %v4402, %v4645
      %v4710 = vsel %vm4582, %v4404, %v4646
      %v4711 = vsel %vm4583, %v4515, %v4647
      %v4712 = vsel %vm4584, %v4517, %v4648
      %v4713 = vsel %vm4585, %v4406, %v4649
      %v4714 = vsel %vm4586, %v4408, %v4650
      %v4715 = vsel %vm4587, %v4519, %v4651
      %v4716 = vsel %vm4588, %v4521, %v4652
      %v4717 = vsel %vm4589, %v4412, %v4653
      %v4718 = vsel %vm4590, %v4414, %v4654
      %v4719 = vsel %vm4591, %v4525, %v4655
      %v4720 = vsel %vm4592, %v4527, %v4656
      %v4721 = vsel %vm4593, %v4416, %v4657
      %v4722 = vsel %vm4594, %v4418, %v4658
      %v4723 = vsel %vm4595, %v4529, %v4659
      %v4724 = vsel %vm4596, %v4531, %v4660
      %v4725 = vld [vmem:[%s7] sm:$0xf]
      %v4726 = vld [vmem:[%s7 + $0x4] sm:$0xf]
      %v4727 = vld [vmem:[%s7 + $0x8] sm:$0xf]
      %v4728 = vld [vmem:[%s7 + $0xc] sm:$0xf]
      %v4729 = vld [vmem:[%s7 + $0x10] sm:$0xf]
      %v4730 = vld [vmem:[%s7 + $0x14] sm:$0xf]
      %v4731 = vld [vmem:[%s7 + $0x18] sm:$0xf]
      %v4732 = vld [vmem:[%s7 + $0x1c] sm:$0xf]
      %v4733 = vld [vmem:[%s7 + $0x20] sm:$0xf]
      %v4734 = vld [vmem:[%s7 + $0x24] sm:$0xf]
      %v4735 = vld [vmem:[%s7 + $0x28] sm:$0xf]
      %v4736 = vld [vmem:[%s7 + $0x2c] sm:$0xf]
      %v4737 = vld [vmem:[%s7 + $0x30] sm:$0xf]
      %v4738 = vld [vmem:[%s7 + $0x34] sm:$0xf]
      %v4739 = vld [vmem:[%s7 + $0x38] sm:$0xf]
      %v4740 = vld [vmem:[%s7 + $0x3c] sm:$0xf]
      %v4741 = vpack.c.bf16 %v4665, %v4661
      %v4742 = vpack.c.bf16 %v4666, %v4662
      %v4743 = vpack.c.bf16 %v4667, %v4663
      %v4744 = vpack.c.bf16 %v4668, %v4664
      %v4745 = vpack.c.bf16 %v4673, %v4669
      %v4746 = vpack.c.bf16 %v4674, %v4670
      %v4747 = vpack.c.bf16 %v4675, %v4671
      %v4748 = vpack.c.bf16 %v4676, %v4672
      %v4749 = vpack.c.bf16 %v4681, %v4677
      %v4750 = vpack.c.bf16 %v4682, %v4678
      %v4751 = vpack.c.bf16 %v4683, %v4679
      %v4752 = vpack.c.bf16 %v4684, %v4680
      %v4753 = vpack.c.bf16 %v4689, %v4685
      %v4754 = vpack.c.bf16 %v4690, %v4686
      %v4755 = vpack.c.bf16 %v4691, %v4687
      %v4756 = vpack.c.bf16 %v4692, %v4688
      %v4757 = vpack.c.bf16 %v4697, %v4693
      %v4758 = vpack.c.bf16 %v4698, %v4694
      %v4759 = vpack.c.bf16 %v4699, %v4695
      %v4760 = vpack.c.bf16 %v4700, %v4696
      %v4761 = vpack.c.bf16 %v4705, %v4701
      %v4762 = vpack.c.bf16 %v4706, %v4702
      %v4763 = vpack.c.bf16 %v4707, %v4703
      %v4764 = vpack.c.bf16 %v4708, %v4704
      %v4765 = vpack.c.bf16 %v4713, %v4709
      %v4766 = vpack.c.bf16 %v4714, %v4710
      %v4767 = vpack.c.bf16 %v4715, %v4711
      %v4768 = vpack.c.bf16 %v4716, %v4712
      %v4769 = vpack.c.bf16 %v4721, %v4717
      %v4770 = vpack.c.bf16 %v4722, %v4718
      %v4771 = vpack.c.bf16 %v4723, %v4719
      %v4772 = vpack.c.bf16 %v4724, %v4720
      %v4773 = vld [vmem:[%s8] sm:$0xff]
      %v4774 = vld [vmem:[%s8 + $0x8] sm:$0xff]
      %v4775 = vld [vmem:[%s8 + $0x10] sm:$0xff]
      %v4776 = vld [vmem:[%s8 + $0x18] sm:$0xff]
      %v4777 = vld [vmem:[%s8 + $0x20] sm:$0xff]
      %v4778 = vld [vmem:[%s8 + $0x28] sm:$0xff]
      %v4779 = vld [vmem:[%s8 + $0x30] sm:$0xff]
      %v4780 = vld [vmem:[%s8 + $0x38] sm:$0xff]
      %v4781 = vld [vmem:[%s8 + $0x40] sm:$0xff]
      %v4782 = vld [vmem:[%s8 + $0x48] sm:$0xff]
      %v4783 = vld [vmem:[%s8 + $0x50] sm:$0xff]
      %v4784 = vld [vmem:[%s8 + $0x58] sm:$0xff]
      %v4785 = vld [vmem:[%s8 + $0x60] sm:$0xff]
      %v4786 = vld [vmem:[%s8 + $0x68] sm:$0xff]
      %v4787 = vld [vmem:[%s8 + $0x70] sm:$0xff]
      %v4788 = vld [vmem:[%s8 + $0x78] sm:$0xff]
      %4790 = vset.pattern.permute.xlu0 0
      %4791 = vperm.xlu0 %4790, %v4773
      %v4792 = vpop.permute.xlu0 %4791
      %4795 = vset.pattern.permute.xlu0 0
      %4796 = vperm.xlu0 %4795, %v4774
      %v4797 = vpop.permute.xlu0 %4796
      %4800 = vset.pattern.permute.xlu0 0
      %4801 = vperm.xlu0 %4800, %v4775
      %v4802 = vpop.permute.xlu0 %4801
      %4805 = vset.pattern.permute.xlu0 0
      %4806 = vperm.xlu0 %4805, %v4776
      %v4807 = vpop.permute.xlu0 %4806
      %4810 = vset.pattern.permute.xlu0 0
      %4811 = vperm.xlu0 %4810, %v4777
      %v4812 = vpop.permute.xlu0 %4811
      %4815 = vset.pattern.permute.xlu0 0
      %4816 = vperm.xlu0 %4815, %v4778
      %v4817 = vpop.permute.xlu0 %4816
      %4820 = vset.pattern.permute.xlu0 0
      %4821 = vperm.xlu0 %4820, %v4779
      %v4822 = vpop.permute.xlu0 %4821
      %4825 = vset.pattern.permute.xlu0 0
      %4826 = vperm.xlu0 %4825, %v4780
      %v4827 = vpop.permute.xlu0 %4826
      %4830 = vset.pattern.permute.xlu0 0
      %4831 = vperm.xlu0 %4830, %v4781
      %v4832 = vpop.permute.xlu0 %4831
      %4835 = vset.pattern.permute.xlu0 0
      %4836 = vperm.xlu0 %4835, %v4782
      %v4837 = vpop.permute.xlu0 %4836
      %4840 = vset.pattern.permute.xlu0 0
      %4841 = vperm.xlu0 %4840, %v4783
      %v4842 = vpop.permute.xlu0 %4841
      %4845 = vset.pattern.permute.xlu0 0
      %4846 = vperm.xlu0 %4845, %v4784
      %v4847 = vpop.permute.xlu0 %4846
      %4850 = vset.pattern.permute.xlu0 0
      %4851 = vperm.xlu0 %4850, %v4785
      %v4852 = vpop.permute.xlu0 %4851
      %4855 = vset.pattern.permute.xlu0 0
      %4856 = vperm.xlu0 %4855, %v4786
      %v4857 = vpop.permute.xlu0 %4856
      %4860 = vset.pattern.permute.xlu0 0
      %4861 = vperm.xlu0 %4860, %v4787
      %v4862 = vpop.permute.xlu0 %4861
      %4865 = vset.pattern.permute.xlu0 0
      %4866 = vperm.xlu0 %4865, %v4788
      %v4867 = vpop.permute.xlu0 %4866
      %v4885 = vunpack.c.l.b16 %v4725
      %v4886 = vunpack.c.l.b16 %v4726
      %v4887 = vunpack.c.l.b16 %v4727
      %v4888 = vunpack.c.l.b16 %v4728
      %v4889 = vunpack.c.l.b16 %v4729
      %v4890 = vunpack.c.l.b16 %v4730
      %v4891 = vunpack.c.l.b16 %v4731
      %v4892 = vunpack.c.l.b16 %v4732
      %v4893 = vunpack.c.l.b16 %v4733
      %v4894 = vunpack.c.l.b16 %v4734
      %v4895 = vunpack.c.l.b16 %v4735
      %v4896 = vunpack.c.l.b16 %v4736
      %v4897 = vunpack.c.l.b16 %v4737
      %v4898 = vunpack.c.l.b16 %v4738
      %v4899 = vunpack.c.l.b16 %v4739
      %v4900 = vunpack.c.l.b16 %v4740
      %v4901 = vpack.c.b16 %v4886, %v4885
      %v4902 = vpack.c.b16 %v4888, %v4887
      %v4903 = vpack.c.b16 %v4890, %v4889
      %v4904 = vpack.c.b16 %v4892, %v4891
      %v4905 = vpack.c.b16 %v4894, %v4893
      %v4906 = vpack.c.b16 %v4896, %v4895
      %v4907 = vpack.c.b16 %v4898, %v4897
      %v4908 = vpack.c.b16 %v4900, %v4899
      %4917 = vmatprep.subr.bf16.mxu0 %v4770
      %4918 = vmatpush1.bf16.msra.mxu0 %v4769
      %4919 = vmatprep.subr.bf16.mxu0 %v4766
      %4920 = vmatpush1.bf16.msra.mxu0 %v4765
      %4921 = vmatprep.subr.bf16.mxu0 %v4762
      %4922 = vmatpush1.bf16.msra.mxu0 %v4761
      %4923 = vmatprep.subr.bf16.mxu0 %v4758
      %4924 = vmatpush1.bf16.msra.mxu0 %v4757
      %4925 = vmatprep.subr.bf16.mxu0 %v4754
      %4926 = vmatpush1.bf16.msra.mxu0 %v4753
      %4927 = vmatprep.subr.bf16.mxu0 %v4750
      %4928 = vmatpush1.bf16.msra.mxu0 %v4749
      %4929 = vmatprep.subr.bf16.mxu0 %v4746
      %4930 = vmatpush1.bf16.msra.mxu0 %v4745
      %4931 = vmatprep.subr.bf16.mxu0 %v4742
      %4932 = vmatpush1.bf16.msra.mxu0 %v4741
      %4933 = vmatprep.subr.bf16.mxu0 0
      %4934 = vmatpush2.bf16.msra.mxu0 0
      %4935 = vmatprep.subr.bf16.mxu0 0
      %4936 = vmatpush2.bf16.msra.mxu0 0
      %4937 = vmatprep.subr.bf16.mxu0 0
      %4938 = vmatpush2.bf16.msra.mxu0 0
      %4939 = vmatprep.subr.bf16.mxu0 0
      %4940 = vmatpush2.bf16.msra.mxu0 0
      %4941 = vmatprep.subr.bf16.mxu0 0
      %4942 = vmatpush2.bf16.msra.mxu0 0
      %4943 = vmatprep.subr.bf16.mxu0 0
      %4944 = vmatpush2.bf16.msra.mxu0 0
      %4945 = vmatprep.subr.bf16.mxu0 0
      %4946 = vmatpush2.bf16.msra.mxu0 0
      %4947 = vmatprep.subr.bf16.mxu0 0
      %4948 = vmatpush2.bf16.msra.mxu0 0
      %4949 = vmatprep.mubr.bf16.mxu0 0
      %4950 = vmatmul.mubr.bf16.gmra.mxu0 %v4901
      %v4951 = vpop.f32.mrf.mxu0
      %v4952 = vadd.f32 %v4792, %v4951
      %v4953 = vpop.f32.mrf.mxu0
      %v4954 = vadd.f32 %v4792, %v4953
      %v4955 = vpop.f32.mrf.mxu0
      %v4956 = vadd.f32 %v4797, %v4955
      %v4957 = vpop.f32.mrf.mxu0
      %v4958 = vadd.f32 %v4797, %v4957
      %4959 = vmatprep.mubr.bf16.mxu0 0
      %4960 = vmatmul.mubr.bf16.gmra.mxu0 %v4902
      %v4961 = vpop.f32.mrf.mxu0
      %v4962 = vadd.f32 %v4802, %v4961
      %v4963 = vpop.f32.mrf.mxu0
      %v4964 = vadd.f32 %v4802, %v4963
      %v4965 = vpop.f32.mrf.mxu0
      %v4966 = vadd.f32 %v4807, %v4965
      %v4967 = vpop.f32.mrf.mxu0
      %v4968 = vadd.f32 %v4807, %v4967
      %4969 = vmatprep.mubr.bf16.mxu0 0
      %4970 = vmatmul.mubr.bf16.gmra.mxu0 %v4903
      %v4971 = vpop.f32.mrf.mxu0
      %v4972 = vadd.f32 %v4812, %v4971
      %v4973 = vpop.f32.mrf.mxu0
      %v4974 = vadd.f32 %v4812, %v4973
      %v4975 = vpop.f32.mrf.mxu0
      %v4976 = vadd.f32 %v4817, %v4975
      %v4977 = vpop.f32.mrf.mxu0
      %v4978 = vadd.f32 %v4817, %v4977
      %4979 = vmatprep.mubr.bf16.mxu0 0
      %4980 = vmatmul.mubr.bf16.gmra.mxu0 %v4904
      %v4981 = vpop.f32.mrf.mxu0
      %v4982 = vadd.f32 %v4822, %v4981
      %v4983 = vpop.f32.mrf.mxu0
      %v4984 = vadd.f32 %v4822, %v4983
      %v4985 = vpop.f32.mrf.mxu0
      %v4986 = vadd.f32 %v4827, %v4985
      %v4987 = vpop.f32.mrf.mxu0
      %v4988 = vadd.f32 %v4827, %v4987
      %4989 = vmatprep.mubr.bf16.mxu0 0
      %4990 = vmatmul.mubr.bf16.gmra.mxu0 %v4905
      %v4991 = vpop.f32.mrf.mxu0
      %v4992 = vadd.f32 %v4832, %v4991
      %v4993 = vpop.f32.mrf.mxu0
      %v4994 = vadd.f32 %v4832, %v4993
      %v4995 = vpop.f32.mrf.mxu0
      %v4996 = vadd.f32 %v4837, %v4995
      %v4997 = vpop.f32.mrf.mxu0
      %v4998 = vadd.f32 %v4837, %v4997
      %4999 = vmatprep.mubr.bf16.mxu0 0
      %5000 = vmatmul.mubr.bf16.gmra.mxu0 %v4906
      %v5001 = vpop.f32.mrf.mxu0
      %v5002 = vadd.f32 %v4842, %v5001
      %v5003 = vpop.f32.mrf.mxu0
      %v5004 = vadd.f32 %v4842, %v5003
      %v5005 = vpop.f32.mrf.mxu0
      %v5006 = vadd.f32 %v4847, %v5005
      %v5007 = vpop.f32.mrf.mxu0
      %v5008 = vadd.f32 %v4847, %v5007
      %5009 = vmatprep.mubr.bf16.mxu0 0
      %5010 = vmatmul.mubr.bf16.gmra.mxu0 %v4907
      %v5011 = vpop.f32.mrf.mxu0
      %v5012 = vadd.f32 %v4852, %v5011
      %v5013 = vpop.f32.mrf.mxu0
      %v5014 = vadd.f32 %v4852, %v5013
      %v5015 = vpop.f32.mrf.mxu0
      %v5016 = vadd.f32 %v4857, %v5015
      %v5017 = vpop.f32.mrf.mxu0
      %v5018 = vadd.f32 %v4857, %v5017
      %5019 = vmatprep.mubr.bf16.mxu0 0
      %5020 = vmatmul.mubr.bf16.gmra.mxu0 %v4908
      %v5021 = vpop.f32.mrf.mxu0
      %v5022 = vadd.f32 %v4862, %v5021
      %v5023 = vpop.f32.mrf.mxu0
      %v5024 = vadd.f32 %v4862, %v5023
      %v5025 = vpop.f32.mrf.mxu0
      %v5026 = vadd.f32 %v4867, %v5025
      %v5027 = vpop.f32.mrf.mxu0
      %v5028 = vadd.f32 %v4867, %v5027
      %5029 = vdwg.mxu0
      %5030 = vmatprep.subr.bf16.mxu0 %v4772
      %5031 = vmatpush1.bf16.msra.mxu0 %v4771
      %5032 = vmatprep.subr.bf16.mxu0 %v4768
      %5033 = vmatpush1.bf16.msra.mxu0 %v4767
      %5034 = vmatprep.subr.bf16.mxu0 %v4764
      %5035 = vmatpush1.bf16.msra.mxu0 %v4763
      %5036 = vmatprep.subr.bf16.mxu0 %v4760
      %5037 = vmatpush1.bf16.msra.mxu0 %v4759
      %5038 = vmatprep.subr.bf16.mxu0 %v4756
      %5039 = vmatpush1.bf16.msra.mxu0 %v4755
      %5040 = vmatprep.subr.bf16.mxu0 %v4752
      %5041 = vmatpush1.bf16.msra.mxu0 %v4751
      %5042 = vmatprep.subr.bf16.mxu0 %v4748
      %5043 = vmatpush1.bf16.msra.mxu0 %v4747
      %5044 = vmatprep.subr.bf16.mxu0 %v4744
      %5045 = vmatpush1.bf16.msra.mxu0 %v4743
      %5046 = vmatprep.subr.bf16.mxu0 0
      %5047 = vmatpush2.bf16.msra.mxu0 0
      %5048 = vmatprep.subr.bf16.mxu0 0
      %5049 = vmatpush2.bf16.msra.mxu0 0
      %5050 = vmatprep.subr.bf16.mxu0 0
      %5051 = vmatpush2.bf16.msra.mxu0 0
      %5052 = vmatprep.subr.bf16.mxu0 0
      %5053 = vmatpush2.bf16.msra.mxu0 0
      %5054 = vmatprep.subr.bf16.mxu0 0
      %5055 = vmatpush2.bf16.msra.mxu0 0
      %5056 = vmatprep.subr.bf16.mxu0 0
      %5057 = vmatpush2.bf16.msra.mxu0 0
      %5058 = vmatprep.subr.bf16.mxu0 0
      %5059 = vmatpush2.bf16.msra.mxu0 0
      %5060 = vmatprep.subr.bf16.mxu0 0
      %5061 = vmatpush2.bf16.msra.mxu0 0
      %5062 = vmatprep.mubr.bf16.mxu0 0
      %5063 = vmatmul.mubr.bf16.gmra.mxu0 %v4901
      %v5064 = vpop.f32.mrf.mxu0
      %v5065 = vadd.f32 %v4792, %v5064
      %v5066 = vpop.f32.mrf.mxu0
      %v5067 = vadd.f32 %v4792, %v5066
      %v5068 = vpop.f32.mrf.mxu0
      %v5069 = vadd.f32 %v4797, %v5068
      %v5070 = vpop.f32.mrf.mxu0
      %v5071 = vadd.f32 %v4797, %v5070
      %5072 = vmatprep.mubr.bf16.mxu0 0
      %5073 = vmatmul.mubr.bf16.gmra.mxu0 %v4902
      %v5074 = vpop.f32.mrf.mxu0
      %v5075 = vadd.f32 %v4802, %v5074
      %v5076 = vpop.f32.mrf.mxu0
      %v5077 = vadd.f32 %v4802, %v5076
      %v5078 = vpop.f32.mrf.mxu0
      %v5079 = vadd.f32 %v4807, %v5078
      %v5080 = vpop.f32.mrf.mxu0
      %v5081 = vadd.f32 %v4807, %v5080
      %5082 = vmatprep.mubr.bf16.mxu0 0
      %5083 = vmatmul.mubr.bf16.gmra.mxu0 %v4903
      %v5084 = vpop.f32.mrf.mxu0
      %v5085 = vadd.f32 %v4812, %v5084
      %v5086 = vpop.f32.mrf.mxu0
      %v5087 = vadd.f32 %v4812, %v5086
      %v5088 = vpop.f32.mrf.mxu0
      %v5089 = vadd.f32 %v4817, %v5088
      %v5090 = vpop.f32.mrf.mxu0
      %v5091 = vadd.f32 %v4817, %v5090
      %5092 = vmatprep.mubr.bf16.mxu0 0
      %5093 = vmatmul.mubr.bf16.gmra.mxu0 %v4904
      %v5094 = vpop.f32.mrf.mxu0
      %v5095 = vadd.f32 %v4822, %v5094
      %v5096 = vpop.f32.mrf.mxu0
      %v5097 = vadd.f32 %v4822, %v5096
      %v5098 = vpop.f32.mrf.mxu0
      %v5099 = vadd.f32 %v4827, %v5098
      %v5100 = vpop.f32.mrf.mxu0
      %v5101 = vadd.f32 %v4827, %v5100
      %5102 = vmatprep.mubr.bf16.mxu0 0
      %5103 = vmatmul.mubr.bf16.gmra.mxu0 %v4905
      %v5104 = vpop.f32.mrf.mxu0
      %v5105 = vadd.f32 %v4832, %v5104
      %v5106 = vpop.f32.mrf.mxu0
      %v5107 = vadd.f32 %v4832, %v5106
      %v5108 = vpop.f32.mrf.mxu0
      %v5109 = vadd.f32 %v4837, %v5108
      %v5110 = vpop.f32.mrf.mxu0
      %v5111 = vadd.f32 %v4837, %v5110
      %5112 = vmatprep.mubr.bf16.mxu0 0
      %5113 = vmatmul.mubr.bf16.gmra.mxu0 %v4906
      %v5114 = vpop.f32.mrf.mxu0
      %v5115 = vadd.f32 %v4842, %v5114
      %v5116 = vpop.f32.mrf.mxu0
      %v5117 = vadd.f32 %v4842, %v5116
      %v5118 = vpop.f32.mrf.mxu0
      %v5119 = vadd.f32 %v4847, %v5118
      %v5120 = vpop.f32.mrf.mxu0
      %v5121 = vadd.f32 %v4847, %v5120
      %5122 = vmatprep.mubr.bf16.mxu0 0
      %5123 = vmatmul.mubr.bf16.gmra.mxu0 %v4907
      %v5124 = vpop.f32.mrf.mxu0
      %v5125 = vadd.f32 %v4852, %v5124
      %v5126 = vpop.f32.mrf.mxu0
      %v5127 = vadd.f32 %v4852, %v5126
      %v5128 = vpop.f32.mrf.mxu0
      %v5129 = vadd.f32 %v4857, %v5128
      %v5130 = vpop.f32.mrf.mxu0
      %v5131 = vadd.f32 %v4857, %v5130
      %5132 = vmatprep.mubr.bf16.mxu0 0
      %5133 = vmatmul.mubr.bf16.gmra.mxu0 %v4908
      %v5134 = vpop.f32.mrf.mxu0
      %v5135 = vadd.f32 %v4862, %v5134
      %v5136 = vpop.f32.mrf.mxu0
      %v5137 = vadd.f32 %v4862, %v5136
      %v5138 = vpop.f32.mrf.mxu0
      %v5139 = vadd.f32 %v4867, %v5138
      %v5140 = vpop.f32.mrf.mxu0
      %v5141 = vadd.f32 %v4867, %v5140
      %5142 = vdwg.mxu0
      %vm5143 = vcmp.ge.f32.partialorder %v4952, 0.0
      %vm5144 = vcmp.ge.f32.partialorder %v4954, 0.0
      %vm5145 = vcmp.ge.f32.partialorder %v5065, 0.0
      %vm5146 = vcmp.ge.f32.partialorder %v5067, 0.0
      %vm5147 = vcmp.ge.f32.partialorder %v4956, 0.0
      %vm5148 = vcmp.ge.f32.partialorder %v4958, 0.0
      %vm5149 = vcmp.ge.f32.partialorder %v5069, 0.0
      %vm5150 = vcmp.ge.f32.partialorder %v5071, 0.0
      %vm5151 = vcmp.ge.f32.partialorder %v4962, 0.0
      %vm5152 = vcmp.ge.f32.partialorder %v4964, 0.0
      %vm5153 = vcmp.ge.f32.partialorder %v5075, 0.0
      %vm5154 = vcmp.ge.f32.partialorder %v5077, 0.0
      %vm5155 = vcmp.ge.f32.partialorder %v4966, 0.0
      %vm5156 = vcmp.ge.f32.partialorder %v4968, 0.0
      %vm5157 = vcmp.ge.f32.partialorder %v5079, 0.0
      %vm5158 = vcmp.ge.f32.partialorder %v5081, 0.0
      %vm5159 = vcmp.ge.f32.partialorder %v4972, 0.0
      %vm5160 = vcmp.ge.f32.partialorder %v4974, 0.0
      %vm5161 = vcmp.ge.f32.partialorder %v5085, 0.0
      %vm5162 = vcmp.ge.f32.partialorder %v5087, 0.0
      %vm5163 = vcmp.ge.f32.partialorder %v4976, 0.0
      %vm5164 = vcmp.ge.f32.partialorder %v4978, 0.0
      %vm5165 = vcmp.ge.f32.partialorder %v5089, 0.0
      %vm5166 = vcmp.ge.f32.partialorder %v5091, 0.0
      %vm5167 = vcmp.ge.f32.partialorder %v4982, 0.0
      %vm5168 = vcmp.ge.f32.partialorder %v4984, 0.0
      %vm5169 = vcmp.ge.f32.partialorder %v5095, 0.0
      %vm5170 = vcmp.ge.f32.partialorder %v5097, 0.0
      %vm5171 = vcmp.ge.f32.partialorder %v4986, 0.0
      %vm5172 = vcmp.ge.f32.partialorder %v4988, 0.0
      %vm5173 = vcmp.ge.f32.partialorder %v5099, 0.0
      %vm5174 = vcmp.ge.f32.partialorder %v5101, 0.0
      %vm5175 = vcmp.ge.f32.partialorder %v4992, 0.0
      %vm5176 = vcmp.ge.f32.partialorder %v4994, 0.0
      %vm5177 = vcmp.ge.f32.partialorder %v5105, 0.0
      %vm5178 = vcmp.ge.f32.partialorder %v5107, 0.0
      %vm5179 = vcmp.ge.f32.partialorder %v4996, 0.0
      %vm5180 = vcmp.ge.f32.partialorder %v4998, 0.0
      %vm5181 = vcmp.ge.f32.partialorder %v5109, 0.0
      %vm5182 = vcmp.ge.f32.partialorder %v5111, 0.0
      %vm5183 = vcmp.ge.f32.partialorder %v5002, 0.0
      %vm5184 = vcmp.ge.f32.partialorder %v5004, 0.0
      %vm5185 = vcmp.ge.f32.partialorder %v5115, 0.0
      %vm5186 = vcmp.ge.f32.partialorder %v5117, 0.0
      %vm5187 = vcmp.ge.f32.partialorder %v5006, 0.0
      %vm5188 = vcmp.ge.f32.partialorder %v5008, 0.0
      %vm5189 = vcmp.ge.f32.partialorder %v5119, 0.0
      %vm5190 = vcmp.ge.f32.partialorder %v5121, 0.0
      %vm5191 = vcmp.ge.f32.partialorder %v5012, 0.0
      %vm5192 = vcmp.ge.f32.partialorder %v5014, 0.0
      %vm5193 = vcmp.ge.f32.partialorder %v5125, 0.0
      %vm5194 = vcmp.ge.f32.partialorder %v5127, 0.0
      %vm5195 = vcmp.ge.f32.partialorder %v5016, 0.0
      %vm5196 = vcmp.ge.f32.partialorder %v5018, 0.0
      %vm5197 = vcmp.ge.f32.partialorder %v5129, 0.0
      %vm5198 = vcmp.ge.f32.partialorder %v5131, 0.0
      %vm5199 = vcmp.ge.f32.partialorder %v5022, 0.0
      %vm5200 = vcmp.ge.f32.partialorder %v5024, 0.0
      %vm5201 = vcmp.ge.f32.partialorder %v5135, 0.0
      %vm5202 = vcmp.ge.f32.partialorder %v5137, 0.0
      %vm5203 = vcmp.ge.f32.partialorder %v5026, 0.0
      %vm5204 = vcmp.ge.f32.partialorder %v5028, 0.0
      %vm5205 = vcmp.ge.f32.partialorder %v5139, 0.0
      %vm5206 = vcmp.ge.f32.partialorder %v5141, 0.0
      %v5207 = vmul.f32 %v4952, 0.01
      %v5208 = vmul.f32 %v4954, 0.01
      %v5209 = vmul.f32 %v5065, 0.01
      %v5210 = vmul.f32 %v5067, 0.01
      %v5211 = vmul.f32 %v4956, 0.01
      %v5212 = vmul.f32 %v4958, 0.01
      %v5213 = vmul.f32 %v5069, 0.01
      %v5214 = vmul.f32 %v5071, 0.01
      %v5215 = vmul.f32 %v4962, 0.01
      %v5216 = vmul.f32 %v4964, 0.01
      %v5217 = vmul.f32 %v5075, 0.01
      %v5218 = vmul.f32 %v5077, 0.01
      %v5219 = vmul.f32 %v4966, 0.01
      %v5220 = vmul.f32 %v4968, 0.01
      %v5221 = vmul.f32 %v5079, 0.01
      %v5222 = vmul.f32 %v5081, 0.01
      %v5223 = vmul.f32 %v4972, 0.01
      %v5224 = vmul.f32 %v4974, 0.01
      %v5225 = vmul.f32 %v5085, 0.01
      %v5226 = vmul.f32 %v5087, 0.01
      %v5227 = vmul.f32 %v4976, 0.01
      %v5228 = vmul.f32 %v4978, 0.01
      %v5229 = vmul.f32 %v5089, 0.01
      %v5230 = vmul.f32 %v5091, 0.01
      %v5231 = vmul.f32 %v4982, 0.01
      %v5232 = vmul.f32 %v4984, 0.01
      %v5233 = vmul.f32 %v5095, 0.01
      %v5234 = vmul.f32 %v5097, 0.01
      %v5235 = vmul.f32 %v4986, 0.01
      %v5236 = vmul.f32 %v4988, 0.01
      %v5237 = vmul.f32 %v5099, 0.01
      %v5238 = vmul.f32 %v5101, 0.01
      %v5239 = vmul.f32 %v4992, 0.01
      %v5240 = vmul.f32 %v4994, 0.01
      %v5241 = vmul.f32 %v5105, 0.01
      %v5242 = vmul.f32 %v5107, 0.01
      %v5243 = vmul.f32 %v4996, 0.01
      %v5244 = vmul.f32 %v4998, 0.01
      %v5245 = vmul.f32 %v5109, 0.01
      %v5246 = vmul.f32 %v5111, 0.01
      %v5247 = vmul.f32 %v5002, 0.01
      %v5248 = vmul.f32 %v5004, 0.01
      %v5249 = vmul.f32 %v5115, 0.01
      %v5250 = vmul.f32 %v5117, 0.01
      %v5251 = vmul.f32 %v5006, 0.01
      %v5252 = vmul.f32 %v5008, 0.01
      %v5253 = vmul.f32 %v5119, 0.01
      %v5254 = vmul.f32 %v5121, 0.01
      %v5255 = vmul.f32 %v5012, 0.01
      %v5256 = vmul.f32 %v5014, 0.01
      %v5257 = vmul.f32 %v5125, 0.01
      %v5258 = vmul.f32 %v5127, 0.01
      %v5259 = vmul.f32 %v5016, 0.01
      %v5260 = vmul.f32 %v5018, 0.01
      %v5261 = vmul.f32 %v5129, 0.01
      %v5262 = vmul.f32 %v5131, 0.01
      %v5263 = vmul.f32 %v5022, 0.01
      %v5264 = vmul.f32 %v5024, 0.01
      %v5265 = vmul.f32 %v5135, 0.01
      %v5266 = vmul.f32 %v5137, 0.01
      %v5267 = vmul.f32 %v5026, 0.01
      %v5268 = vmul.f32 %v5028, 0.01
      %v5269 = vmul.f32 %v5139, 0.01
      %v5270 = vmul.f32 %v5141, 0.01
      %v5271 = vsel %vm5143, %v4952, %v5207
      %v5272 = vsel %vm5144, %v4954, %v5208
      %v5273 = vsel %vm5145, %v5065, %v5209
      %v5274 = vsel %vm5146, %v5067, %v5210
      %v5275 = vsel %vm5147, %v4956, %v5211
      %v5276 = vsel %vm5148, %v4958, %v5212
      %v5277 = vsel %vm5149, %v5069, %v5213
      %v5278 = vsel %vm5150, %v5071, %v5214
      %v5279 = vsel %vm5151, %v4962, %v5215
      %v5280 = vsel %vm5152, %v4964, %v5216
      %v5281 = vsel %vm5153, %v5075, %v5217
      %v5282 = vsel %vm5154, %v5077, %v5218
      %v5283 = vsel %vm5155, %v4966, %v5219
      %v5284 = vsel %vm5156, %v4968, %v5220
      %v5285 = vsel %vm5157, %v5079, %v5221
      %v5286 = vsel %vm5158, %v5081, %v5222
      %v5287 = vsel %vm5159, %v4972, %v5223
      %v5288 = vsel %vm5160, %v4974, %v5224
      %v5289 = vsel %vm5161, %v5085, %v5225
      %v5290 = vsel %vm5162, %v5087, %v5226
      %v5291 = vsel %vm5163, %v4976, %v5227
      %v5292 = vsel %vm5164, %v4978, %v5228
      %v5293 = vsel %vm5165, %v5089, %v5229
      %v5294 = vsel %vm5166, %v5091, %v5230
      %v5295 = vsel %vm5167, %v4982, %v5231
      %v5296 = vsel %vm5168, %v4984, %v5232
      %v5297 = vsel %vm5169, %v5095, %v5233
      %v5298 = vsel %vm5170, %v5097, %v5234
      %v5299 = vsel %vm5171, %v4986, %v5235
      %v5300 = vsel %vm5172, %v4988, %v5236
      %v5301 = vsel %vm5173, %v5099, %v5237
      %v5302 = vsel %vm5174, %v5101, %v5238
      %v5303 = vsel %vm5175, %v4992, %v5239
      %v5304 = vsel %vm5176, %v4994, %v5240
      %v5305 = vsel %vm5177, %v5105, %v5241
      %v5306 = vsel %vm5178, %v5107, %v5242
      %v5307 = vsel %vm5179, %v4996, %v5243
      %v5308 = vsel %vm5180, %v4998, %v5244
      %v5309 = vsel %vm5181, %v5109, %v5245
      %v5310 = vsel %vm5182, %v5111, %v5246
      %v5311 = vsel %vm5183, %v5002, %v5247
      %v5312 = vsel %vm5184, %v5004, %v5248
      %v5313 = vsel %vm5185, %v5115, %v5249
      %v5314 = vsel %vm5186, %v5117, %v5250
      %v5315 = vsel %vm5187, %v5006, %v5251
      %v5316 = vsel %vm5188, %v5008, %v5252
      %v5317 = vsel %vm5189, %v5119, %v5253
      %v5318 = vsel %vm5190, %v5121, %v5254
      %v5319 = vsel %vm5191, %v5012, %v5255
      %v5320 = vsel %vm5192, %v5014, %v5256
      %v5321 = vsel %vm5193, %v5125, %v5257
      %v5322 = vsel %vm5194, %v5127, %v5258
      %v5323 = vsel %vm5195, %v5016, %v5259
      %v5324 = vsel %vm5196, %v5018, %v5260
      %v5325 = vsel %vm5197, %v5129, %v5261
      %v5326 = vsel %vm5198, %v5131, %v5262
      %v5327 = vsel %vm5199, %v5022, %v5263
      %v5328 = vsel %vm5200, %v5024, %v5264
      %v5329 = vsel %vm5201, %v5135, %v5265
      %v5330 = vsel %vm5202, %v5137, %v5266
      %v5331 = vsel %vm5203, %v5026, %v5267
      %v5332 = vsel %vm5204, %v5028, %v5268
      %v5333 = vsel %vm5205, %v5139, %v5269
      %v5334 = vsel %vm5206, %v5141, %v5270
      %v5335 = vld [vmem:[%s9] sm:$0x1]
      %v5336 = vpack.c.bf16 %v5275, %v5271
      %v5337 = vpack.c.bf16 %v5276, %v5272
      %v5338 = vpack.c.bf16 %v5277, %v5273
      %v5339 = vpack.c.bf16 %v5278, %v5274
      %v5340 = vpack.c.bf16 %v5283, %v5279
      %v5341 = vpack.c.bf16 %v5284, %v5280
      %v5342 = vpack.c.bf16 %v5285, %v5281
      %v5343 = vpack.c.bf16 %v5286, %v5282
      %v5344 = vpack.c.bf16 %v5291, %v5287
      %v5345 = vpack.c.bf16 %v5292, %v5288
      %v5346 = vpack.c.bf16 %v5293, %v5289
      %v5347 = vpack.c.bf16 %v5294, %v5290
      %v5348 = vpack.c.bf16 %v5299, %v5295
      %v5349 = vpack.c.bf16 %v5300, %v5296
      %v5350 = vpack.c.bf16 %v5301, %v5297
      %v5351 = vpack.c.bf16 %v5302, %v5298
      %v5352 = vpack.c.bf16 %v5307, %v5303
      %v5353 = vpack.c.bf16 %v5308, %v5304
      %v5354 = vpack.c.bf16 %v5309, %v5305
      %v5355 = vpack.c.bf16 %v5310, %v5306
      %v5356 = vpack.c.bf16 %v5315, %v5311
      %v5357 = vpack.c.bf16 %v5316, %v5312
      %v5358 = vpack.c.bf16 %v5317, %v5313
      %v5359 = vpack.c.bf16 %v5318, %v5314
      %v5360 = vpack.c.bf16 %v5323, %v5319
      %v5361 = vpack.c.bf16 %v5324, %v5320
      %v5362 = vpack.c.bf16 %v5325, %v5321
      %v5363 = vpack.c.bf16 %v5326, %v5322
      %v5364 = vpack.c.bf16 %v5331, %v5327
      %v5365 = vpack.c.bf16 %v5332, %v5328
      %v5366 = vpack.c.bf16 %v5333, %v5329
      %v5367 = vpack.c.bf16 %v5334, %v5330
      %v5368 = vld [vmem:[%s10] sm:$0x3]
      %5370 = vset.pattern.permute.xlu0 0
      %5371 = vperm.xlu0 %5370, %v5368
      %v5372 = vpop.permute.xlu0 %5371
      %5374 = vmatprep.subr.bf16.mxu0 %v5365
      %5375 = vmatpush1.bf16.msra.mxu0 %v5364
      %5376 = vmatprep.subr.bf16.mxu0 %v5361
      %5377 = vmatpush1.bf16.msra.mxu0 %v5360
      %5378 = vmatprep.subr.bf16.mxu0 %v5357
      %5379 = vmatpush1.bf16.msra.mxu0 %v5356
      %5380 = vmatprep.subr.bf16.mxu0 %v5353
      %5381 = vmatpush1.bf16.msra.mxu0 %v5352
      %5382 = vmatprep.subr.bf16.mxu0 %v5349
      %5383 = vmatpush1.bf16.msra.mxu0 %v5348
      %5384 = vmatprep.subr.bf16.mxu0 %v5345
      %5385 = vmatpush1.bf16.msra.mxu0 %v5344
      %5386 = vmatprep.subr.bf16.mxu0 %v5341
      %5387 = vmatpush1.bf16.msra.mxu0 %v5340
      %5388 = vmatprep.subr.bf16.mxu0 %v5337
      %5389 = vmatpush1.bf16.msra.mxu0 %v5336
      %5390 = vmatprep.subr.bf16.mxu0 0
      %5391 = vmatpush2.bf16.msra.mxu0 0
      %5392 = vmatprep.subr.bf16.mxu0 0
      %5393 = vmatpush2.bf16.msra.mxu0 0
      %5394 = vmatprep.subr.bf16.mxu0 0
      %5395 = vmatpush2.bf16.msra.mxu0 0
      %5396 = vmatprep.subr.bf16.mxu0 0
      %5397 = vmatpush2.bf16.msra.mxu0 0
      %5398 = vmatprep.subr.bf16.mxu0 0
      %5399 = vmatpush2.bf16.msra.mxu0 0
      %5400 = vmatprep.subr.bf16.mxu0 0
      %5401 = vmatpush2.bf16.msra.mxu0 0
      %5402 = vmatprep.subr.bf16.mxu0 0
      %5403 = vmatpush2.bf16.msra.mxu0 0
      %5404 = vmatprep.subr.bf16.mxu0 0
      %5405 = vmatpush2.bf16.msra.mxu0 0
      %5406 = vmatprep.mubr.bf16.mxu0 0
      %5407 = vmatmul.mubr.bf16.gmra.mxu0 %v5335
      %v5408 = vpop.f32.mrf.mxu0
      %v5409 = vadd.f32 %v5372, %v5408
      %v5410 = vpop.f32.mrf.mxu0
      %v5411 = vadd.f32 %v5372, %v5410
      %v5412 = vpop.f32.mrf.mxu0
      %v5413 = vpop.f32.mrf.mxu0
      %5414 = vdwg.mxu0
      %5415 = vmatprep.subr.bf16.mxu0 %v5367
      %5416 = vmatpush1.bf16.msra.mxu0 %v5366
      %5417 = vmatprep.subr.bf16.mxu0 %v5363
      %5418 = vmatpush1.bf16.msra.mxu0 %v5362
      %5419 = vmatprep.subr.bf16.mxu0 %v5359
      %5420 = vmatpush1.bf16.msra.mxu0 %v5358
      %5421 = vmatprep.subr.bf16.mxu0 %v5355
      %5422 = vmatpush1.bf16.msra.mxu0 %v5354
      %5423 = vmatprep.subr.bf16.mxu0 %v5351
      %5424 = vmatpush1.bf16.msra.mxu0 %v5350
      %5425 = vmatprep.subr.bf16.mxu0 %v5347
      %5426 = vmatpush1.bf16.msra.mxu0 %v5346
      %5427 = vmatprep.subr.bf16.mxu0 %v5343
      %5428 = vmatpush1.bf16.msra.mxu0 %v5342
      %5429 = vmatprep.subr.bf16.mxu0 %v5339
      %5430 = vmatpush1.bf16.msra.mxu0 %v5338
      %5431 = vmatprep.subr.bf16.mxu0 0
      %5432 = vmatpush2.bf16.msra.mxu0 0
      %5433 = vmatprep.subr.bf16.mxu0 0
      %5434 = vmatpush2.bf16.msra.mxu0 0
      %5435 = vmatprep.subr.bf16.mxu0 0
      %5436 = vmatpush2.bf16.msra.mxu0 0
      %5437 = vmatprep.subr.bf16.mxu0 0
      %5438 = vmatpush2.bf16.msra.mxu0 0
      %5439 = vmatprep.subr.bf16.mxu0 0
      %5440 = vmatpush2.bf16.msra.mxu0 0
      %5441 = vmatprep.subr.bf16.mxu0 0
      %5442 = vmatpush2.bf16.msra.mxu0 0
      %5443 = vmatprep.subr.bf16.mxu0 0
      %5444 = vmatpush2.bf16.msra.mxu0 0
      %5445 = vmatprep.subr.bf16.mxu0 0
      %5446 = vmatpush2.bf16.msra.mxu0 0
      %5447 = vmatprep.mubr.bf16.mxu0 0
      %5448 = vmatmul.mubr.bf16.gmra.mxu0 %v5335
      %v5449 = vpop.f32.mrf.mxu0
      %v5450 = vadd.f32 %v5372, %v5449
      %v5451 = vpop.f32.mrf.mxu0
      %v5452 = vadd.f32 %v5372, %v5451
      %v5453 = vpop.f32.mrf.mxu0
      %v5454 = vpop.f32.mrf.mxu0
      %5455 = vdwg.mxu0
      %v5456 = vmul.f32 %v5409, 0.5
      %v5457 = vmul.f32 %v5411, 0.5
      %v5458 = vmul.f32 %v5450, 0.5
      %v5459 = vmul.f32 %v5452, 0.5
      %v5460 = vtanh.pop %v5456
      %v5461 = vtanh.pop %v5457
      %v5462 = vtanh.pop %v5458
      %v5463 = vtanh.pop %v5459
      %v5464 = vadd.f32 %v5460, 1.0
      %v5465 = vadd.f32 %v5461, 1.0
      %v5466 = vadd.f32 %v5462, 1.0
      %v5467 = vadd.f32 %v5463, 1.0
      %v5468 = vmul.f32 %v5464, 0.5
      %v5469 = vmul.f32 %v5465, 0.5
      %v5470 = vmul.f32 %v5466, 0.5
      %v5471 = vmul.f32 %v5467, 0.5
      %v5472 = vsub.f32 %v5409, 10.0
      %v5473 = vsub.f32 %v5411, 10.0
      %v5474 = vsub.f32 %v5450, 10.0
      %v5475 = vsub.f32 %v5452, 10.0
      %v5476 = vmax.f32 %v5472, 0.0
      %v5477 = vmax.f32 %v5473, 0.0
      %v5478 = vmax.f32 %v5474, 0.0
      %v5479 = vmax.f32 %v5475, 0.0
      %v5480 = vand.u32 2147483647, %v5472
      %v5481 = vand.u32 2147483647, %v5473
      %v5482 = vand.u32 2147483647, %v5474
      %v5483 = vand.u32 2147483647, %v5475
      %v5484 = vsub.f32 0.0, %v5480
      %v5485 = vsub.f32 0.0, %v5481
      %v5486 = vsub.f32 0.0, %v5482
      %v5487 = vsub.f32 0.0, %v5483
      %v5488 = vmul.f32 %v5484, 1.442695
      %v5489 = vpow.pop %v5488
      %v5490 = vmul.f32 %v5485, 1.442695
      %v5491 = vpow.pop %v5490
      %v5492 = vmul.f32 %v5486, 1.442695
      %v5493 = vpow.pop %v5492
      %v5494 = vmul.f32 %v5487, 1.442695
      %v5495 = vpow.pop %v5494
      %v5496 = vadd.f32 %v5489, 1.0
      %v5497 = vadd.f32 %v5491, 1.0
      %v5498 = vadd.f32 %v5493, 1.0
      %v5499 = vadd.f32 %v5495, 1.0
      %v5500 = vlog2.pop %v5496
      %v5501 = vmul.f32 %v5500, 0.6931472
      %v5502 = vlog2.pop %v5497
      %v5503 = vmul.f32 %v5502, 0.6931472
      %v5504 = vlog2.pop %v5498
      %v5505 = vmul.f32 %v5504, 0.6931472
      %v5506 = vlog2.pop %v5499
      %v5507 = vmul.f32 %v5506, 0.6931472
      %v5508 = vadd.f32 %v5476, %v5501
      %v5509 = vadd.f32 %v5477, %v5503
      %v5510 = vadd.f32 %v5478, %v5505
      %v5511 = vadd.f32 %v5479, %v5507
      %v5512 = vlaneseq
      %v5513 = vshrl.u32 %v5512, 7
      %vm5514 = vcmp.eq.s32.totalorder %v5513, 0
      %v5515 = vsel %vm5514, %v5468, %v5508
      %v5516 = vsel %vm5514, %v5469, %v5509
      %v5517 = vsel %vm5514, %v5470, %v5510
      %v5518 = vsel %vm5514, %v5471, %v5511
      %v5523 = vcombine.low %v5515, %v5516
      %v5524 = vcombine.low %v5517, %v5518
      %v5526 = vunpack.c.l.s4 1983009808
      %v5527 = vunpack.c.0.s8 %v5526
      %v5528 = vlaneseq
      %v5529 = vshrl.u32 %v5528, 7
      %v5530 = vsub.s32 %v5527, %v5529
      %v5531 = vrot.slane %v5523, %v5530
      %v5533 = vunpack.c.l.s4 1983009808
      %v5534 = vunpack.c.0.s8 %v5533
      %v5535 = vlaneseq
      %v5536 = vshrl.u32 %v5535, 7
      %v5537 = vsub.s32 %v5534, %v5536
      %v5538 = vrot.slane %v5524, %v5537
      %v5539 = vcombine.low %v5531, %v5538
      %5541 = vst [vmem:[%s388] sm:$0xff] %v5539
      %s5542 = smul.u32 4, %s22
      %p5543 = scmp.lt.s32.totalorder %s5542, 15
      %s5544 = scalar_select %p5543, %s5542, 15
      %s5545 = smul.addr %s5544, 2
      %s5546 = scalar_lea.vmem %s11, %s5545
      // Predicated region
      $region65: #{bucket_model_forward.1} parent=63 // pred_check
        %p5547 = pneg %p276
      $region66: #{bucket_model_forward.1} parent=63 // pred_check_branch
        %5549 = sbr.rel (%p5547) target = $region68
      $region67: #{bucket_model_forward.1} parent=63 // pred_region
        %s5550 = smul.u32 4, %s22
      $region68: #{bucket_model_forward.1} parent=63 // pred_fallthru
        _
    $region64: #{bucket_model_forward.1} parent=5 // pred_fallthru
      _
    %p5551 = scmp.le.s32.totalorder 2, %s17
    // Predicated region
    $region69: #{bucket_model_forward.1} parent=5 // pred_check
      %p5552 = pneg %p5551
    $region70: #{bucket_model_forward.1} parent=5 // pred_check_branch
      %5554 = sbr.rel (%p5552) target = $region72
    $region71: #{bucket_model_forward.1} parent=5 // pred_region
      %s5555 = ssub.s32 %s17, 2
      // Predicated region
      $region73: #{bucket_model_forward.1} parent=71 // pred_check
        %p5556 = pneg %p282
      $region74: #{bucket_model_forward.1} parent=71 // pred_check_branch
        %5558 = sbr.rel (%p5556) target = $region76
      $region75: #{bucket_model_forward.1} parent=71 // pred_region
        %s5559 = smul.u32 4, %s23
        %p5560 = scmp.lt.s32.totalorder %s5559, 15
        %s5561 = scalar_select %p5560, %s5559, 15
        %s5562 = smul.addr %s5561, 2
        %s5563 = scalar_lea.vmem %s11, %s5562
      $region76: #{bucket_model_forward.1} parent=71 // pred_fallthru
        _
    $region72: #{bucket_model_forward.1} parent=5 // pred_fallthru
      _
  $region6: #{bucket_model_forward.1} parent=0 // loop_footer
    %s21 = sadd.s32 1, %s17
  $region7: #{bucket_model_forward.1} parent=0 // loop_footer_branch
    %16 = sbr.rel target = $region3
  $region8: #{bucket_model_forward.1} parent=0 // loop_exit
    _

</llo_original>
